<compile_context>
chip_gen: v5e
topology: v5e:2x2
jax: 0.10.0
libtpu: 0.0.40
codegen_flags: <defaults>
</compile_context>

<pallas_src>
import jax
import jax.numpy as jnp
import numpy as np
from jax.experimental import pallas as pl
from jax.experimental.pallas import tpu as pltpu


def _round_up(x, m):
    return ((x + m - 1) // m) * m


def _interp_matrix(out_size, in_size):
    """1-D bilinear interpolation matrix matching F.interpolate(align_corners=False)."""
    if out_size == in_size:
        return jnp.eye(out_size, dtype=jnp.float32)
    scale = in_size / out_size
    o = jnp.arange(out_size, dtype=jnp.float32)
    src = jnp.maximum((o + 0.5) * scale - 0.5, 0.0)
    i0 = jnp.minimum(jnp.floor(src).astype(jnp.int32), in_size - 1)
    i1 = jnp.minimum(i0 + 1, in_size - 1)
    frac = src - i0.astype(jnp.float32)
    R = jnp.zeros((out_size, in_size), dtype=jnp.float32)
    R = R.at[jnp.arange(out_size), i0].add(1.0 - frac)
    R = R.at[jnp.arange(out_size), i1].add(frac)
    return R


def _tpu_vmem_capacity():
    try:
        return int(getattr(pltpu.get_tpu_info(), "vmem_capacity_bytes", 0) or 0)
    except Exception:
        return 0


def _vmem_limit_bytes():
    """Generation-safe VMEM budget (v7x has only 64 MiB physical VMEM)."""
    cap = _tpu_vmem_capacity()
    if cap <= 0:
        return 48 * 1024 * 1024                      # safe even on v7x
    return int(min(max(cap - 16 * 1024 * 1024, 32 * 1024 * 1024), 96 * 1024 * 1024))


def _choose_row_tile(H0, W0, sublane):
    """Pick TH dividing H0 so TILE_S = TH*W0 lands near a generation-aware target
    (bigger on 128-MiB-VMEM chips) while respecting (8,128)/bf16 sublane packing."""
    cap = _tpu_vmem_capacity()
    target_rows = 2048 if cap >= 100 * 1024 * 1024 else 1024
    cands = [th for th in range(1, H0 + 1)
             if H0 % th == 0
             and (th == H0 or (th % 8 == 0 and (th * W0) % sublane == 0))]
    return min(cands, key=lambda th: (abs(th * W0 - target_rows), th))


def _make_kernel(num_coarse, compute_dtype):
    def kernel(*refs):
        xf_ref = refs[0]                               # [TILE_S, C0p]   finest tile
        wf_ref = refs[1]                               # [C0p, Ep]       folded weight
        coarse = [refs[2 + 2 * j: 4 + 2 * j] for j in range(num_coarse)]
        bias_ref, pw_ref, pb_ref = refs[2 + 2 * num_coarse: 5 + 2 * num_coarse]
        out_ref = refs[5 + 2 * num_coarse]

        tile_s = xf_ref.shape[0]
        ep = wf_ref.shape[1]

        # Finest scale: folded (proj @ fuse_block) * bn_scale, already at feature res.
        acc = jnp.dot(xf_ref[...], wf_ref[...], preferred_element_type=jnp.float32)

        if num_coarse:
            th = coarse[0][0].shape[0]
            w0 = tile_s // th
            csum = None
            for rh_ref, zw_ref in coarse:
                # Only the height (H) pass of the separable bilinear upsample runs
                # per tile; projection + width (W) pass were precomputed per batch.
                u = jnp.dot(rh_ref[...].astype(compute_dtype), zw_ref[...],
                            preferred_element_type=jnp.float32)       # [TH, W0*Ep]
                csum = u if csum is None else csum + u
            # Single relayout per tile: [TH, W0*Ep] -> [TH, W0, Ep] -> [TH*W0, Ep].
            acc = acc + csum.reshape(th, w0, ep).reshape(tile_s, ep)

        # Folded bias (proj biases @ fuse blocks, scaled/shifted by eval-BN), ReLU.
        y = jnp.maximum(acc + bias_ref[...], 0.0)
        # TODO(synk): dropout implemented as identity (eval mode); training-mode RNG dropout omitted.
        out = jnp.dot(y.astype(compute_dtype), pw_ref[...],
                      preferred_element_type=jnp.float32) + pb_ref[...]
        out_ref[...] = out.astype(out_ref.dtype)

    return kernel


def init_segformer_head(key, in_channels, num_classes, embed_dim):
    """Deterministic synthetic parameters (shapes follow the torch module)."""
    L = len(in_channels)
    rev_channels = list(reversed(in_channels))
    keys = jax.random.split(key, 2 * L + 3)
    proj_w, proj_b = [], []
    for i, c in enumerate(rev_channels):
        bound = 1.0 / np.sqrt(c)
        proj_w.append(jax.random.uniform(keys[i], (c, embed_dim), jnp.float32, -bound, bound))
        proj_b.append(jax.random.uniform(keys[L + i], (1, embed_dim), jnp.float32, -bound, bound))
    # kaiming_normal(mode='fan_out') for the 1x1 fuse conv: std = sqrt(2 / out_channels)
    fuse_w = jax.random.normal(keys[2 * L], (L * embed_dim, embed_dim), jnp.float32) \
        * np.sqrt(2.0 / embed_dim)
    # BN eval-mode fold: gamma=1, beta=0, running mean=0, var=1, eps=1e-5
    eps = 1e-5
    bn_scale = jnp.ones((1, embed_dim), jnp.float32) / jnp.sqrt(jnp.ones((1, embed_dim)) + eps)
    bn_shift = jnp.zeros((1, embed_dim), jnp.float32)
    bound_p = 1.0 / np.sqrt(embed_dim)
    pred_w = jax.random.uniform(keys[2 * L + 1], (embed_dim, num_classes), jnp.float32,
                                -bound_p, bound_p)
    pred_b = jax.random.uniform(keys[2 * L + 2], (1, num_classes), jnp.float32,
                                -bound_p, bound_p)
    return dict(proj_w=proj_w, proj_b=proj_b, fuse_w=fuse_w,
                bn_scale=bn_scale, bn_shift=bn_shift, pred_w=pred_w, pred_b=pred_b)


def segformer_head_forward(xs_nchw, params, *, row_tile=None, use_bf16=True):
    L = len(xs_nchw)
    N, _, H0, W0 = xs_nchw[0].shape                  # feature_size = finest scale
    S0 = H0 * W0
    E, K = params['pred_w'].shape
    Ep = _round_up(E, 128)
    Kp = _round_up(K, 128)
    compute_dtype = jnp.bfloat16 if use_bf16 else jnp.float32
    sublane = 16 if use_bf16 else 8

    xs_rev = list(reversed(xs_nchw))                 # coarsest ... finest (= layers order)
    bn_s, bn_b = params['bn_scale'], params['bn_shift']

    # -------- trace-time parameter folding (proj + fuse + eval-BN) --------
    wcombs = []
    bias = jnp.zeros((1, E), jnp.float32)
    for i in range(L):
        wf_blk = params['fuse_w'][i * E:(i + 1) * E, :]              # [E, E]
        wcombs.append((params['proj_w'][i] @ wf_blk) * bn_s)         # [C_i, E]
        bias = bias + params['proj_b'][i] @ wf_blk                   # biases ride through the
    bias = bias * bn_s + bn_b                                        # (row-stochastic) upsample

    def pad2(a, r, c):
        return jnp.pad(a, ((0, r - a.shape[0]), (0, c - a.shape[1])))

    # -------- finest scale: stays fully in-kernel (already at feature res) --------
    C0 = xs_rev[-1].shape[1]
    C0p = _round_up(C0, 128)
    x_fine = jnp.transpose(xs_rev[-1], (0, 2, 3, 1)).reshape(N, S0, C0)
    x_fine = jnp.pad(x_fine, ((0, 0), (0, 0), (0, C0p - C0))).astype(compute_dtype)
    wcomb_fine = pad2(wcombs[-1], C0p, Ep).astype(compute_dtype)

    # -------- coarse scales: hoist projection + width(W) upsample to the wrapper --------
    # Per scale we stream zw[n] = W-upsample(x_c @ wcomb_c) of shape [Hc, W0*Ep];
    # the kernel finishes with the height(H) pass per row tile (one 2-D matmul).
    coarse = []
    for i in range(L - 1):
        _, Ci, Hc, Wc = xs_rev[i].shape
        xc = jnp.transpose(xs_rev[i], (0, 2, 3, 1))                  # [N, Hc, Wc, Ci]
        z = jnp.einsum('nhwc,ce->nhwe', xc, wcombs[i])               # f32 projection
        Rw = _interp_matrix(W0, Wc)                                  # [W0, Wc]
        zw = jnp.einsum('ow,nhwe->nhoe', Rw, z)                      # [N, Hc, W0, E]
        zw = jnp.pad(zw, ((0, 0), (0, 0), (0, 0), (0, Ep - E)))
        zw_flat = zw.reshape(N, Hc, W0 * Ep).astype(compute_dtype)
        Rh = _interp_matrix(H0, Hc)                                  # [H0, Hc] f32
        coarse.append((Rh, zw_flat, Hc))

    bias_p = pad2(bias, 1, Ep)                                        # f32
    predw_p = pad2(params['pred_w'], Ep, Kp).astype(compute_dtype)
    predb_p = pad2(params['pred_b'], 1, Kp)                           # f32

    # -------- spatial row tiling (generation-aware target) --------
    TH = row_tile if row_tile is not None else _choose_row_tile(H0, W0, sublane)
    assert H0 % TH == 0 and (TH == H0 or (TH % 8 == 0 and (TH * W0) % sublane == 0)), \
        "row_tile must divide H0; need TH%8==0 and TH*W0 a multiple of the sublane pack"
    n_tiles = H0 // TH
    TILE_S = TH * W0

    def build_specs(single_buffer_invariants):
        # Second pipeline buffer for data that never changes is pure VMEM waste.
        inv = dict(pipeline_mode=pl.Buffered(1)) if single_buffer_invariants else {}
        in_specs = [
            pl.BlockSpec((pl.Squeezed(), TILE_S, C0p), lambda n, t: (n, t, 0)),
            pl.BlockSpec((C0p, Ep), lambda n, t: (0, 0), **inv),
        ]
        for _, _, Hc in coarse:
            in_specs.append(pl.BlockSpec((TH, Hc), lambda n, t: (t, 0)))
            # zw changes only with the (outer) batch axis; keep default double
            # buffering so the next batch's (largest) DMA overlaps the tail tiles.
            in_specs.append(pl.BlockSpec((pl.Squeezed(), Hc, W0 * Ep),
                                         lambda n, t: (n, 0, 0)))
        in_specs += [
            pl.BlockSpec((1, Ep), lambda n, t: (0, 0), **inv),
            pl.BlockSpec((Ep, Kp), lambda n, t: (0, 0), **inv),
            pl.BlockSpec((1, Kp), lambda n, t: (0, 0), **inv),
        ]
        return in_specs

    operands = [x_fine, wcomb_fine]
    for Rh, zw_flat, _ in coarse:
        operands += [Rh, zw_flat]
    operands += [bias_p, predw_p, predb_p]

    # advisory cost estimate (refreshed for the hoisted structure)
    flops = 2 * N * S0 * (C0p * Ep + Ep * Kp)
    bytes_accessed = (x_fine.dtype.itemsize * x_fine.size
                      + wcomb_fine.dtype.itemsize * wcomb_fine.size
                      + predw_p.dtype.itemsize * predw_p.size
                      + 4 * (bias_p.size + predb_p.size)
                      + 4 * N * S0 * Kp)
    for Rh, zw_flat, Hc in coarse:
        flops += 2 * N * H0 * Hc * W0 * Ep
        bytes_accessed += 4 * Rh.size + zw_flat.dtype.itemsize * zw_flat.size

    def run(single_buffer_invariants):
        return pl.pallas_call(
            _make_kernel(L - 1, compute_dtype),
            out_shape=jax.ShapeDtypeStruct((N, S0, Kp), jnp.float32),
            grid=(N, n_tiles),
            in_specs=build_specs(single_buffer_invariants),
            out_specs=pl.BlockSpec((pl.Squeezed(), TILE_S, Kp), lambda n, t: (n, t, 0)),
            compiler_params=pltpu.CompilerParams(
                dimension_semantics=("parallel", "parallel"),   # megacore-shardable
                vmem_limit_bytes=_vmem_limit_bytes()),
            cost_estimate=pl.CostEstimate(flops=int(flops), transcendentals=0,
                                          bytes_accessed=int(bytes_accessed)),
        )(*operands)

    try:
        out_p = run(True)
    except Exception:
        # pl.Buffered(1) not accepted by this jax build -> default buffering.
        out_p = run(False)

    # drop class padding, [N, S0, K] -> NCHW (matches the PyTorch module output)
    out = out_p[:, :, :K].reshape(N, H0, W0, K)
    return jnp.transpose(out, (0, 3, 1, 2))


def _reference_forward(xs_nchw, params):
    """Pure-JAX reference mirroring the torch module math (for correctness checking)."""
    H0, W0 = xs_nchw[0].shape[2], xs_nchw[0].shape[3]
    N = xs_nchw[0].shape[0]
    K = params['pred_w'].shape[1]
    xs_rev = list(reversed(xs_nchw))
    outs = []
    for i, x in enumerate(xs_rev):
        _, C, Hi, Wi = x.shape
        xf = jnp.transpose(x, (0, 2, 3, 1)).reshape(N, Hi * Wi, C)
        z = xf @ params['proj_w'][i] + params['proj_b'][i]
        if i < len(xs_rev) - 1:  # all but the last (finest) are bilinearly upsampled
            M = jnp.kron(_interp_matrix(H0, Hi), _interp_matrix(W0, Wi))
            z = jnp.einsum('os,nse->noe', M, z)
        outs.append(z)
    cat = jnp.concatenate(outs, axis=-1)
    fused = cat @ params['fuse_w']
    y = jnp.maximum(fused * params['bn_scale'] + params['bn_shift'], 0.0)
    out = y @ params['pred_w'] + params['pred_b']
    return jnp.transpose(out.reshape(N, H0, W0, K), (0, 3, 1, 2))


if __name__ == "__main__":
    key = jax.random.PRNGKey(0)
    in_channels = [4, 8, 16]          # finest -> coarsest (as passed to the torch module)
    num_classes = 5
    embed_dim = 32
    N = 2
    spatial = [(16, 16), (8, 8), (4, 4)]

    k_in, k_par = jax.random.split(key)
    xkeys = jax.random.split(k_in, len(in_channels))
    xs = [jax.random.normal(xkeys[i], (N, c, h, w), jnp.float32)
          for i, (c, (h, w)) in enumerate(zip(in_channels, spatial))]

    params = init_segformer_head(k_par, in_channels, num_classes, embed_dim)
    ref = _reference_forward(xs, params)

    # Exact-f32 path (validates the fused/hoisted structure at tight tolerance).
    out_f32 = jax.block_until_ready(
        segformer_head_forward(xs, params, row_tile=8, use_bf16=False))
    np.testing.assert_allclose(np.asarray(out_f32), np.asarray(ref), rtol=1e-4, atol=1e-4)

    # bf16-MXU fast path (f32 accumulation); tolerance loosened for ~2^-9 operand
    # quantization of the bf16 inputs/weights.
    out_bf16 = jax.block_until_ready(
        segformer_head_forward(xs, params, row_tile=8, use_bf16=True))
    np.testing.assert_allclose(np.asarray(out_bf16), np.asarray(ref), rtol=5e-2, atol=5e-2)

    print("KERNEL_OK")
</pallas_src>

<mosaic_0001>
module attributes {stable_mosaic.version = 11 : i64} {
  func.func @kernel(%arg0: i32, %arg1: i32, %arg2: memref<1x128x128xf32, #tpu.memory_space<vmem>>, %arg3: memref<128x128xf32, #tpu.memory_space<vmem>>, %arg4: memref<8x4xf32, #tpu.memory_space<vmem>>, %arg5: memref<1x4x2048xf32, #tpu.memory_space<vmem>>, %arg6: memref<8x8xf32, #tpu.memory_space<vmem>>, %arg7: memref<1x8x2048xf32, #tpu.memory_space<vmem>>, %arg8: memref<1x128xf32, #tpu.memory_space<vmem>>, %arg9: memref<128x128xf32, #tpu.memory_space<vmem>>, %arg10: memref<1x128xf32, #tpu.memory_space<vmem>>, %arg11: memref<1x128x128xf32, #tpu.memory_space<vmem>>) attributes {dimension_semantics = [#tpu.dimension_semantics<parallel>, #tpu.dimension_semantics<parallel>], iteration_bounds = array<i64: 2, 2>, scalar_prefetch = 0 : i64, scratch_operands = 0 : i64, tpu.core_type = #tpu.core_type<tc>, window_params = [{transform_indices = @transform_0, window_bounds = array<i64: 1, 128, 128>}, {pipeline_mode = #tpu.pipeline_mode<synchronous>, transform_indices = @transform_1, window_bounds = array<i64: 128, 128>}, {transform_indices = @transform_2, window_bounds = array<i64: 8, 4>}, {transform_indices = @transform_3, window_bounds = array<i64: 1, 4, 2048>}, {transform_indices = @transform_4, window_bounds = array<i64: 8, 8>}, {transform_indices = @transform_5, window_bounds = array<i64: 1, 8, 2048>}, {pipeline_mode = #tpu.pipeline_mode<synchronous>, transform_indices = @transform_6, window_bounds = array<i64: 1, 128>}, {pipeline_mode = #tpu.pipeline_mode<synchronous>, transform_indices = @transform_7, window_bounds = array<i64: 128, 128>}, {pipeline_mode = #tpu.pipeline_mode<synchronous>, transform_indices = @transform_8, window_bounds = array<i64: 1, 128>}, {transform_indices = @transform_9, window_bounds = array<i64: 1, 128, 128>}]} {
    %c0 = arith.constant 0 : index
    %c0_0 = arith.constant 0 : index
    %c0_1 = arith.constant 0 : index
    %0 = vector.load %arg2[%c0, %c0_0, %c0_1] : memref<1x128x128xf32, #tpu.memory_space<vmem>>, vector<1x128x128xf32>
    %1 = vector.shape_cast %0 : vector<1x128x128xf32> to vector<128x128xf32>
    %c0_2 = arith.constant 0 : index
    %c0_3 = arith.constant 0 : index
    %2 = vector.load %arg3[%c0_2, %c0_3] : memref<128x128xf32, #tpu.memory_space<vmem>>, vector<128x128xf32>
    %cst = arith.constant dense<0.000000e+00> : vector<128x128xf32>
    %3 = tpu.matmul %1, %2, %cst {dimension_numbers = #tpu.dot_dimension_numbers<[1], [0], [0], [1], [0, 0, 1, 1], [], []>} : vector<128x128xf32>, vector<128x128xf32>, vector<128x128xf32> -> vector<128x128xf32>
    %c0_4 = arith.constant 0 : index
    %c0_5 = arith.constant 0 : index
    %4 = vector.load %arg4[%c0_4, %c0_5] : memref<8x4xf32, #tpu.memory_space<vmem>>, vector<8x4xf32>
    %c0_6 = arith.constant 0 : index
    %c0_7 = arith.constant 0 : index
    %c0_8 = arith.constant 0 : index
    %5 = vector.load %arg5[%c0_6, %c0_7, %c0_8] : memref<1x4x2048xf32, #tpu.memory_space<vmem>>, vector<1x4x2048xf32>
    %6 = vector.shape_cast %5 : vector<1x4x2048xf32> to vector<4x2048xf32>
    %cst_9 = arith.constant dense<0.000000e+00> : vector<8x2048xf32>
    %7 = tpu.matmul %4, %6, %cst_9 {dimension_numbers = #tpu.dot_dimension_numbers<[1], [0], [0], [1], [0, 0, 1, 1], [], []>} : vector<8x4xf32>, vector<4x2048xf32>, vector<8x2048xf32> -> vector<8x2048xf32>
    %c0_10 = arith.constant 0 : index
    %c0_11 = arith.constant 0 : index
    %8 = vector.load %arg6[%c0_10, %c0_11] : memref<8x8xf32, #tpu.memory_space<vmem>>, vector<8x8xf32>
    %c0_12 = arith.constant 0 : index
    %c0_13 = arith.constant 0 : index
    %c0_14 = arith.constant 0 : index
    %9 = vector.load %arg7[%c0_12, %c0_13, %c0_14] : memref<1x8x2048xf32, #tpu.memory_space<vmem>>, vector<1x8x2048xf32>
    %10 = vector.shape_cast %9 : vector<1x8x2048xf32> to vector<8x2048xf32>
    %cst_15 = arith.constant dense<0.000000e+00> : vector<8x2048xf32>
    %11 = tpu.matmul %8, %10, %cst_15 {dimension_numbers = #tpu.dot_dimension_numbers<[1], [0], [0], [1], [0, 0, 1, 1], [], []>} : vector<8x8xf32>, vector<8x2048xf32>, vector<8x2048xf32> -> vector<8x2048xf32>
    %12 = arith.addf %7, %11 : vector<8x2048xf32>
    %13 = vector.shape_cast %12 : vector<8x2048xf32> to vector<8x16x128xf32>
    %14 = vector.shape_cast %13 : vector<8x16x128xf32> to vector<128x128xf32>
    %15 = arith.addf %3, %14 : vector<128x128xf32>
    %c0_16 = arith.constant 0 : index
    %c0_17 = arith.constant 0 : index
    %16 = vector.load %arg8[%c0_16, %c0_17] : memref<1x128xf32, #tpu.memory_space<vmem>>, vector<1x128xf32>
    %17 = vector.broadcast %16 : vector<1x128xf32> to vector<128x128xf32>
    %18 = arith.addf %15, %17 : vector<128x128xf32>
    %cst_18 = arith.constant 0.000000e+00 : f32
    %19 = vector.broadcast %cst_18 : f32 to vector<128x128xf32>
    %20 = arith.maximumf %18, %19 : vector<128x128xf32>
    %c0_19 = arith.constant 0 : index
    %c0_20 = arith.constant 0 : index
    %21 = vector.load %arg9[%c0_19, %c0_20] : memref<128x128xf32, #tpu.memory_space<vmem>>, vector<128x128xf32>
    %cst_21 = arith.constant dense<0.000000e+00> : vector<128x128xf32>
    %22 = tpu.matmul %20, %21, %cst_21 {dimension_numbers = #tpu.dot_dimension_numbers<[1], [0], [0], [1], [0, 0, 1, 1], [], []>} : vector<128x128xf32>, vector<128x128xf32>, vector<128x128xf32> -> vector<128x128xf32>
    %c0_22 = arith.constant 0 : index
    %c0_23 = arith.constant 0 : index
    %23 = vector.load %arg10[%c0_22, %c0_23] : memref<1x128xf32, #tpu.memory_space<vmem>>, vector<1x128xf32>
    %24 = vector.broadcast %23 : vector<1x128xf32> to vector<128x128xf32>
    %25 = arith.addf %22, %24 : vector<128x128xf32>
    %c0_24 = arith.constant 0 : index
    %c0_25 = arith.constant 0 : index
    %c0_26 = arith.constant 0 : index
    %26 = vector.load %arg11[%c0_24, %c0_25, %c0_26] : memref<1x128x128xf32, #tpu.memory_space<vmem>>, vector<1x128x128xf32>
    %27 = vector.shape_cast %26 : vector<1x128x128xf32> to vector<128x128xf32>
    %28 = vector.shape_cast %25 : vector<128x128xf32> to vector<1x128x128xf32>
    tpu.vector_store %arg11[%c0_24, %c0_25, %c0_26], %28 {strides = array<i32>} : memref<1x128x128xf32, #tpu.memory_space<vmem>>, vector<1x128x128xf32>,
    return
  }
  func.func @transform_0(%arg0: i32, %arg1: i32) -> (i32, i32, i32) {
    %c0_i32 = arith.constant 0 : i32
    %c0_i32_0 = arith.constant 0 : i32
    return %arg0, %arg1, %c0_i32 : i32, i32, i32
  }
  func.func @transform_1(%arg0: i32, %arg1: i32) -> (i32, i32) {
    %c0_i32 = arith.constant 0 : i32
    %c0_i32_0 = arith.constant 0 : i32
    %c0_i32_1 = arith.constant 0 : i32
    return %c0_i32, %c0_i32_0 : i32, i32
  }
  func.func @transform_2(%arg0: i32, %arg1: i32) -> (i32, i32) {
    %c0_i32 = arith.constant 0 : i32
    %c0_i32_0 = arith.constant 0 : i32
    return %arg1, %c0_i32 : i32, i32
  }
  func.func @transform_3(%arg0: i32, %arg1: i32) -> (i32, i32, i32) {
    %c0_i32 = arith.constant 0 : i32
    %c0_i32_0 = arith.constant 0 : i32
    %c0_i32_1 = arith.constant 0 : i32
    return %arg0, %c0_i32, %c0_i32_0 : i32, i32, i32
  }
  func.func @transform_4(%arg0: i32, %arg1: i32) -> (i32, i32) {
    %c0_i32 = arith.constant 0 : i32
    %c0_i32_0 = arith.constant 0 : i32
    return %arg1, %c0_i32 : i32, i32
  }
  func.func @transform_5(%arg0: i32, %arg1: i32) -> (i32, i32, i32) {
    %c0_i32 = arith.constant 0 : i32
    %c0_i32_0 = arith.constant 0 : i32
    %c0_i32_1 = arith.constant 0 : i32
    return %arg0, %c0_i32, %c0_i32_0 : i32, i32, i32
  }
  func.func @transform_6(%arg0: i32, %arg1: i32) -> (i32, i32) {
    %c0_i32 = arith.constant 0 : i32
    %c0_i32_0 = arith.constant 0 : i32
    %c0_i32_1 = arith.constant 0 : i32
    return %c0_i32, %c0_i32_0 : i32, i32
  }
  func.func @transform_7(%arg0: i32, %arg1: i32) -> (i32, i32) {
    %c0_i32 = arith.constant 0 : i32
    %c0_i32_0 = arith.constant 0 : i32
    %c0_i32_1 = arith.constant 0 : i32
    return %c0_i32, %c0_i32_0 : i32, i32
  }
  func.func @transform_8(%arg0: i32, %arg1: i32) -> (i32, i32) {
    %c0_i32 = arith.constant 0 : i32
    %c0_i32_0 = arith.constant 0 : i32
    %c0_i32_1 = arith.constant 0 : i32
    return %c0_i32, %c0_i32_0 : i32, i32
  }
  func.func @transform_9(%arg0: i32, %arg1: i32) -> (i32, i32, i32) {
    %c0_i32 = arith.constant 0 : i32
    %c0_i32_0 = arith.constant 0 : i32
    return %arg0, %arg1, %c0_i32 : i32, i32, i32
  }
}

module attributes {stable_mosaic.version = 11 : i64} {
  func.func @kernel(%arg0: i32, %arg1: i32, %arg2: memref<1x128x128xf32, #tpu.memory_space<vmem>>, %arg3: memref<128x128xf32, #tpu.memory_space<vmem>>, %arg4: memref<8x4xf32, #tpu.memory_space<vmem>>, %arg5: memref<1x4x2048xf32, #tpu.memory_space<vmem>>, %arg6: memref<8x8xf32, #tpu.memory_space<vmem>>, %arg7: memref<1x8x2048xf32, #tpu.memory_space<vmem>>, %arg8: memref<1x128xf32, #tpu.memory_space<vmem>>, %arg9: memref<128x128xf32, #tpu.memory_space<vmem>>, %arg10: memref<1x128xf32, #tpu.memory_space<vmem>>, %arg11: memref<1x128x128xf32, #tpu.memory_space<vmem>>) attributes {dimension_semantics = [#tpu.dimension_semantics<parallel>, #tpu.dimension_semantics<parallel>], iteration_bounds = array<i64: 2, 2>, scalar_prefetch = 0 : i64, scratch_operands = 0 : i64, tpu.core_type = #tpu.core_type<tc>, window_params = [{transform_indices = @transform_0, window_bounds = array<i64: 1, 128, 128>}, {pipeline_mode = #tpu.pipeline_mode<synchronous>, transform_indices = @transform_1, window_bounds = array<i64: 128, 128>}, {transform_indices = @transform_2, window_bounds = array<i64: 8, 4>}, {transform_indices = @transform_3, window_bounds = array<i64: 1, 4, 2048>}, {transform_indices = @transform_4, window_bounds = array<i64: 8, 8>}, {transform_indices = @transform_5, window_bounds = array<i64: 1, 8, 2048>}, {pipeline_mode = #tpu.pipeline_mode<synchronous>, transform_indices = @transform_6, window_bounds = array<i64: 1, 128>}, {pipeline_mode = #tpu.pipeline_mode<synchronous>, transform_indices = @transform_7, window_bounds = array<i64: 128, 128>}, {pipeline_mode = #tpu.pipeline_mode<synchronous>, transform_indices = @transform_8, window_bounds = array<i64: 1, 128>}, {transform_indices = @transform_9, window_bounds = array<i64: 1, 128, 128>}]} {
    %c0 = arith.constant 0 : index
    %c0_0 = arith.constant 0 : index
    %c0_1 = arith.constant 0 : index
    %0 = vector.load %arg2[%c0, %c0_0, %c0_1] : memref<1x128x128xf32, #tpu.memory_space<vmem>>, vector<1x128x128xf32>
    %1 = vector.shape_cast %0 : vector<1x128x128xf32> to vector<128x128xf32>
    %c0_2 = arith.constant 0 : index
    %c0_3 = arith.constant 0 : index
    %2 = vector.load %arg3[%c0_2, %c0_3] : memref<128x128xf32, #tpu.memory_space<vmem>>, vector<128x128xf32>
    %cst = arith.constant dense<0.000000e+00> : vector<128x128xf32>
    %3 = tpu.matmul %1, %2, %cst {dimension_numbers = #tpu.dot_dimension_numbers<[1], [0], [0], [1], [0, 0, 1, 1], [], []>} : vector<128x128xf32>, vector<128x128xf32>, vector<128x128xf32> -> vector<128x128xf32>
    %c0_4 = arith.constant 0 : index
    %c0_5 = arith.constant 0 : index
    %4 = vector.load %arg4[%c0_4, %c0_5] : memref<8x4xf32, #tpu.memory_space<vmem>>, vector<8x4xf32>
    %c0_6 = arith.constant 0 : index
    %c0_7 = arith.constant 0 : index
    %c0_8 = arith.constant 0 : index
    %5 = vector.load %arg5[%c0_6, %c0_7, %c0_8] : memref<1x4x2048xf32, #tpu.memory_space<vmem>>, vector<1x4x2048xf32>
    %6 = vector.shape_cast %5 : vector<1x4x2048xf32> to vector<4x2048xf32>
    %cst_9 = arith.constant dense<0.000000e+00> : vector<8x2048xf32>
    %7 = tpu.matmul %4, %6, %cst_9 {dimension_numbers = #tpu.dot_dimension_numbers<[1], [0], [0], [1], [0, 0, 1, 1], [], []>} : vector<8x4xf32>, vector<4x2048xf32>, vector<8x2048xf32> -> vector<8x2048xf32>
    %c0_10 = arith.constant 0 : index
    %c0_11 = arith.constant 0 : index
    %8 = vector.load %arg6[%c0_10, %c0_11] : memref<8x8xf32, #tpu.memory_space<vmem>>, vector<8x8xf32>
    %c0_12 = arith.constant 0 : index
    %c0_13 = arith.constant 0 : index
    %c0_14 = arith.constant 0 : index
    %9 = vector.load %arg7[%c0_12, %c0_13, %c0_14] : memref<1x8x2048xf32, #tpu.memory_space<vmem>>, vector<1x8x2048xf32>
    %10 = vector.shape_cast %9 : vector<1x8x2048xf32> to vector<8x2048xf32>
    %cst_15 = arith.constant dense<0.000000e+00> : vector<8x2048xf32>
    %11 = tpu.matmul %8, %10, %cst_15 {dimension_numbers = #tpu.dot_dimension_numbers<[1], [0], [0], [1], [0, 0, 1, 1], [], []>} : vector<8x8xf32>, vector<8x2048xf32>, vector<8x2048xf32> -> vector<8x2048xf32>
    %12 = arith.addf %7, %11 : vector<8x2048xf32>
    %13 = vector.shape_cast %12 : vector<8x2048xf32> to vector<8x16x128xf32>
    %14 = vector.shape_cast %13 : vector<8x16x128xf32> to vector<128x128xf32>
    %15 = arith.addf %3, %14 : vector<128x128xf32>
    %c0_16 = arith.constant 0 : index
    %c0_17 = arith.constant 0 : index
    %16 = vector.load %arg8[%c0_16, %c0_17] : memref<1x128xf32, #tpu.memory_space<vmem>>, vector<1x128xf32>
    %17 = vector.broadcast %16 : vector<1x128xf32> to vector<128x128xf32>
    %18 = arith.addf %15, %17 : vector<128x128xf32>
    %cst_18 = arith.constant 0.000000e+00 : f32
    %19 = vector.broadcast %cst_18 : f32 to vector<128x128xf32>
    %20 = arith.maximumf %18, %19 : vector<128x128xf32>
    %c0_19 = arith.constant 0 : index
    %c0_20 = arith.constant 0 : index
    %21 = vector.load %arg9[%c0_19, %c0_20] : memref<128x128xf32, #tpu.memory_space<vmem>>, vector<128x128xf32>
    %cst_21 = arith.constant dense<0.000000e+00> : vector<128x128xf32>
    %22 = tpu.matmul %20, %21, %cst_21 {dimension_numbers = #tpu.dot_dimension_numbers<[1], [0], [0], [1], [0, 0, 1, 1], [], []>} : vector<128x128xf32>, vector<128x128xf32>, vector<128x128xf32> -> vector<128x128xf32>
    %c0_22 = arith.constant 0 : index
    %c0_23 = arith.constant 0 : index
    %23 = vector.load %arg10[%c0_22, %c0_23] : memref<1x128xf32, #tpu.memory_space<vmem>>, vector<1x128xf32>
    %24 = vector.broadcast %23 : vector<1x128xf32> to vector<128x128xf32>
    %25 = arith.addf %22, %24 : vector<128x128xf32>
    %c0_24 = arith.constant 0 : index
    %c0_25 = arith.constant 0 : index
    %c0_26 = arith.constant 0 : index
    %26 = vector.load %arg11[%c0_24, %c0_25, %c0_26] : memref<1x128x128xf32, #tpu.memory_space<vmem>>, vector<1x128x128xf32>
    %27 = vector.shape_cast %26 : vector<1x128x128xf32> to vector<128x128xf32>
    %28 = vector.shape_cast %25 : vector<128x128xf32> to vector<1x128x128xf32>
    tpu.vector_store %arg11[%c0_24, %c0_25, %c0_26], %28 {strides = array<i32>} : memref<1x128x128xf32, #tpu.memory_space<vmem>>, vector<1x128x128xf32>,
    return
  }
  func.func @transform_0(%arg0: i32, %arg1: i32) -> (i32, i32, i32) {
    %c0_i32 = arith.constant 0 : i32
    %c0_i32_0 = arith.constant 0 : i32
    return %arg0, %arg1, %c0_i32 : i32, i32, i32
  }
  func.func @transform_1(%arg0: i32, %arg1: i32) -> (i32, i32) {
    %c0_i32 = arith.constant 0 : i32
    %c0_i32_0 = arith.constant 0 : i32
    %c0_i32_1 = arith.constant 0 : i32
    return %c0_i32, %c0_i32_0 : i32, i32
  }
  func.func @transform_2(%arg0: i32, %arg1: i32) -> (i32, i32) {
    %c0_i32 = arith.constant 0 : i32
    %c0_i32_0 = arith.constant 0 : i32
    return %arg1, %c0_i32 : i32, i32
  }
  func.func @transform_3(%arg0: i32, %arg1: i32) -> (i32, i32, i32) {
    %c0_i32 = arith.constant 0 : i32
    %c0_i32_0 = arith.constant 0 : i32
    %c0_i32_1 = arith.constant 0 : i32
    return %arg0, %c0_i32, %c0_i32_0 : i32, i32, i32
  }
  func.func @transform_4(%arg0: i32, %arg1: i32) -> (i32, i32) {
    %c0_i32 = arith.constant 0 : i32
    %c0_i32_0 = arith.constant 0 : i32
    return %arg1, %c0_i32 : i32, i32
  }
  func.func @transform_5(%arg0: i32, %arg1: i32) -> (i32, i32, i32) {
    %c0_i32 = arith.constant 0 : i32
    %c0_i32_0 = arith.constant 0 : i32
    %c0_i32_1 = arith.constant 0 : i32
    return %arg0, %c0_i32, %c0_i32_0 : i32, i32, i32
  }
  func.func @transform_6(%arg0: i32, %arg1: i32) -> (i32, i32) {
    %c0_i32 = arith.constant 0 : i32
    %c0_i32_0 = arith.constant 0 : i32
    %c0_i32_1 = arith.constant 0 : i32
    return %c0_i32, %c0_i32_0 : i32, i32
  }
  func.func @transform_7(%arg0: i32, %arg1: i32) -> (i32, i32) {
    %c0_i32 = arith.constant 0 : i32
    %c0_i32_0 = arith.constant 0 : i32
    %c0_i32_1 = arith.constant 0 : i32
    return %c0_i32, %c0_i32_0 : i32, i32
  }
  func.func @transform_8(%arg0: i32, %arg1: i32) -> (i32, i32) {
    %c0_i32 = arith.constant 0 : i32
    %c0_i32_0 = arith.constant 0 : i32
    %c0_i32_1 = arith.constant 0 : i32
    return %c0_i32, %c0_i32_0 : i32, i32
  }
  func.func @transform_9(%arg0: i32, %arg1: i32) -> (i32, i32, i32) {
    %c0_i32 = arith.constant 0 : i32
    %c0_i32_0 = arith.constant 0 : i32
    return %arg0, %arg1, %c0_i32 : i32, i32, i32
  }
}

</mosaic_0001>

<llo_original>
// kernel: tpu_custom_call.1
$region0: #{tpu_custom_call.1}
  #allocation0 [shape = 'u32[]', space=smem, size = 0x4, offset = 0x4, fixed_abs, tag = 'smem constant byte address 0x4 - core index']
  #allocation1 [shape = 'u32[72,128]{1,0:T(1,128)}', space=vmem, size = 0x9000, scoped, tag = 'internal scratch']
  %s0 = inlined_call_operand.hbm [shape: f32[2,256,128], index: 0, kind: input, shape index: {}]
  %s1 = inlined_call_operand.hbm [shape: f32[128,128], index: 1, kind: input, shape index: {}]
  %s2 = inlined_call_operand.vmem [shape: f32[16,4], index: 2, kind: input, shape index: {}]
  %s3 = inlined_call_operand.hbm [shape: f32[2,4,2048], index: 3, kind: input, shape index: {}]
  %s4 = inlined_call_operand.vmem [shape: f32[16,8], index: 4, kind: input, shape index: {}]
  %s5 = inlined_call_operand.hbm [shape: f32[2,8,2048], index: 5, kind: input, shape index: {}]
  %s6 = inlined_call_operand.vmem [shape: f32[1,128], index: 6, kind: input, shape index: {}]
  %s7 = inlined_call_operand.hbm [shape: f32[128,128], index: 7, kind: input, shape index: {}]
  %s8 = inlined_call_operand.vmem [shape: f32[1,128], index: 8, kind: input, shape index: {}]
  %s9 = inlined_call_operand.hbm [shape: f32[2,256,128], index: 9, kind: output, shape index: {}]
  %s10 = sld [smem:[#allocation0]]
  $region89: #{tpu_custom_call.1} parent=0
    _
  %s12 = ssub.s32 1, %s10
  %s13 = scalar_select 0, %s12, %s10
  $region1: #{tpu_custom_call.1} parent=0
    #allocation2 [shape = 'u8[131072]{0}', space=vmem, size = 0x20000, scoped, tag = 'input window, operand 0']
    #allocation3 [shape = 's32[2]{0}', space=sflag, size = 0x8, scoped, tag = 'scoped memory for tpu_custom_call.1']
    #allocation4 [shape = 's32[2]{0}', space=sflag, size = 0x8, scoped, tag = 'scoped memory for tpu_custom_call.1']
    #allocation5 [shape = 'u8[65536]{0}', space=vmem, size = 0x10000, scoped, tag = 'input window, operand 1, single buffered']
    #allocation6 [shape = 's32[1]{0}', space=sflag, size = 0x4, scoped, tag = 'scoped memory for tpu_custom_call.1']
    #allocation7 [shape = 'u8[65536]{0}', space=vmem, size = 0x10000, scoped, tag = 'input window, operand 3']
    #allocation8 [shape = 'u8[131072]{0}', space=vmem, size = 0x20000, scoped, tag = 'input window, operand 5']
    #allocation9 [shape = 'u8[65536]{0}', space=vmem, size = 0x10000, scoped, tag = 'input window, operand 7, single buffered']
    #allocation10 [shape = 'u8[131072]{0}', space=vmem, size = 0x20000, scoped, tag = 'output window, operand 0']
    %14 = vsyncpa [#allocation3], 0
    %s15 = scalar_lea.sflag [#allocation3], 1
    %16 = vsyncpa %s15, 0
    %17 = vsyncpa [#allocation6], 0
    %18 = vsyncpa [#allocation4], 0
    %s19 = scalar_lea.sflag [#allocation4], 1
    %20 = vsyncpa %s19, 0
    loop: start=0, step=1, limit=6
    $region2: #{tpu_custom_call.1} parent=1 // loop_pre_header
      _
    $region3: #{tpu_custom_call.1} parent=1 // loop_header
      %s22 = sphi 0, %s26
      %p23 = scmp.ge.s32.totalorder %s22, 6
      %s29 = sphi 0, %s41
      %s30 = sphi 0, %s37
      %s31 = sphi 0, %s29
      %s32 = sphi 0, %s30
      %s33 = sphi 0, %s31
      %s34 = sphi 0, %s32
      %s46 = sphi 0, %s48
      %s49 = sphi 0, %s46
      %s50 = sphi 0, %s49
      %s66 = sphi 0, %s50
      %s70 = sphi 0, %s70
      %s72 = sphi 0, %s70
      %s73 = sphi 0, %s72
      %s87 = sphi 0, %s73
      %s93 = sphi 0, %s95
      %s96 = sphi 0, %s93
      %s97 = sphi 0, %s96
      %s113 = sphi 0, %s97
      %s119 = sphi 0, %s121
      %s122 = sphi 0, %s119
      %s123 = sphi 0, %s122
      %s139 = sphi 0, %s123
      %s145 = sphi 0, %s147
      %s148 = sphi 0, %s145
      %s149 = sphi 0, %s148
      %s165 = sphi 0, %s149
      %s171 = sphi 0, %s173
      %s174 = sphi 0, %s171
      %s175 = sphi 0, %s174
      %s191 = sphi 0, %s175
      %s195 = sphi 0, %s195
      %s197 = sphi 0, %s195
      %s198 = sphi 0, %s197
      %s212 = sphi 0, %s198
      %s216 = sphi 0, %s216
      %s218 = sphi 0, %s216
      %s219 = sphi 0, %s218
      %s233 = sphi 0, %s219
      %s237 = sphi 0, %s237
      %s239 = sphi 0, %s237
      %s240 = sphi 0, %s239
      %s254 = sphi 0, %s240
      %s262 = sphi 0, %s264
      %s265 = sphi 0, %s262
      %s266 = sphi 0, %s265
      %s282 = sphi 0, %s266
    $region4: #{tpu_custom_call.1} parent=1 // loop_header_branch
      %25 = sbr.rel (%p23) target = $region8
    $region5: #{tpu_custom_call.1} parent=1 // loop_body
      %s27 = ssub.s32 %s22, 1
      %s28 = ssub.s32 %s22, 2
      %s35 = sadd.s32 1, %s30
      %p36 = scmp.ge.s32.totalorder %s35, 2
      %s37 = scalar_select %p36, 0, %s35
      %s38 = sadd.s32 1, %s29
      %s39 = scalar_select %p36, %s38, %s29
      %p40 = scmp.ge.s32.totalorder %s39, 2
      %s41 = scalar_select %p40, 0, %s39
      %s42 = ssub.s32 %s29, %s41
      %s43 = ssub.s32 %s30, %s37
      %s44 = sor.u32 %s42, %s43
      %p45 = scmp.eq.s32.totalorder %s44, 0
      %s47 = sadd.s32 %s46, 1
      %s48 = scalar_select %p45, %s46, %s47
      %p51 = pneg %p45
      %p52 = scmp.eq.s32.totalorder %s22, 3
      %p53 = por %p51, %p52
      %p54 = scmp.ne.s32.totalorder %s46, %s49
      %p55 = scmp.eq.s32.totalorder %s22, 0
      %p56 = por %p54, %p55
      %p57 = scmp.ne.s32.totalorder %s46, %s49
      %p58 = scmp.eq.s32.totalorder %s27, 3
      %p59 = por %p57, %p58
      %p60 = scmp.ne.s32.totalorder %s49, %s50
      %p61 = scmp.eq.s32.totalorder %s27, 0
      %p62 = por %p60, %p61
      %p63 = scmp.ne.s32.totalorder %s49, %s50
      %p64 = scmp.eq.s32.totalorder %s28, 3
      %p65 = por %p63, %p64
      %p67 = scmp.ne.s32.totalorder %s50, %s66
      %p68 = scmp.eq.s32.totalorder %s28, 0
      %p69 = por %p67, %p68
      %s71 = sadd.s32 %s70, 1
      %p74 = scmp.eq.s32.totalorder %s22, 3
      %p75 = scmp.ne.s32.totalorder %s70, %s72
      %p76 = scmp.eq.s32.totalorder %s22, 0
      %p77 = por %p75, %p76
      %p78 = scmp.ne.s32.totalorder %s70, %s72
      %p79 = scmp.eq.s32.totalorder %s27, 3
      %p80 = por %p78, %p79
      %p81 = scmp.ne.s32.totalorder %s72, %s73
      %p82 = scmp.eq.s32.totalorder %s27, 0
      %p83 = por %p81, %p82
      %p84 = scmp.ne.s32.totalorder %s72, %s73
      %p85 = scmp.eq.s32.totalorder %s28, 3
      %p86 = por %p84, %p85
      %p88 = scmp.ne.s32.totalorder %s73, %s87
      %p89 = scmp.eq.s32.totalorder %s28, 0
      %p90 = por %p88, %p89
      %s91 = ssub.s32 %s30, %s37
      %p92 = scmp.eq.s32.totalorder %s91, 0
      %s94 = sadd.s32 %s93, 1
      %s95 = scalar_select %p92, %s93, %s94
      %p98 = pneg %p92
      %p99 = scmp.eq.s32.totalorder %s22, 3
      %p100 = por %p98, %p99
      %p101 = scmp.ne.s32.totalorder %s93, %s96
      %p102 = scmp.eq.s32.totalorder %s22, 0
      %p103 = por %p101, %p102
      %p104 = scmp.ne.s32.totalorder %s93, %s96
      %p105 = scmp.eq.s32.totalorder %s27, 3
      %p106 = por %p104, %p105
      %p107 = scmp.ne.s32.totalorder %s96, %s97
      %p108 = scmp.eq.s32.totalorder %s27, 0
      %p109 = por %p107, %p108
      %p110 = scmp.ne.s32.totalorder %s96, %s97
      %p111 = scmp.eq.s32.totalorder %s28, 3
      %p112 = por %p110, %p111
      %p114 = scmp.ne.s32.totalorder %s97, %s113
      %p115 = scmp.eq.s32.totalorder %s28, 0
      %p116 = por %p114, %p115
      %s117 = ssub.s32 %s29, %s41
      %p118 = scmp.eq.s32.totalorder %s117, 0
      %s120 = sadd.s32 %s119, 1
      %s121 = scalar_select %p118, %s119, %s120
      %p124 = pneg %p118
      %p125 = scmp.eq.s32.totalorder %s22, 3
      %p126 = por %p124, %p125
      %p127 = scmp.ne.s32.totalorder %s119, %s122
      %p128 = scmp.eq.s32.totalorder %s22, 0
      %p129 = por %p127, %p128
      %p130 = scmp.ne.s32.totalorder %s119, %s122
      %p131 = scmp.eq.s32.totalorder %s27, 3
      %p132 = por %p130, %p131
      %p133 = scmp.ne.s32.totalorder %s122, %s123
      %p134 = scmp.eq.s32.totalorder %s27, 0
      %p135 = por %p133, %p134
      %p136 = scmp.ne.s32.totalorder %s122, %s123
      %p137 = scmp.eq.s32.totalorder %s28, 3
      %p138 = por %p136, %p137
      %p140 = scmp.ne.s32.totalorder %s123, %s139
      %p141 = scmp.eq.s32.totalorder %s28, 0
      %p142 = por %p140, %p141
      %s143 = ssub.s32 %s30, %s37
      %p144 = scmp.eq.s32.totalorder %s143, 0
      %s146 = sadd.s32 %s145, 1
      %s147 = scalar_select %p144, %s145, %s146
      %p150 = pneg %p144
      %p151 = scmp.eq.s32.totalorder %s22, 3
      %p152 = por %p150, %p151
      %p153 = scmp.ne.s32.totalorder %s145, %s148
      %p154 = scmp.eq.s32.totalorder %s22, 0
      %p155 = por %p153, %p154
      %p156 = scmp.ne.s32.totalorder %s145, %s148
      %p157 = scmp.eq.s32.totalorder %s27, 3
      %p158 = por %p156, %p157
      %p159 = scmp.ne.s32.totalorder %s148, %s149
      %p160 = scmp.eq.s32.totalorder %s27, 0
      %p161 = por %p159, %p160
      %p162 = scmp.ne.s32.totalorder %s148, %s149
      %p163 = scmp.eq.s32.totalorder %s28, 3
      %p164 = por %p162, %p163
      %p166 = scmp.ne.s32.totalorder %s149, %s165
      %p167 = scmp.eq.s32.totalorder %s28, 0
      %p168 = por %p166, %p167
      %s169 = ssub.s32 %s29, %s41
      %p170 = scmp.eq.s32.totalorder %s169, 0
      %s172 = sadd.s32 %s171, 1
      %s173 = scalar_select %p170, %s171, %s172
      %p176 = pneg %p170
      %p177 = scmp.eq.s32.totalorder %s22, 3
      %p178 = por %p176, %p177
      %p179 = scmp.ne.s32.totalorder %s171, %s174
      %p180 = scmp.eq.s32.totalorder %s22, 0
      %p181 = por %p179, %p180
      %p182 = scmp.ne.s32.totalorder %s171, %s174
      %p183 = scmp.eq.s32.totalorder %s27, 3
      %p184 = por %p182, %p183
      %p185 = scmp.ne.s32.totalorder %s174, %s175
      %p186 = scmp.eq.s32.totalorder %s27, 0
      %p187 = por %p185, %p186
      %p188 = scmp.ne.s32.totalorder %s174, %s175
      %p189 = scmp.eq.s32.totalorder %s28, 3
      %p190 = por %p188, %p189
      %p192 = scmp.ne.s32.totalorder %s175, %s191
      %p193 = scmp.eq.s32.totalorder %s28, 0
      %p194 = por %p192, %p193
      %s196 = sadd.s32 %s195, 1
      %p199 = scmp.eq.s32.totalorder %s22, 3
      %p200 = scmp.ne.s32.totalorder %s195, %s197
      %p201 = scmp.eq.s32.totalorder %s22, 0
      %p202 = por %p200, %p201
      %p203 = scmp.ne.s32.totalorder %s195, %s197
      %p204 = scmp.eq.s32.totalorder %s27, 3
      %p205 = por %p203, %p204
      %p206 = scmp.ne.s32.totalorder %s197, %s198
      %p207 = scmp.eq.s32.totalorder %s27, 0
      %p208 = por %p206, %p207
      %p209 = scmp.ne.s32.totalorder %s197, %s198
      %p210 = scmp.eq.s32.totalorder %s28, 3
      %p211 = por %p209, %p210
      %p213 = scmp.ne.s32.totalorder %s198, %s212
      %p214 = scmp.eq.s32.totalorder %s28, 0
      %p215 = por %p213, %p214
      %s217 = sadd.s32 %s216, 1
      %p220 = scmp.eq.s32.totalorder %s22, 3
      %p221 = scmp.ne.s32.totalorder %s216, %s218
      %p222 = scmp.eq.s32.totalorder %s22, 0
      %p223 = por %p221, %p222
      %p224 = scmp.ne.s32.totalorder %s216, %s218
      %p225 = scmp.eq.s32.totalorder %s27, 3
      %p226 = por %p224, %p225
      %p227 = scmp.ne.s32.totalorder %s218, %s219
      %p228 = scmp.eq.s32.totalorder %s27, 0
      %p229 = por %p227, %p228
      %p230 = scmp.ne.s32.totalorder %s218, %s219
      %p231 = scmp.eq.s32.totalorder %s28, 3
      %p232 = por %p230, %p231
      %p234 = scmp.ne.s32.totalorder %s219, %s233
      %p235 = scmp.eq.s32.totalorder %s28, 0
      %p236 = por %p234, %p235
      %s238 = sadd.s32 %s237, 1
      %p241 = scmp.eq.s32.totalorder %s22, 3
      %p242 = scmp.ne.s32.totalorder %s237, %s239
      %p243 = scmp.eq.s32.totalorder %s22, 0
      %p244 = por %p242, %p243
      %p245 = scmp.ne.s32.totalorder %s237, %s239
      %p246 = scmp.eq.s32.totalorder %s27, 3
      %p247 = por %p245, %p246
      %p248 = scmp.ne.s32.totalorder %s239, %s240
      %p249 = scmp.eq.s32.totalorder %s27, 0
      %p250 = por %p248, %p249
      %p251 = scmp.ne.s32.totalorder %s239, %s240
      %p252 = scmp.eq.s32.totalorder %s28, 3
      %p253 = por %p251, %p252
      %p255 = scmp.ne.s32.totalorder %s240, %s254
      %p256 = scmp.eq.s32.totalorder %s28, 0
      %p257 = por %p255, %p256
      %s258 = ssub.s32 %s29, %s41
      %s259 = ssub.s32 %s30, %s37
      %s260 = sor.u32 %s258, %s259
      %p261 = scmp.eq.s32.totalorder %s260, 0
      %s263 = sadd.s32 %s262, 1
      %s264 = scalar_select %p261, %s262, %s263
      %p267 = pneg %p261
      %p268 = scmp.eq.s32.totalorder %s22, 3
      %p269 = por %p267, %p268
      %p270 = scmp.ne.s32.totalorder %s262, %s265
      %p271 = scmp.eq.s32.totalorder %s22, 0
      %p272 = por %p270, %p271
      %p273 = scmp.ne.s32.totalorder %s262, %s265
      %p274 = scmp.eq.s32.totalorder %s27, 3
      %p275 = por %p273, %p274
      %p276 = scmp.ne.s32.totalorder %s265, %s266
      %p277 = scmp.eq.s32.totalorder %s27, 0
      %p278 = por %p276, %p277
      %p279 = scmp.ne.s32.totalorder %s265, %s266
      %p280 = scmp.eq.s32.totalorder %s28, 3
      %p281 = por %p279, %p280
      %p283 = scmp.ne.s32.totalorder %s266, %s282
      %p284 = scmp.eq.s32.totalorder %s28, 0
      %p285 = por %p283, %p284
      %p286 = scmp.le.s32.totalorder 1, %s22
      %p287 = scmp.lt.s32.totalorder %s22, 5
      %p288 = pnand %p286, %p287
      %p289 = pneg %p288
      // Predicated region
      $region9: #{tpu_custom_call.1} parent=5 // pred_check
        _
      $region10: #{tpu_custom_call.1} parent=5 // pred_check_branch
        %291 = sbr.rel (%p288) target = $region12
      $region11: #{tpu_custom_call.1} parent=5 // pred_region
        %s292 = ssub.s32 %s22, 1
        // Predicated region
        $region13: #{tpu_custom_call.1} parent=11 // pred_check
          %p293 = pneg %p83
        $region14: #{tpu_custom_call.1} parent=11 // pred_check_branch
          %295 = sbr.rel (%p293) target = $region16
        $region15: #{tpu_custom_call.1} parent=11 // pred_region
          %297 = vsyncadd [#allocation6], 0
          %s298 = sshll.u32 %s1, 4
          %s299 = int_to_ptr.hbm [resolvable:$true] %s298
          %s300 = sshll.u32 [#allocation5], 4
          %s301 = int_to_ptr.vmem [resolvable:$true] %s300
          %306 = dma.hbm_to_vmem [thread:$0]  %s299, 2048, %s301, [#allocation6], 128, 128, 8
        $region16: #{tpu_custom_call.1} parent=11 // pred_fallthru
          _
        // Predicated region
        $region17: #{tpu_custom_call.1} parent=11 // pred_check
          %p307 = pneg %p208
        $region18: #{tpu_custom_call.1} parent=11 // pred_check_branch
          %309 = sbr.rel (%p307) target = $region20
        $region19: #{tpu_custom_call.1} parent=11 // pred_region
          _
        $region20: #{tpu_custom_call.1} parent=11 // pred_fallthru
          _
        // Predicated region
        $region21: #{tpu_custom_call.1} parent=11 // pred_check
          %p310 = pneg %p229
        $region22: #{tpu_custom_call.1} parent=11 // pred_check_branch
          %312 = sbr.rel (%p310) target = $region24
        $region23: #{tpu_custom_call.1} parent=11 // pred_region
          %314 = vsyncadd [#allocation6], 0
          %s315 = sshll.u32 %s7, 4
          %s316 = int_to_ptr.hbm [resolvable:$true] %s315
          %s317 = sshll.u32 [#allocation9], 4
          %s318 = int_to_ptr.vmem [resolvable:$true] %s317
          %323 = dma.hbm_to_vmem [thread:$0]  %s316, 2048, %s318, [#allocation6], 128, 128, 8
        $region24: #{tpu_custom_call.1} parent=11 // pred_fallthru
          _
        // Predicated region
        $region25: #{tpu_custom_call.1} parent=11 // pred_check
          %p324 = pneg %p250
        $region26: #{tpu_custom_call.1} parent=11 // pred_check_branch
          %326 = sbr.rel (%p324) target = $region28
        $region27: #{tpu_custom_call.1} parent=11 // pred_region
          _
        $region28: #{tpu_custom_call.1} parent=11 // pred_fallthru
          _
      $region12: #{tpu_custom_call.1} parent=5 // pred_fallthru
        _
      %p327 = scmp.lt.s32.totalorder %s22, 4
      // Predicated region
      $region29: #{tpu_custom_call.1} parent=5 // pred_check
        %p328 = pneg %p327
      $region30: #{tpu_custom_call.1} parent=5 // pred_check_branch
        %330 = sbr.rel (%p328) target = $region32
      $region31: #{tpu_custom_call.1} parent=5 // pred_region
        // Predicated region
        $region33: #{tpu_custom_call.1} parent=31 // pred_check
          %p331 = pneg %p56
        $region34: #{tpu_custom_call.1} parent=31 // pred_check_branch
          %333 = sbr.rel (%p331) target = $region36
        $region35: #{tpu_custom_call.1} parent=31 // pred_region
          %s334 = sand.u32 %s22, 1
          %s335 = scalar_lea.sflag [#allocation3], %s334
          %s336 = sand.u32 %s46, 1
          %s337 = smul.addr %s336, 128
          %s338 = scalar_lea.vmem [#allocation2], %s337
          %s339 = smul.u32 16, %s30
          %341 = vsyncadd %s335, 0
          %s342 = smul.addr %s29, 32
          %s343 = sadd.s32 %s339, %s342
          %s344 = smul.addr %s343, 8
          %s345 = scalar_lea.hbm %s0, %s344
          %s346 = sshll.u32 %s345, 4
          %s347 = int_to_ptr.hbm [resolvable:$true] %s346
          %s348 = sshll.u32 %s338, 4
          %s349 = int_to_ptr.vmem [resolvable:$true] %s348
          %354 = dma.hbm_to_vmem [thread:$0]  %s347, 2048, %s349, %s335, 128, 128, 8
        $region36: #{tpu_custom_call.1} parent=31 // pred_fallthru
          _
        // Predicated region
        $region37: #{tpu_custom_call.1} parent=31 // pred_check
          %p355 = pneg %p103
        $region38: #{tpu_custom_call.1} parent=31 // pred_check_branch
          %357 = sbr.rel (%p355) target = $region40
        $region39: #{tpu_custom_call.1} parent=31 // pred_region
          %p358 = scmp.lt.s32.totalorder %s30, 1
          %s359 = scalar_select %p358, %s30, 1
          %s360 = smul.addr %s359, 8
          %s361 = scalar_lea.vmem %s2, %s360
        $region40: #{tpu_custom_call.1} parent=31 // pred_fallthru
          _
        // Predicated region
        $region41: #{tpu_custom_call.1} parent=31 // pred_check
          %p362 = pneg %p129
        $region42: #{tpu_custom_call.1} parent=31 // pred_check_branch
          %364 = sbr.rel (%p362) target = $region44
        $region43: #{tpu_custom_call.1} parent=31 // pred_region
          %s365 = sand.u32 %s22, 1
          %s366 = scalar_lea.sflag [#allocation3], %s365
          %s367 = sand.u32 %s119, 1
          %s368 = smul.addr %s367, 64
          %s369 = scalar_lea.vmem [#allocation7], %s368
          %371 = vsyncadd %s366, 0
          %s372 = smul.addr %s29, 16
          %s373 = smul.addr %s372, 4
          %s374 = scalar_lea.hbm %s3, %s373
          %s376 = sshll.u32 %s374, 4
          %s377 = int_to_ptr.hbm [resolvable:$true] %s376
          %s378 = sshll.u32 %s369, 4
          %s379 = int_to_ptr.vmem [resolvable:$true] %s378
          %381 = dma.hbm_to_vmem [thread:$0]  %s377, 1024, %s379, %s366
        $region44: #{tpu_custom_call.1} parent=31 // pred_fallthru
          _
        // Predicated region
        $region45: #{tpu_custom_call.1} parent=31 // pred_check
          %p382 = pneg %p155
        $region46: #{tpu_custom_call.1} parent=31 // pred_check_branch
          %384 = sbr.rel (%p382) target = $region48
        $region47: #{tpu_custom_call.1} parent=31 // pred_region
          %p385 = scmp.lt.s32.totalorder %s30, 1
          %s386 = scalar_select %p385, %s30, 1
          %s387 = smul.addr %s386, 8
          %s388 = scalar_lea.vmem %s4, %s387
        $region48: #{tpu_custom_call.1} parent=31 // pred_fallthru
          _
        // Predicated region
        $region49: #{tpu_custom_call.1} parent=31 // pred_check
          %p389 = pneg %p181
        $region50: #{tpu_custom_call.1} parent=31 // pred_check_branch
          %391 = sbr.rel (%p389) target = $region52
        $region51: #{tpu_custom_call.1} parent=31 // pred_region
          %s392 = sand.u32 %s22, 1
          %s393 = scalar_lea.sflag [#allocation3], %s392
          %s394 = sand.u32 %s171, 1
          %s395 = smul.addr %s394, 128
          %s396 = scalar_lea.vmem [#allocation8], %s395
          %398 = vsyncadd %s393, 0
          %s399 = smul.addr %s29, 16
          %s400 = smul.addr %s399, 8
          %s401 = scalar_lea.hbm %s5, %s400
          %s403 = sshll.u32 %s401, 4
          %s404 = int_to_ptr.hbm [resolvable:$true] %s403
          %s405 = sshll.u32 %s396, 4
          %s406 = int_to_ptr.vmem [resolvable:$true] %s405
          %408 = dma.hbm_to_vmem [thread:$0]  %s404, 2048, %s406, %s393
        $region52: #{tpu_custom_call.1} parent=31 // pred_fallthru
          _
      $region32: #{tpu_custom_call.1} parent=5 // pred_fallthru
        _
      %p409 = scmp.le.s32.totalorder 1, %s22
      %p410 = scmp.lt.s32.totalorder %s22, 5
      %p411 = pnand %p409, %p410
      %p412 = pneg %p411
      // Predicated region
      $region53: #{tpu_custom_call.1} parent=5 // pred_check
        _
      $region54: #{tpu_custom_call.1} parent=5 // pred_check_branch
        %414 = sbr.rel (%p411) target = $region56
      $region55: #{tpu_custom_call.1} parent=5 // pred_region
        %s415 = ssub.s32 %s22, 1
        %s416 = sand.u32 %s27, 1
        %s417 = scalar_lea.sflag [#allocation3], %s416
        %s418 = sand.u32 %s49, 1
        %s419 = smul.addr %s418, 128
        %s420 = scalar_lea.vmem [#allocation2], %s419
        // Predicated region
        $region57: #{tpu_custom_call.1} parent=55 // pred_check
          %p421 = pneg %p62
        $region58: #{tpu_custom_call.1} parent=55 // pred_check_branch
          %423 = sbr.rel (%p421) target = $region60
        $region59: #{tpu_custom_call.1} parent=55 // pred_region
          %425 = dma.done %s417, 2048
        $region60: #{tpu_custom_call.1} parent=55 // pred_fallthru
          _
        // Predicated region
        $region61: #{tpu_custom_call.1} parent=55 // pred_check
          %p426 = pneg %p83
        $region62: #{tpu_custom_call.1} parent=55 // pred_check_branch
          %428 = sbr.rel (%p426) target = $region64
        $region63: #{tpu_custom_call.1} parent=55 // pred_region
          %430 = dma.done [#allocation6], 2048
        $region64: #{tpu_custom_call.1} parent=55 // pred_fallthru
          _
        %s431 = sand.u32 %s27, 1
        %s432 = scalar_lea.sflag [#allocation3], %s431
        %s433 = sand.u32 %s122, 1
        %s434 = smul.addr %s433, 64
        %s435 = scalar_lea.vmem [#allocation7], %s434
        // Predicated region
        $region65: #{tpu_custom_call.1} parent=55 // pred_check
          %p436 = pneg %p135
        $region66: #{tpu_custom_call.1} parent=55 // pred_check_branch
          %438 = sbr.rel (%p436) target = $region68
        $region67: #{tpu_custom_call.1} parent=55 // pred_region
          %440 = dma.done %s432, 1024
        $region68: #{tpu_custom_call.1} parent=55 // pred_fallthru
          _
        %s441 = sand.u32 %s27, 1
        %s442 = scalar_lea.sflag [#allocation3], %s441
        %s443 = sand.u32 %s174, 1
        %s444 = smul.addr %s443, 128
        %s445 = scalar_lea.vmem [#allocation8], %s444
        // Predicated region
        $region69: #{tpu_custom_call.1} parent=55 // pred_check
          %p446 = pneg %p187
        $region70: #{tpu_custom_call.1} parent=55 // pred_check_branch
          %448 = sbr.rel (%p446) target = $region72
        $region71: #{tpu_custom_call.1} parent=55 // pred_region
          %450 = dma.done %s442, 2048
        $region72: #{tpu_custom_call.1} parent=55 // pred_fallthru
          _
        // Predicated region
        $region73: #{tpu_custom_call.1} parent=55 // pred_check
          %p451 = pneg %p229
        $region74: #{tpu_custom_call.1} parent=55 // pred_check_branch
          %453 = sbr.rel (%p451) target = $region76
        $region75: #{tpu_custom_call.1} parent=55 // pred_region
          %455 = dma.done [#allocation6], 2048
        $region76: #{tpu_custom_call.1} parent=55 // pred_fallthru
          _
        %s456 = sand.u32 %s27, 1
        %s457 = scalar_lea.sflag [#allocation3], %s456
        %s458 = sand.u32 %s49, 1
        %s459 = smul.addr %s458, 128
        %s460 = scalar_lea.vmem [#allocation2], %s459
        %p461 = pneg %p62
        %p462 = pneg %p59
        %p463 = pneg %p83
        %p464 = pneg %p80
        %p465 = scmp.lt.s32.totalorder %s32, 1
        %s466 = scalar_select %p465, %s32, 1
        %s467 = smul.addr %s466, 8
        %s468 = scalar_lea.vmem %s2, %s467
        %p469 = pneg %p109
        %p470 = pneg %p106
        %s471 = sand.u32 %s27, 1
        %s472 = scalar_lea.sflag [#allocation3], %s471
        %s473 = sand.u32 %s122, 1
        %s474 = smul.addr %s473, 64
        %s475 = scalar_lea.vmem [#allocation7], %s474
        %p476 = pneg %p135
        %p477 = pneg %p132
        %p478 = scmp.lt.s32.totalorder %s32, 1
        %s479 = scalar_select %p478, %s32, 1
        %s480 = smul.addr %s479, 8
        %s481 = scalar_lea.vmem %s4, %s480
        %p482 = pneg %p161
        %p483 = pneg %p158
        %s484 = sand.u32 %s27, 1
        %s485 = scalar_lea.sflag [#allocation3], %s484
        %s486 = sand.u32 %s174, 1
        %s487 = smul.addr %s486, 128
        %s488 = scalar_lea.vmem [#allocation8], %s487
        %p489 = pneg %p187
        %p490 = pneg %p184
        %p491 = pneg %p208
        %p492 = pneg %p205
        %p493 = pneg %p229
        %p494 = pneg %p226
        %p495 = pneg %p250
        %p496 = pneg %p247
        %p497 = pneg %p278
        %p498 = pneg %p275
        %s499 = sand.u32 %s265, 1
        %s500 = scalar_lea.sflag [#allocation4], %s499
        %s501 = sand.u32 %s265, 1
        %s502 = smul.addr %s501, 128
        %s503 = scalar_lea.vmem [#allocation10], %s502
        %s504 = smul.u32 16, %s32
        %p505 = scmp.lt.s32.totalorder %s32, 1
        %s506 = scalar_select %p505, %s32, 1
        %s507 = smul.addr %s506, 8
        %s508 = scalar_lea.vmem %s2, %s507
        %p509 = scmp.lt.s32.totalorder %s32, 1
        %s510 = scalar_select %p509, %s32, 1
        %s511 = smul.addr %s510, 8
        %s512 = scalar_lea.vmem %s4, %s511
        %s513 = smul.u32 16, %s32
        %v514 = vld [vmem:[%s420] sm:$0xff]
        %v515 = vld [vmem:[%s420 + $0x8] sm:$0xff]
        %v516 = vld [vmem:[%s420 + $0x10] sm:$0xff]
        %v517 = vld [vmem:[%s420 + $0x18] sm:$0xff]
        %v518 = vld [vmem:[%s420 + $0x20] sm:$0xff]
        %v519 = vld [vmem:[%s420 + $0x28] sm:$0xff]
        %v520 = vld [vmem:[%s420 + $0x30] sm:$0xff]
        %v521 = vld [vmem:[%s420 + $0x38] sm:$0xff]
        %v522 = vld [vmem:[%s420 + $0x40] sm:$0xff]
        %v523 = vld [vmem:[%s420 + $0x48] sm:$0xff]
        %v524 = vld [vmem:[%s420 + $0x50] sm:$0xff]
        %v525 = vld [vmem:[%s420 + $0x58] sm:$0xff]
        %v526 = vld [vmem:[%s420 + $0x60] sm:$0xff]
        %v527 = vld [vmem:[%s420 + $0x68] sm:$0xff]
        %v528 = vld [vmem:[%s420 + $0x70] sm:$0xff]
        %v529 = vld [vmem:[%s420 + $0x78] sm:$0xff]
        %v530 = vld [vmem:[#allocation5] sm:$0xff]
        %v531 = vld [vmem:[#allocation5 + $0x8] sm:$0xff]
        %v532 = vld [vmem:[#allocation5 + $0x10] sm:$0xff]
        %v533 = vld [vmem:[#allocation5 + $0x18] sm:$0xff]
        %v534 = vld [vmem:[#allocation5 + $0x20] sm:$0xff]
        %v535 = vld [vmem:[#allocation5 + $0x28] sm:$0xff]
        %v536 = vld [vmem:[#allocation5 + $0x30] sm:$0xff]
        %v537 = vld [vmem:[#allocation5 + $0x38] sm:$0xff]
        %v538 = vld [vmem:[#allocation5 + $0x40] sm:$0xff]
        %v539 = vld [vmem:[#allocation5 + $0x48] sm:$0xff]
        %v540 = vld [vmem:[#allocation5 + $0x50] sm:$0xff]
        %v541 = vld [vmem:[#allocation5 + $0x58] sm:$0xff]
        %v542 = vld [vmem:[#allocation5 + $0x60] sm:$0xff]
        %v543 = vld [vmem:[#allocation5 + $0x68] sm:$0xff]
        %v544 = vld [vmem:[#allocation5 + $0x70] sm:$0xff]
        %v545 = vld [vmem:[#allocation5 + $0x78] sm:$0xff]
        %v546 = vld [vmem:[%s508] sm:$0xff]
        %v547 = vld [vmem:[%s435] sm:$0xff]
        %v548 = vld [vmem:[%s435 + $0x8] sm:$0xff]
        %v549 = vld [vmem:[%s435 + $0x10] sm:$0xff]
        %v550 = vld [vmem:[%s435 + $0x18] sm:$0xff]
        %v551 = vld [vmem:[%s435 + $0x20] sm:$0xff]
        %v552 = vld [vmem:[%s435 + $0x28] sm:$0xff]
        %v553 = vld [vmem:[%s435 + $0x30] sm:$0xff]
        %v554 = vld [vmem:[%s435 + $0x38] sm:$0xff]
        %v555 = vld [vmem:[%s512] sm:$0xff]
        %v556 = vld [vmem:[%s445] sm:$0xff]
        %v557 = vld [vmem:[%s445 + $0x8] sm:$0xff]
        %v558 = vld [vmem:[%s445 + $0x10] sm:$0xff]
        %v559 = vld [vmem:[%s445 + $0x18] sm:$0xff]
        %v560 = vld [vmem:[%s445 + $0x20] sm:$0xff]
        %v561 = vld [vmem:[%s445 + $0x28] sm:$0xff]
        %v562 = vld [vmem:[%s445 + $0x30] sm:$0xff]
        %v563 = vld [vmem:[%s445 + $0x38] sm:$0xff]
        %v564 = vld [vmem:[%s445 + $0x40] sm:$0xff]
        %v565 = vld [vmem:[%s445 + $0x48] sm:$0xff]
        %v566 = vld [vmem:[%s445 + $0x50] sm:$0xff]
        %v567 = vld [vmem:[%s445 + $0x58] sm:$0xff]
        %v568 = vld [vmem:[%s445 + $0x60] sm:$0xff]
        %v569 = vld [vmem:[%s445 + $0x68] sm:$0xff]
        %v570 = vld [vmem:[%s445 + $0x70] sm:$0xff]
        %v571 = vld [vmem:[%s445 + $0x78] sm:$0xff]
        %vm572 = vcmask 64512
        %v574 = vsel %vm572, %v555, 0
        %576 = vmatpush.msra.mxu0 0.0
        %577 = vmatpush.msra.mxu0 0.0
        %578 = vmatpush.msra.mxu0 0.0
        %579 = vmatpush.msra.mxu0 0.0
        %580 = vmatpush.msra.mxu0 0.0
        %581 = vmatpush.msra.mxu0 0.0
        %582 = vmatpush.msra.mxu0 0.0
        %583 = vmatpush.msra.mxu0 0.0
        %584 = vmatpush.msra.mxu0 0.0
        %585 = vmatpush.msra.mxu0 0.0
        %586 = vmatpush.msra.mxu0 0.0
        %587 = vmatpush.msra.mxu0 0.0
        %588 = vmatpush.msra.mxu0 0.0
        %589 = vmatpush.msra.mxu0 0.0
        %590 = vmatpush.msra.mxu0 0.0
        %591 = vmatpush.msra.mxu0 %v556
        %592 = vmatmul.f32.gmra.mxu0 %v574
        %v593 = vpop.f32.mrf.mxu0
        %v594 = vadd.f32 0.0, %v593
        %595 = vdwg.mxu0
        %596 = vmatpush.msra.mxu0 0.0
        %597 = vmatpush.msra.mxu0 0.0
        %598 = vmatpush.msra.mxu0 0.0
        %599 = vmatpush.msra.mxu0 0.0
        %600 = vmatpush.msra.mxu0 0.0
        %601 = vmatpush.msra.mxu0 0.0
        %602 = vmatpush.msra.mxu0 0.0
        %603 = vmatpush.msra.mxu0 0.0
        %604 = vmatpush.msra.mxu0 0.0
        %605 = vmatpush.msra.mxu0 0.0
        %606 = vmatpush.msra.mxu0 0.0
        %607 = vmatpush.msra.mxu0 0.0
        %608 = vmatpush.msra.mxu0 0.0
        %609 = vmatpush.msra.mxu0 0.0
        %610 = vmatpush.msra.mxu0 0.0
        %611 = vmatpush.msra.mxu0 %v557
        %612 = vmatmul.f32.gmra.mxu0 %v574
        %v613 = vpop.f32.mrf.mxu0
        %v614 = vadd.f32 0.0, %v613
        %615 = vdwg.mxu0
        %616 = vmatpush.msra.mxu0 0.0
        %617 = vmatpush.msra.mxu0 0.0
        %618 = vmatpush.msra.mxu0 0.0
        %619 = vmatpush.msra.mxu0 0.0
        %620 = vmatpush.msra.mxu0 0.0
        %621 = vmatpush.msra.mxu0 0.0
        %622 = vmatpush.msra.mxu0 0.0
        %623 = vmatpush.msra.mxu0 0.0
        %624 = vmatpush.msra.mxu0 0.0
        %625 = vmatpush.msra.mxu0 0.0
        %626 = vmatpush.msra.mxu0 0.0
        %627 = vmatpush.msra.mxu0 0.0
        %628 = vmatpush.msra.mxu0 0.0
        %629 = vmatpush.msra.mxu0 0.0
        %630 = vmatpush.msra.mxu0 0.0
        %631 = vmatpush.msra.mxu0 %v558
        %632 = vmatmul.f32.gmra.mxu0 %v574
        %v633 = vpop.f32.mrf.mxu0
        %v634 = vadd.f32 0.0, %v633
        %635 = vdwg.mxu0
        %636 = vmatpush.msra.mxu0 0.0
        %637 = vmatpush.msra.mxu0 0.0
        %638 = vmatpush.msra.mxu0 0.0
        %639 = vmatpush.msra.mxu0 0.0
        %640 = vmatpush.msra.mxu0 0.0
        %641 = vmatpush.msra.mxu0 0.0
        %642 = vmatpush.msra.mxu0 0.0
        %643 = vmatpush.msra.mxu0 0.0
        %644 = vmatpush.msra.mxu0 0.0
        %645 = vmatpush.msra.mxu0 0.0
        %646 = vmatpush.msra.mxu0 0.0
        %647 = vmatpush.msra.mxu0 0.0
        %648 = vmatpush.msra.mxu0 0.0
        %649 = vmatpush.msra.mxu0 0.0
        %650 = vmatpush.msra.mxu0 0.0
        %651 = vmatpush.msra.mxu0 %v559
        %652 = vmatmul.f32.gmra.mxu0 %v574
        %v653 = vpop.f32.mrf.mxu0
        %v654 = vadd.f32 0.0, %v653
        %655 = vdwg.mxu0
        %656 = vmatpush.msra.mxu0 0.0
        %657 = vmatpush.msra.mxu0 0.0
        %658 = vmatpush.msra.mxu0 0.0
        %659 = vmatpush.msra.mxu0 0.0
        %660 = vmatpush.msra.mxu0 0.0
        %661 = vmatpush.msra.mxu0 0.0
        %662 = vmatpush.msra.mxu0 0.0
        %663 = vmatpush.msra.mxu0 0.0
        %664 = vmatpush.msra.mxu0 0.0
        %665 = vmatpush.msra.mxu0 0.0
        %666 = vmatpush.msra.mxu0 0.0
        %667 = vmatpush.msra.mxu0 0.0
        %668 = vmatpush.msra.mxu0 0.0
        %669 = vmatpush.msra.mxu0 0.0
        %670 = vmatpush.msra.mxu0 0.0
        %671 = vmatpush.msra.mxu0 %v560
        %672 = vmatmul.f32.gmra.mxu0 %v574
        %v673 = vpop.f32.mrf.mxu0
        %v674 = vadd.f32 0.0, %v673
        %675 = vdwg.mxu0
        %676 = vmatpush.msra.mxu0 0.0
        %677 = vmatpush.msra.mxu0 0.0
        %678 = vmatpush.msra.mxu0 0.0
        %679 = vmatpush.msra.mxu0 0.0
        %680 = vmatpush.msra.mxu0 0.0
        %681 = vmatpush.msra.mxu0 0.0
        %682 = vmatpush.msra.mxu0 0.0
        %683 = vmatpush.msra.mxu0 0.0
        %684 = vmatpush.msra.mxu0 0.0
        %685 = vmatpush.msra.mxu0 0.0
        %686 = vmatpush.msra.mxu0 0.0
        %687 = vmatpush.msra.mxu0 0.0
        %688 = vmatpush.msra.mxu0 0.0
        %689 = vmatpush.msra.mxu0 0.0
        %690 = vmatpush.msra.mxu0 0.0
        %691 = vmatpush.msra.mxu0 %v561
        %692 = vmatmul.f32.gmra.mxu0 %v574
        %v693 = vpop.f32.mrf.mxu0
        %v694 = vadd.f32 0.0, %v693
        %695 = vdwg.mxu0
        %696 = vmatpush.msra.mxu0 0.0
        %697 = vmatpush.msra.mxu0 0.0
        %698 = vmatpush.msra.mxu0 0.0
        %699 = vmatpush.msra.mxu0 0.0
        %700 = vmatpush.msra.mxu0 0.0
        %701 = vmatpush.msra.mxu0 0.0
        %702 = vmatpush.msra.mxu0 0.0
        %703 = vmatpush.msra.mxu0 0.0
        %704 = vmatpush.msra.mxu0 0.0
        %705 = vmatpush.msra.mxu0 0.0
        %706 = vmatpush.msra.mxu0 0.0
        %707 = vmatpush.msra.mxu0 0.0
        %708 = vmatpush.msra.mxu0 0.0
        %709 = vmatpush.msra.mxu0 0.0
        %710 = vmatpush.msra.mxu0 0.0
        %711 = vmatpush.msra.mxu0 %v562
        %712 = vmatmul.f32.gmra.mxu0 %v574
        %v713 = vpop.f32.mrf.mxu0
        %v714 = vadd.f32 0.0, %v713
        %715 = vdwg.mxu0
        %716 = vmatpush.msra.mxu0 0.0
        %717 = vmatpush.msra.mxu0 0.0
        %718 = vmatpush.msra.mxu0 0.0
        %719 = vmatpush.msra.mxu0 0.0
        %720 = vmatpush.msra.mxu0 0.0
        %721 = vmatpush.msra.mxu0 0.0
        %722 = vmatpush.msra.mxu0 0.0
        %723 = vmatpush.msra.mxu0 0.0
        %724 = vmatpush.msra.mxu0 0.0
        %725 = vmatpush.msra.mxu0 0.0
        %726 = vmatpush.msra.mxu0 0.0
        %727 = vmatpush.msra.mxu0 0.0
        %728 = vmatpush.msra.mxu0 0.0
        %729 = vmatpush.msra.mxu0 0.0
        %730 = vmatpush.msra.mxu0 0.0
        %731 = vmatpush.msra.mxu0 %v563
        %732 = vmatmul.f32.gmra.mxu0 %v574
        %v733 = vpop.f32.mrf.mxu0
        %v734 = vadd.f32 0.0, %v733
        %735 = vdwg.mxu0
        %736 = vmatpush.msra.mxu0 0.0
        %737 = vmatpush.msra.mxu0 0.0
        %738 = vmatpush.msra.mxu0 0.0
        %739 = vmatpush.msra.mxu0 0.0
        %740 = vmatpush.msra.mxu0 0.0
        %741 = vmatpush.msra.mxu0 0.0
        %742 = vmatpush.msra.mxu0 0.0
        %743 = vmatpush.msra.mxu0 0.0
        %744 = vmatpush.msra.mxu0 0.0
        %745 = vmatpush.msra.mxu0 0.0
        %746 = vmatpush.msra.mxu0 0.0
        %747 = vmatpush.msra.mxu0 0.0
        %748 = vmatpush.msra.mxu0 0.0
        %749 = vmatpush.msra.mxu0 0.0
        %750 = vmatpush.msra.mxu0 0.0
        %751 = vmatpush.msra.mxu0 %v564
        %752 = vmatmul.f32.gmra.mxu0 %v574
        %v753 = vpop.f32.mrf.mxu0
        %v754 = vadd.f32 0.0, %v753
        %755 = vdwg.mxu0
        %756 = vmatpush.msra.mxu0 0.0
        %757 = vmatpush.msra.mxu0 0.0
        %758 = vmatpush.msra.mxu0 0.0
        %759 = vmatpush.msra.mxu0 0.0
        %760 = vmatpush.msra.mxu0 0.0
        %761 = vmatpush.msra.mxu0 0.0
        %762 = vmatpush.msra.mxu0 0.0
        %763 = vmatpush.msra.mxu0 0.0
        %764 = vmatpush.msra.mxu0 0.0
        %765 = vmatpush.msra.mxu0 0.0
        %766 = vmatpush.msra.mxu0 0.0
        %767 = vmatpush.msra.mxu0 0.0
        %768 = vmatpush.msra.mxu0 0.0
        %769 = vmatpush.msra.mxu0 0.0
        %770 = vmatpush.msra.mxu0 0.0
        %771 = vmatpush.msra.mxu0 %v565
        %772 = vmatmul.f32.gmra.mxu0 %v574
        %v773 = vpop.f32.mrf.mxu0
        %v774 = vadd.f32 0.0, %v773
        %775 = vdwg.mxu0
        %776 = vmatpush.msra.mxu0 0.0
        %777 = vmatpush.msra.mxu0 0.0
        %778 = vmatpush.msra.mxu0 0.0
        %779 = vmatpush.msra.mxu0 0.0
        %780 = vmatpush.msra.mxu0 0.0
        %781 = vmatpush.msra.mxu0 0.0
        %782 = vmatpush.msra.mxu0 0.0
        %783 = vmatpush.msra.mxu0 0.0
        %784 = vmatpush.msra.mxu0 0.0
        %785 = vmatpush.msra.mxu0 0.0
        %786 = vmatpush.msra.mxu0 0.0
        %787 = vmatpush.msra.mxu0 0.0
        %788 = vmatpush.msra.mxu0 0.0
        %789 = vmatpush.msra.mxu0 0.0
        %790 = vmatpush.msra.mxu0 0.0
        %791 = vmatpush.msra.mxu0 %v566
        %792 = vmatmul.f32.gmra.mxu0 %v574
        %v793 = vpop.f32.mrf.mxu0
        %v794 = vadd.f32 0.0, %v793
        %795 = vdwg.mxu0
        %796 = vmatpush.msra.mxu0 0.0
        %797 = vmatpush.msra.mxu0 0.0
        %798 = vmatpush.msra.mxu0 0.0
        %799 = vmatpush.msra.mxu0 0.0
        %800 = vmatpush.msra.mxu0 0.0
        %801 = vmatpush.msra.mxu0 0.0
        %802 = vmatpush.msra.mxu0 0.0
        %803 = vmatpush.msra.mxu0 0.0
        %804 = vmatpush.msra.mxu0 0.0
        %805 = vmatpush.msra.mxu0 0.0
        %806 = vmatpush.msra.mxu0 0.0
        %807 = vmatpush.msra.mxu0 0.0
        %808 = vmatpush.msra.mxu0 0.0
        %809 = vmatpush.msra.mxu0 0.0
        %810 = vmatpush.msra.mxu0 0.0
        %811 = vmatpush.msra.mxu0 %v567
        %812 = vmatmul.f32.gmra.mxu0 %v574
        %v813 = vpop.f32.mrf.mxu0
        %v814 = vadd.f32 0.0, %v813
        %815 = vdwg.mxu0
        %816 = vmatpush.msra.mxu0 0.0
        %817 = vmatpush.msra.mxu0 0.0
        %818 = vmatpush.msra.mxu0 0.0
        %819 = vmatpush.msra.mxu0 0.0
        %820 = vmatpush.msra.mxu0 0.0
        %821 = vmatpush.msra.mxu0 0.0
        %822 = vmatpush.msra.mxu0 0.0
        %823 = vmatpush.msra.mxu0 0.0
        %824 = vmatpush.msra.mxu0 0.0
        %825 = vmatpush.msra.mxu0 0.0
        %826 = vmatpush.msra.mxu0 0.0
        %827 = vmatpush.msra.mxu0 0.0
        %828 = vmatpush.msra.mxu0 0.0
        %829 = vmatpush.msra.mxu0 0.0
        %830 = vmatpush.msra.mxu0 0.0
        %831 = vmatpush.msra.mxu0 %v568
        %832 = vmatmul.f32.gmra.mxu0 %v574
        %v833 = vpop.f32.mrf.mxu0
        %v834 = vadd.f32 0.0, %v833
        %835 = vdwg.mxu0
        %836 = vmatpush.msra.mxu0 0.0
        %837 = vmatpush.msra.mxu0 0.0
        %838 = vmatpush.msra.mxu0 0.0
        %839 = vmatpush.msra.mxu0 0.0
        %840 = vmatpush.msra.mxu0 0.0
        %841 = vmatpush.msra.mxu0 0.0
        %842 = vmatpush.msra.mxu0 0.0
        %843 = vmatpush.msra.mxu0 0.0
        %844 = vmatpush.msra.mxu0 0.0
        %845 = vmatpush.msra.mxu0 0.0
        %846 = vmatpush.msra.mxu0 0.0
        %847 = vmatpush.msra.mxu0 0.0
        %848 = vmatpush.msra.mxu0 0.0
        %849 = vmatpush.msra.mxu0 0.0
        %850 = vmatpush.msra.mxu0 0.0
        %851 = vmatpush.msra.mxu0 %v569
        %852 = vmatmul.f32.gmra.mxu0 %v574
        %v853 = vpop.f32.mrf.mxu0
        %v854 = vadd.f32 0.0, %v853
        %855 = vdwg.mxu0
        %856 = vmatpush.msra.mxu0 0.0
        %857 = vmatpush.msra.mxu0 0.0
        %858 = vmatpush.msra.mxu0 0.0
        %859 = vmatpush.msra.mxu0 0.0
        %860 = vmatpush.msra.mxu0 0.0
        %861 = vmatpush.msra.mxu0 0.0
        %862 = vmatpush.msra.mxu0 0.0
        %863 = vmatpush.msra.mxu0 0.0
        %864 = vmatpush.msra.mxu0 0.0
        %865 = vmatpush.msra.mxu0 0.0
        %866 = vmatpush.msra.mxu0 0.0
        %867 = vmatpush.msra.mxu0 0.0
        %868 = vmatpush.msra.mxu0 0.0
        %869 = vmatpush.msra.mxu0 0.0
        %870 = vmatpush.msra.mxu0 0.0
        %871 = vmatpush.msra.mxu0 %v570
        %872 = vmatmul.f32.gmra.mxu0 %v574
        %v873 = vpop.f32.mrf.mxu0
        %v874 = vadd.f32 0.0, %v873
        %875 = vdwg.mxu0
        %876 = vmatpush.msra.mxu0 0.0
        %877 = vmatpush.msra.mxu0 0.0
        %878 = vmatpush.msra.mxu0 0.0
        %879 = vmatpush.msra.mxu0 0.0
        %880 = vmatpush.msra.mxu0 0.0
        %881 = vmatpush.msra.mxu0 0.0
        %882 = vmatpush.msra.mxu0 0.0
        %883 = vmatpush.msra.mxu0 0.0
        %884 = vmatpush.msra.mxu0 0.0
        %885 = vmatpush.msra.mxu0 0.0
        %886 = vmatpush.msra.mxu0 0.0
        %887 = vmatpush.msra.mxu0 0.0
        %888 = vmatpush.msra.mxu0 0.0
        %889 = vmatpush.msra.mxu0 0.0
        %890 = vmatpush.msra.mxu0 0.0
        %891 = vmatpush.msra.mxu0 %v571
        %892 = vmatmul.f32.gmra.mxu0 %v574
        %v893 = vpop.f32.mrf.mxu0
        %v894 = vadd.f32 0.0, %v893
        %895 = vdwg.mxu0
        %904 = vst [vmem:[#allocation1] ss:$2 sm:$0xff] %v547
        %s905 = scalar_lea.vmem [#allocation1], 16
        %906 = vst [vmem:[%s905] ss:$2 sm:$0xff] %v548
        %s907 = scalar_lea.vmem [#allocation1], 32
        %908 = vst [vmem:[%s907] ss:$2 sm:$0xff] %v549
        %s909 = scalar_lea.vmem [#allocation1], 48
        %910 = vst [vmem:[%s909] ss:$2 sm:$0xff] %v550
        %v911 = vld.sshfl [vmem:[#allocation1] sm:$0xff pattern:$0x75316420]
        %v912 = vld.sshfl [vmem:[#allocation1 + $0x8] sm:$0xff pattern:$0x75316420]
        %v913 = vld.sshfl [vmem:[#allocation1 + $0x10] sm:$0xff pattern:$0x75316420]
        %v914 = vld.sshfl [vmem:[#allocation1 + $0x18] sm:$0xff pattern:$0x75316420]
        %v915 = vld.sshfl [vmem:[#allocation1 + $0x20] sm:$0xff pattern:$0x75316420]
        %v916 = vld.sshfl [vmem:[#allocation1 + $0x28] sm:$0xff pattern:$0x75316420]
        %v917 = vld.sshfl [vmem:[#allocation1 + $0x30] sm:$0xff pattern:$0x75316420]
        %v918 = vld.sshfl [vmem:[#allocation1 + $0x38] sm:$0xff pattern:$0x75316420]
        %919 = vst [vmem:[#allocation1] ss:$2 sm:$0xff] %v551
        %920 = vst [vmem:[%s905] ss:$2 sm:$0xff] %v552
        %921 = vst [vmem:[%s907] ss:$2 sm:$0xff] %v553
        %922 = vst [vmem:[%s909] ss:$2 sm:$0xff] %v554
        %v923 = vld.sshfl [vmem:[#allocation1] sm:$0xff pattern:$0x75316420]
        %v924 = vld.sshfl [vmem:[#allocation1 + $0x8] sm:$0xff pattern:$0x75316420]
        %v925 = vld.sshfl [vmem:[#allocation1 + $0x10] sm:$0xff pattern:$0x75316420]
        %v926 = vld.sshfl [vmem:[#allocation1 + $0x18] sm:$0xff pattern:$0x75316420]
        %v927 = vld.sshfl [vmem:[#allocation1 + $0x20] sm:$0xff pattern:$0x75316420]
        %v928 = vld.sshfl [vmem:[#allocation1 + $0x28] sm:$0xff pattern:$0x75316420]
        %v929 = vld.sshfl [vmem:[#allocation1 + $0x30] sm:$0xff pattern:$0x75316420]
        %v930 = vld.sshfl [vmem:[#allocation1 + $0x38] sm:$0xff pattern:$0x75316420]
        %vm931 = vcmask 31744
        %v933 = vsel %vm931, %v546, 0
        %vm935 = vcmask 1043456
        %v936 = vsel %vm935, %v911, 0
        %v938 = vsel %vm935, %v912, 0
        %v940 = vsel %vm935, %v913, 0
        %v942 = vsel %vm935, %v914, 0
        %v944 = vsel %vm935, %v915, 0
        %v946 = vsel %vm935, %v916, 0
        %v948 = vsel %vm935, %v917, 0
        %v950 = vsel %vm935, %v918, 0
        %v952 = vsel %vm935, %v923, 0
        %v954 = vsel %vm935, %v924, 0
        %v956 = vsel %vm935, %v925, 0
        %v958 = vsel %vm935, %v926, 0
        %v960 = vsel %vm935, %v927, 0
        %v962 = vsel %vm935, %v928, 0
        %v964 = vsel %vm935, %v929, 0
        %v966 = vsel %vm935, %v930, 0
        %968 = vmatpush.msra.mxu0 0.0
        %969 = vmatpush.msra.mxu0 0.0
        %970 = vmatpush.msra.mxu0 0.0
        %971 = vmatpush.msra.mxu0 0.0
        %972 = vmatpush.msra.mxu0 0.0
        %973 = vmatpush.msra.mxu0 0.0
        %974 = vmatpush.msra.mxu0 0.0
        %975 = vmatpush.msra.mxu0 0.0
        %976 = vmatpush.msra.mxu0 0.0
        %977 = vmatpush.msra.mxu0 0.0
        %978 = vmatpush.msra.mxu0 0.0
        %979 = vmatpush.msra.mxu0 0.0
        %980 = vmatpush.msra.mxu0 0.0
        %981 = vmatpush.msra.mxu0 0.0
        %982 = vmatpush.msra.mxu0 0.0
        %983 = vmatpush.msra.mxu0 %v936
        %984 = vmatmul.f32.gmra.mxu0 %v933
        %v985 = vpop.f32.mrf.mxu0
        %v986 = vadd.f32 %v594, %v985
        %987 = vdwg.mxu0
        %988 = vmatpush.msra.mxu0 0.0
        %989 = vmatpush.msra.mxu0 0.0
        %990 = vmatpush.msra.mxu0 0.0
        %991 = vmatpush.msra.mxu0 0.0
        %992 = vmatpush.msra.mxu0 0.0
        %993 = vmatpush.msra.mxu0 0.0
        %994 = vmatpush.msra.mxu0 0.0
        %995 = vmatpush.msra.mxu0 0.0
        %996 = vmatpush.msra.mxu0 0.0
        %997 = vmatpush.msra.mxu0 0.0
        %998 = vmatpush.msra.mxu0 0.0
        %999 = vmatpush.msra.mxu0 0.0
        %1000 = vmatpush.msra.mxu0 0.0
        %1001 = vmatpush.msra.mxu0 0.0
        %1002 = vmatpush.msra.mxu0 0.0
        %1003 = vmatpush.msra.mxu0 %v938
        %1004 = vmatmul.f32.gmra.mxu0 %v933
        %v1005 = vpop.f32.mrf.mxu0
        %v1006 = vadd.f32 %v614, %v1005
        %1007 = vdwg.mxu0
        %1008 = vmatpush.msra.mxu0 0.0
        %1009 = vmatpush.msra.mxu0 0.0
        %1010 = vmatpush.msra.mxu0 0.0
        %1011 = vmatpush.msra.mxu0 0.0
        %1012 = vmatpush.msra.mxu0 0.0
        %1013 = vmatpush.msra.mxu0 0.0
        %1014 = vmatpush.msra.mxu0 0.0
        %1015 = vmatpush.msra.mxu0 0.0
        %1016 = vmatpush.msra.mxu0 0.0
        %1017 = vmatpush.msra.mxu0 0.0
        %1018 = vmatpush.msra.mxu0 0.0
        %1019 = vmatpush.msra.mxu0 0.0
        %1020 = vmatpush.msra.mxu0 0.0
        %1021 = vmatpush.msra.mxu0 0.0
        %1022 = vmatpush.msra.mxu0 0.0
        %1023 = vmatpush.msra.mxu0 %v940
        %1024 = vmatmul.f32.gmra.mxu0 %v933
        %v1025 = vpop.f32.mrf.mxu0
        %v1026 = vadd.f32 %v634, %v1025
        %1027 = vdwg.mxu0
        %1028 = vmatpush.msra.mxu0 0.0
        %1029 = vmatpush.msra.mxu0 0.0
        %1030 = vmatpush.msra.mxu0 0.0
        %1031 = vmatpush.msra.mxu0 0.0
        %1032 = vmatpush.msra.mxu0 0.0
        %1033 = vmatpush.msra.mxu0 0.0
        %1034 = vmatpush.msra.mxu0 0.0
        %1035 = vmatpush.msra.mxu0 0.0
        %1036 = vmatpush.msra.mxu0 0.0
        %1037 = vmatpush.msra.mxu0 0.0
        %1038 = vmatpush.msra.mxu0 0.0
        %1039 = vmatpush.msra.mxu0 0.0
        %1040 = vmatpush.msra.mxu0 0.0
        %1041 = vmatpush.msra.mxu0 0.0
        %1042 = vmatpush.msra.mxu0 0.0
        %1043 = vmatpush.msra.mxu0 %v942
        %1044 = vmatmul.f32.gmra.mxu0 %v933
        %v1045 = vpop.f32.mrf.mxu0
        %v1046 = vadd.f32 %v654, %v1045
        %1047 = vdwg.mxu0
        %1048 = vmatpush.msra.mxu0 0.0
        %1049 = vmatpush.msra.mxu0 0.0
        %1050 = vmatpush.msra.mxu0 0.0
        %1051 = vmatpush.msra.mxu0 0.0
        %1052 = vmatpush.msra.mxu0 0.0
        %1053 = vmatpush.msra.mxu0 0.0
        %1054 = vmatpush.msra.mxu0 0.0
        %1055 = vmatpush.msra.mxu0 0.0
        %1056 = vmatpush.msra.mxu0 0.0
        %1057 = vmatpush.msra.mxu0 0.0
        %1058 = vmatpush.msra.mxu0 0.0
        %1059 = vmatpush.msra.mxu0 0.0
        %1060 = vmatpush.msra.mxu0 0.0
        %1061 = vmatpush.msra.mxu0 0.0
        %1062 = vmatpush.msra.mxu0 0.0
        %1063 = vmatpush.msra.mxu0 %v944
        %1064 = vmatmul.f32.gmra.mxu0 %v933
        %v1065 = vpop.f32.mrf.mxu0
        %v1066 = vadd.f32 %v674, %v1065
        %1067 = vdwg.mxu0
        %1068 = vmatpush.msra.mxu0 0.0
        %1069 = vmatpush.msra.mxu0 0.0
        %1070 = vmatpush.msra.mxu0 0.0
        %1071 = vmatpush.msra.mxu0 0.0
        %1072 = vmatpush.msra.mxu0 0.0
        %1073 = vmatpush.msra.mxu0 0.0
        %1074 = vmatpush.msra.mxu0 0.0
        %1075 = vmatpush.msra.mxu0 0.0
        %1076 = vmatpush.msra.mxu0 0.0
        %1077 = vmatpush.msra.mxu0 0.0
        %1078 = vmatpush.msra.mxu0 0.0
        %1079 = vmatpush.msra.mxu0 0.0
        %1080 = vmatpush.msra.mxu0 0.0
        %1081 = vmatpush.msra.mxu0 0.0
        %1082 = vmatpush.msra.mxu0 0.0
        %1083 = vmatpush.msra.mxu0 %v946
        %1084 = vmatmul.f32.gmra.mxu0 %v933
        %v1085 = vpop.f32.mrf.mxu0
        %v1086 = vadd.f32 %v694, %v1085
        %1087 = vdwg.mxu0
        %1088 = vmatpush.msra.mxu0 0.0
        %1089 = vmatpush.msra.mxu0 0.0
        %1090 = vmatpush.msra.mxu0 0.0
        %1091 = vmatpush.msra.mxu0 0.0
        %1092 = vmatpush.msra.mxu0 0.0
        %1093 = vmatpush.msra.mxu0 0.0
        %1094 = vmatpush.msra.mxu0 0.0
        %1095 = vmatpush.msra.mxu0 0.0
        %1096 = vmatpush.msra.mxu0 0.0
        %1097 = vmatpush.msra.mxu0 0.0
        %1098 = vmatpush.msra.mxu0 0.0
        %1099 = vmatpush.msra.mxu0 0.0
        %1100 = vmatpush.msra.mxu0 0.0
        %1101 = vmatpush.msra.mxu0 0.0
        %1102 = vmatpush.msra.mxu0 0.0
        %1103 = vmatpush.msra.mxu0 %v948
        %1104 = vmatmul.f32.gmra.mxu0 %v933
        %v1105 = vpop.f32.mrf.mxu0
        %v1106 = vadd.f32 %v714, %v1105
        %1107 = vdwg.mxu0
        %1108 = vmatpush.msra.mxu0 0.0
        %1109 = vmatpush.msra.mxu0 0.0
        %1110 = vmatpush.msra.mxu0 0.0
        %1111 = vmatpush.msra.mxu0 0.0
        %1112 = vmatpush.msra.mxu0 0.0
        %1113 = vmatpush.msra.mxu0 0.0
        %1114 = vmatpush.msra.mxu0 0.0
        %1115 = vmatpush.msra.mxu0 0.0
        %1116 = vmatpush.msra.mxu0 0.0
        %1117 = vmatpush.msra.mxu0 0.0
        %1118 = vmatpush.msra.mxu0 0.0
        %1119 = vmatpush.msra.mxu0 0.0
        %1120 = vmatpush.msra.mxu0 0.0
        %1121 = vmatpush.msra.mxu0 0.0
        %1122 = vmatpush.msra.mxu0 0.0
        %1123 = vmatpush.msra.mxu0 %v950
        %1124 = vmatmul.f32.gmra.mxu0 %v933
        %v1125 = vpop.f32.mrf.mxu0
        %v1126 = vadd.f32 %v734, %v1125
        %1127 = vdwg.mxu0
        %1128 = vmatpush.msra.mxu0 0.0
        %1129 = vmatpush.msra.mxu0 0.0
        %1130 = vmatpush.msra.mxu0 0.0
        %1131 = vmatpush.msra.mxu0 0.0
        %1132 = vmatpush.msra.mxu0 0.0
        %1133 = vmatpush.msra.mxu0 0.0
        %1134 = vmatpush.msra.mxu0 0.0
        %1135 = vmatpush.msra.mxu0 0.0
        %1136 = vmatpush.msra.mxu0 0.0
        %1137 = vmatpush.msra.mxu0 0.0
        %1138 = vmatpush.msra.mxu0 0.0
        %1139 = vmatpush.msra.mxu0 0.0
        %1140 = vmatpush.msra.mxu0 0.0
        %1141 = vmatpush.msra.mxu0 0.0
        %1142 = vmatpush.msra.mxu0 0.0
        %1143 = vmatpush.msra.mxu0 %v952
        %1144 = vmatmul.f32.gmra.mxu0 %v933
        %v1145 = vpop.f32.mrf.mxu0
        %v1146 = vadd.f32 %v754, %v1145
        %1147 = vdwg.mxu0
        %1148 = vmatpush.msra.mxu0 0.0
        %1149 = vmatpush.msra.mxu0 0.0
        %1150 = vmatpush.msra.mxu0 0.0
        %1151 = vmatpush.msra.mxu0 0.0
        %1152 = vmatpush.msra.mxu0 0.0
        %1153 = vmatpush.msra.mxu0 0.0
        %1154 = vmatpush.msra.mxu0 0.0
        %1155 = vmatpush.msra.mxu0 0.0
        %1156 = vmatpush.msra.mxu0 0.0
        %1157 = vmatpush.msra.mxu0 0.0
        %1158 = vmatpush.msra.mxu0 0.0
        %1159 = vmatpush.msra.mxu0 0.0
        %1160 = vmatpush.msra.mxu0 0.0
        %1161 = vmatpush.msra.mxu0 0.0
        %1162 = vmatpush.msra.mxu0 0.0
        %1163 = vmatpush.msra.mxu0 %v954
        %1164 = vmatmul.f32.gmra.mxu0 %v933
        %v1165 = vpop.f32.mrf.mxu0
        %v1166 = vadd.f32 %v774, %v1165
        %1167 = vdwg.mxu0
        %1168 = vmatpush.msra.mxu0 0.0
        %1169 = vmatpush.msra.mxu0 0.0
        %1170 = vmatpush.msra.mxu0 0.0
        %1171 = vmatpush.msra.mxu0 0.0
        %1172 = vmatpush.msra.mxu0 0.0
        %1173 = vmatpush.msra.mxu0 0.0
        %1174 = vmatpush.msra.mxu0 0.0
        %1175 = vmatpush.msra.mxu0 0.0
        %1176 = vmatpush.msra.mxu0 0.0
        %1177 = vmatpush.msra.mxu0 0.0
        %1178 = vmatpush.msra.mxu0 0.0
        %1179 = vmatpush.msra.mxu0 0.0
        %1180 = vmatpush.msra.mxu0 0.0
        %1181 = vmatpush.msra.mxu0 0.0
        %1182 = vmatpush.msra.mxu0 0.0
        %1183 = vmatpush.msra.mxu0 %v956
        %1184 = vmatmul.f32.gmra.mxu0 %v933
        %v1185 = vpop.f32.mrf.mxu0
        %v1186 = vadd.f32 %v794, %v1185
        %1187 = vdwg.mxu0
        %1188 = vmatpush.msra.mxu0 0.0
        %1189 = vmatpush.msra.mxu0 0.0
        %1190 = vmatpush.msra.mxu0 0.0
        %1191 = vmatpush.msra.mxu0 0.0
        %1192 = vmatpush.msra.mxu0 0.0
        %1193 = vmatpush.msra.mxu0 0.0
        %1194 = vmatpush.msra.mxu0 0.0
        %1195 = vmatpush.msra.mxu0 0.0
        %1196 = vmatpush.msra.mxu0 0.0
        %1197 = vmatpush.msra.mxu0 0.0
        %1198 = vmatpush.msra.mxu0 0.0
        %1199 = vmatpush.msra.mxu0 0.0
        %1200 = vmatpush.msra.mxu0 0.0
        %1201 = vmatpush.msra.mxu0 0.0
        %1202 = vmatpush.msra.mxu0 0.0
        %1203 = vmatpush.msra.mxu0 %v958
        %1204 = vmatmul.f32.gmra.mxu0 %v933
        %v1205 = vpop.f32.mrf.mxu0
        %v1206 = vadd.f32 %v814, %v1205
        %1207 = vdwg.mxu0
        %1208 = vmatpush.msra.mxu0 0.0
        %1209 = vmatpush.msra.mxu0 0.0
        %1210 = vmatpush.msra.mxu0 0.0
        %1211 = vmatpush.msra.mxu0 0.0
        %1212 = vmatpush.msra.mxu0 0.0
        %1213 = vmatpush.msra.mxu0 0.0
        %1214 = vmatpush.msra.mxu0 0.0
        %1215 = vmatpush.msra.mxu0 0.0
        %1216 = vmatpush.msra.mxu0 0.0
        %1217 = vmatpush.msra.mxu0 0.0
        %1218 = vmatpush.msra.mxu0 0.0
        %1219 = vmatpush.msra.mxu0 0.0
        %1220 = vmatpush.msra.mxu0 0.0
        %1221 = vmatpush.msra.mxu0 0.0
        %1222 = vmatpush.msra.mxu0 0.0
        %1223 = vmatpush.msra.mxu0 %v960
        %1224 = vmatmul.f32.gmra.mxu0 %v933
        %v1225 = vpop.f32.mrf.mxu0
        %v1226 = vadd.f32 %v834, %v1225
        %1227 = vdwg.mxu0
        %1228 = vmatpush.msra.mxu0 0.0
        %1229 = vmatpush.msra.mxu0 0.0
        %1230 = vmatpush.msra.mxu0 0.0
        %1231 = vmatpush.msra.mxu0 0.0
        %1232 = vmatpush.msra.mxu0 0.0
        %1233 = vmatpush.msra.mxu0 0.0
        %1234 = vmatpush.msra.mxu0 0.0
        %1235 = vmatpush.msra.mxu0 0.0
        %1236 = vmatpush.msra.mxu0 0.0
        %1237 = vmatpush.msra.mxu0 0.0
        %1238 = vmatpush.msra.mxu0 0.0
        %1239 = vmatpush.msra.mxu0 0.0
        %1240 = vmatpush.msra.mxu0 0.0
        %1241 = vmatpush.msra.mxu0 0.0
        %1242 = vmatpush.msra.mxu0 0.0
        %1243 = vmatpush.msra.mxu0 %v962
        %1244 = vmatmul.f32.gmra.mxu0 %v933
        %v1245 = vpop.f32.mrf.mxu0
        %v1246 = vadd.f32 %v854, %v1245
        %1247 = vdwg.mxu0
        %1248 = vmatpush.msra.mxu0 0.0
        %1249 = vmatpush.msra.mxu0 0.0
        %1250 = vmatpush.msra.mxu0 0.0
        %1251 = vmatpush.msra.mxu0 0.0
        %1252 = vmatpush.msra.mxu0 0.0
        %1253 = vmatpush.msra.mxu0 0.0
        %1254 = vmatpush.msra.mxu0 0.0
        %1255 = vmatpush.msra.mxu0 0.0
        %1256 = vmatpush.msra.mxu0 0.0
        %1257 = vmatpush.msra.mxu0 0.0
        %1258 = vmatpush.msra.mxu0 0.0
        %1259 = vmatpush.msra.mxu0 0.0
        %1260 = vmatpush.msra.mxu0 0.0
        %1261 = vmatpush.msra.mxu0 0.0
        %1262 = vmatpush.msra.mxu0 0.0
        %1263 = vmatpush.msra.mxu0 %v964
        %1264 = vmatmul.f32.gmra.mxu0 %v933
        %v1265 = vpop.f32.mrf.mxu0
        %v1266 = vadd.f32 %v874, %v1265
        %1267 = vdwg.mxu0
        %1268 = vmatpush.msra.mxu0 0.0
        %1269 = vmatpush.msra.mxu0 0.0
        %1270 = vmatpush.msra.mxu0 0.0
        %1271 = vmatpush.msra.mxu0 0.0
        %1272 = vmatpush.msra.mxu0 0.0
        %1273 = vmatpush.msra.mxu0 0.0
        %1274 = vmatpush.msra.mxu0 0.0
        %1275 = vmatpush.msra.mxu0 0.0
        %1276 = vmatpush.msra.mxu0 0.0
        %1277 = vmatpush.msra.mxu0 0.0
        %1278 = vmatpush.msra.mxu0 0.0
        %1279 = vmatpush.msra.mxu0 0.0
        %1280 = vmatpush.msra.mxu0 0.0
        %1281 = vmatpush.msra.mxu0 0.0
        %1282 = vmatpush.msra.mxu0 0.0
        %1283 = vmatpush.msra.mxu0 %v966
        %1284 = vmatmul.f32.gmra.mxu0 %v933
        %v1285 = vpop.f32.mrf.mxu0
        %v1286 = vadd.f32 %v894, %v1285
        %1287 = vdwg.mxu0
        %v1304 = vrot.slane %v1006, 7
        %v1305 = vrot.slane %v1026, 6
        %v1306 = vrot.slane %v1046, 5
        %v1307 = vrot.slane %v1066, 4
        %v1308 = vrot.slane %v1086, 3
        %v1309 = vrot.slane %v1106, 2
        %v1310 = vrot.slane %v1126, 1
        %v1311 = vrot.slane %v1166, 7
        %v1312 = vrot.slane %v1186, 6
        %v1313 = vrot.slane %v1206, 5
        %v1314 = vrot.slane %v1226, 4
        %v1315 = vrot.slane %v1246, 3
        %v1316 = vrot.slane %v1266, 2
        %v1317 = vrot.slane %v1286, 1
        %vm1318 = vcmask 1040384
        %v1319 = vsel %vm1318, %v986, %v1304
        %vm1320 = vcmask 1042434
        %v1321 = vsel %vm1320, %v1305, %v1306
        %vm1322 = vcmask 1041408
        %v1323 = vsel %vm1322, %v1319, %v1321
        %vm1324 = vcmask 1044484
        %v1325 = vsel %vm1324, %v1307, %v1308
        %vm1326 = vcmask 1046534
        %v1327 = vsel %vm1326, %v1309, %v1310
        %vm1328 = vcmask 1045508
        %v1329 = vsel %vm1328, %v1325, %v1327
        %v1330 = vsel %vm935, %v1323, %v1329
        %v1331 = vsel %vm1318, %v1146, %v1311
        %v1332 = vsel %vm1320, %v1312, %v1313
        %v1333 = vsel %vm1322, %v1331, %v1332
        %v1334 = vsel %vm1324, %v1314, %v1315
        %v1335 = vsel %vm1326, %v1316, %v1317
        %v1336 = vsel %vm1328, %v1334, %v1335
        %v1337 = vsel %vm935, %v1333, %v1336
        %vm1338 = vcmask 1041409
        %v1339 = vsel %vm1338, %v986, %v1304
        %vm1340 = vcmask 1043459
        %v1341 = vsel %vm1340, %v1305, %v1306
        %vm1342 = vcmask 1042433
        %v1343 = vsel %vm1342, %v1339, %v1341
        %vm1344 = vcmask 1045509
        %v1345 = vsel %vm1344, %v1307, %v1308
        %vm1346 = vcmask 1046528
        %v1347 = vsel %vm1346, %v1310, %v1309
        %vm1348 = vcmask 1046533
        %v1349 = vsel %vm1348, %v1345, %v1347
        %vm1350 = vcmask 1044481
        %v1351 = vsel %vm1350, %v1343, %v1349
        %v1352 = vrot.slane %v1351, 1
        %v1353 = vsel %vm1338, %v1146, %v1311
        %v1354 = vsel %vm1340, %v1312, %v1313
        %v1355 = vsel %vm1342, %v1353, %v1354
        %v1356 = vsel %vm1344, %v1314, %v1315
        %v1357 = vsel %vm1346, %v1317, %v1316
        %v1358 = vsel %vm1348, %v1356, %v1357
        %v1359 = vsel %vm1350, %v1355, %v1358
        %v1360 = vrot.slane %v1359, 1
        %v1361 = vsel %vm1320, %v986, %v1304
        %v1362 = vsel %vm1324, %v1305, %v1306
        %vm1363 = vcmask 1043458
        %v1364 = vsel %vm1363, %v1361, %v1362
        %v1365 = vsel %vm1326, %v1307, %v1308
        %v1366 = vsel %vm1318, %v1309, %v1310
        %vm1367 = vcmask 1045504
        %v1368 = vsel %vm1367, %v1366, %v1365
        %vm1369 = vcmask 1045506
        %v1370 = vsel %vm1369, %v1364, %v1368
        %v1371 = vrot.slane %v1370, 2
        %v1372 = vsel %vm1320, %v1146, %v1311
        %v1373 = vsel %vm1324, %v1312, %v1313
        %v1374 = vsel %vm1363, %v1372, %v1373
        %v1375 = vsel %vm1326, %v1314, %v1315
        %v1376 = vsel %vm1318, %v1316, %v1317
        %v1377 = vsel %vm1367, %v1376, %v1375
        %v1378 = vsel %vm1369, %v1374, %v1377
        %v1379 = vrot.slane %v1378, 2
        %v1380 = vsel %vm1340, %v986, %v1304
        %v1381 = vsel %vm1344, %v1305, %v1306
        %vm1382 = vcmask 1044483
        %v1383 = vsel %vm1382, %v1380, %v1381
        %v1384 = vsel %vm1346, %v1308, %v1307
        %v1385 = vsel %vm1338, %v1309, %v1310
        %vm1386 = vcmask 1046529
        %v1387 = vsel %vm1386, %v1385, %v1384
        %vm1388 = vcmask 1046531
        %v1389 = vsel %vm1388, %v1383, %v1387
        %v1390 = vrot.slane %v1389, 3
        %v1391 = vsel %vm1340, %v1146, %v1311
        %v1392 = vsel %vm1344, %v1312, %v1313
        %v1393 = vsel %vm1382, %v1391, %v1392
        %v1394 = vsel %vm1346, %v1315, %v1314
        %v1395 = vsel %vm1338, %v1316, %v1317
        %v1396 = vsel %vm1386, %v1395, %v1394
        %v1397 = vsel %vm1388, %v1393, %v1396
        %v1398 = vrot.slane %v1397, 3
        %v1399 = vsel %vm1324, %v986, %v1304
        %v1400 = vsel %vm1326, %v1305, %v1306
        %v1401 = vsel %vm1328, %v1399, %v1400
        %v1402 = vsel %vm1318, %v1307, %v1308
        %v1403 = vsel %vm1320, %v1309, %v1310
        %v1404 = vsel %vm1322, %v1402, %v1403
        %v1405 = vsel %vm935, %v1404, %v1401
        %v1406 = vrot.slane %v1405, 4
        %v1407 = vsel %vm1324, %v1146, %v1311
        %v1408 = vsel %vm1326, %v1312, %v1313
        %v1409 = vsel %vm1328, %v1407, %v1408
        %v1410 = vsel %vm1318, %v1314, %v1315
        %v1411 = vsel %vm1320, %v1316, %v1317
        %v1412 = vsel %vm1322, %v1410, %v1411
        %v1413 = vsel %vm935, %v1412, %v1409
        %v1414 = vrot.slane %v1413, 4
        %v1415 = vsel %vm1344, %v986, %v1304
        %v1416 = vsel %vm1346, %v1306, %v1305
        %v1417 = vsel %vm1348, %v1415, %v1416
        %v1418 = vsel %vm1338, %v1307, %v1308
        %v1419 = vsel %vm1340, %v1309, %v1310
        %v1420 = vsel %vm1342, %v1418, %v1419
        %v1421 = vsel %vm1350, %v1420, %v1417
        %v1422 = vrot.slane %v1421, 5
        %v1423 = vsel %vm1344, %v1146, %v1311
        %v1424 = vsel %vm1346, %v1313, %v1312
        %v1425 = vsel %vm1348, %v1423, %v1424
        %v1426 = vsel %vm1338, %v1314, %v1315
        %v1427 = vsel %vm1340, %v1316, %v1317
        %v1428 = vsel %vm1342, %v1426, %v1427
        %v1429 = vsel %vm1350, %v1428, %v1425
        %v1430 = vrot.slane %v1429, 5
        %v1431 = vsel %vm1326, %v986, %v1304
        %v1432 = vsel %vm1318, %v1305, %v1306
        %v1433 = vsel %vm1367, %v1432, %v1431
        %v1434 = vsel %vm1320, %v1307, %v1308
        %v1435 = vsel %vm1324, %v1309, %v1310
        %v1436 = vsel %vm1363, %v1434, %v1435
        %v1437 = vsel %vm1369, %v1436, %v1433
        %v1438 = vrot.slane %v1437, 6
        %v1439 = vsel %vm1326, %v1146, %v1311
        %v1440 = vsel %vm1318, %v1312, %v1313
        %v1441 = vsel %vm1367, %v1440, %v1439
        %v1442 = vsel %vm1320, %v1314, %v1315
        %v1443 = vsel %vm1324, %v1316, %v1317
        %v1444 = vsel %vm1363, %v1442, %v1443
        %v1445 = vsel %vm1369, %v1444, %v1441
        %v1446 = vrot.slane %v1445, 6
        %v1447 = vsel %vm1346, %v1304, %v986
        %v1448 = vsel %vm1338, %v1305, %v1306
        %v1449 = vsel %vm1386, %v1448, %v1447
        %v1450 = vsel %vm1340, %v1307, %v1308
        %v1451 = vsel %vm1344, %v1309, %v1310
        %v1452 = vsel %vm1382, %v1450, %v1451
        %v1453 = vsel %vm1388, %v1452, %v1449
        %v1454 = vrot.slane %v1453, 7
        %v1455 = vsel %vm1346, %v1311, %v1146
        %v1456 = vsel %vm1338, %v1312, %v1313
        %v1457 = vsel %vm1386, %v1456, %v1455
        %v1458 = vsel %vm1340, %v1314, %v1315
        %v1459 = vsel %vm1344, %v1316, %v1317
        %v1460 = vsel %vm1382, %v1458, %v1459
        %v1461 = vsel %vm1388, %v1460, %v1457
        %v1462 = vrot.slane %v1461, 7
        %1479 = vmatpush.msra.mxu0 %v545
        %1480 = vmatpush.msra.mxu0 %v544
        %1481 = vmatpush.msra.mxu0 %v543
        %1482 = vmatpush.msra.mxu0 %v542
        %1483 = vmatpush.msra.mxu0 %v541
        %1484 = vmatpush.msra.mxu0 %v540
        %1485 = vmatpush.msra.mxu0 %v539
        %1486 = vmatpush.msra.mxu0 %v538
        %1487 = vmatpush.msra.mxu0 %v537
        %1488 = vmatpush.msra.mxu0 %v536
        %1489 = vmatpush.msra.mxu0 %v535
        %1490 = vmatpush.msra.mxu0 %v534
        %1491 = vmatpush.msra.mxu0 %v533
        %1492 = vmatpush.msra.mxu0 %v532
        %1493 = vmatpush.msra.mxu0 %v531
        %1494 = vmatpush.msra.mxu0 %v530
        %1495 = vmatmul.f32.gmra.mxu0 %v514
        %v1496 = vpop.f32.mrf.mxu0
        %v1497 = vadd.f32 %v1330, %v1496
        %1498 = vmatmul.f32.gmra.mxu0 %v515
        %v1499 = vpop.f32.mrf.mxu0
        %v1500 = vadd.f32 %v1337, %v1499
        %1501 = vmatmul.f32.gmra.mxu0 %v516
        %v1502 = vpop.f32.mrf.mxu0
        %v1503 = vadd.f32 %v1352, %v1502
        %1504 = vmatmul.f32.gmra.mxu0 %v517
        %v1505 = vpop.f32.mrf.mxu0
        %v1506 = vadd.f32 %v1360, %v1505
        %1507 = vmatmul.f32.gmra.mxu0 %v518
        %v1508 = vpop.f32.mrf.mxu0
        %v1509 = vadd.f32 %v1371, %v1508
        %1510 = vmatmul.f32.gmra.mxu0 %v519
        %v1511 = vpop.f32.mrf.mxu0
        %v1512 = vadd.f32 %v1379, %v1511
        %1513 = vmatmul.f32.gmra.mxu0 %v520
        %v1514 = vpop.f32.mrf.mxu0
        %v1515 = vadd.f32 %v1390, %v1514
        %1516 = vmatmul.f32.gmra.mxu0 %v521
        %v1517 = vpop.f32.mrf.mxu0
        %v1518 = vadd.f32 %v1398, %v1517
        %1519 = vmatmul.f32.gmra.mxu0 %v522
        %v1520 = vpop.f32.mrf.mxu0
        %v1521 = vadd.f32 %v1406, %v1520
        %1522 = vmatmul.f32.gmra.mxu0 %v523
        %v1523 = vpop.f32.mrf.mxu0
        %v1524 = vadd.f32 %v1414, %v1523
        %1525 = vmatmul.f32.gmra.mxu0 %v524
        %v1526 = vpop.f32.mrf.mxu0
        %v1527 = vadd.f32 %v1422, %v1526
        %1528 = vmatmul.f32.gmra.mxu0 %v525
        %v1529 = vpop.f32.mrf.mxu0
        %v1530 = vadd.f32 %v1430, %v1529
        %1531 = vmatmul.f32.gmra.mxu0 %v526
        %v1532 = vpop.f32.mrf.mxu0
        %v1533 = vadd.f32 %v1438, %v1532
        %1534 = vmatmul.f32.gmra.mxu0 %v527
        %v1535 = vpop.f32.mrf.mxu0
        %v1536 = vadd.f32 %v1446, %v1535
        %1537 = vmatmul.f32.gmra.mxu0 %v528
        %v1538 = vpop.f32.mrf.mxu0
        %v1539 = vadd.f32 %v1454, %v1538
        %1540 = vmatmul.f32.gmra.mxu0 %v529
        %v1541 = vpop.f32.mrf.mxu0
        %v1542 = vadd.f32 %v1462, %v1541
        %1543 = vdwg.mxu0
        %v1544 = vld [vmem:[%s6] sm:$0x1]
        %v1546 = vperm.slane %v1544, 0
        %v1548 = vadd.f32 %v1497, %v1546
        %v1549 = vadd.f32 %v1500, %v1546
        %v1550 = vadd.f32 %v1503, %v1546
        %v1551 = vadd.f32 %v1506, %v1546
        %v1552 = vadd.f32 %v1509, %v1546
        %v1553 = vadd.f32 %v1512, %v1546
        %v1554 = vadd.f32 %v1515, %v1546
        %v1555 = vadd.f32 %v1518, %v1546
        %v1556 = vadd.f32 %v1521, %v1546
        %v1557 = vadd.f32 %v1524, %v1546
        %v1558 = vadd.f32 %v1527, %v1546
        %v1559 = vadd.f32 %v1530, %v1546
        %v1560 = vadd.f32 %v1533, %v1546
        %v1561 = vadd.f32 %v1536, %v1546
        %v1562 = vadd.f32 %v1539, %v1546
        %v1563 = vadd.f32 %v1542, %v1546
        %v1564 = vmax.f32 %v1548, 0.0
        %v1565 = vmax.f32 %v1549, 0.0
        %v1566 = vmax.f32 %v1550, 0.0
        %v1567 = vmax.f32 %v1551, 0.0
        %v1568 = vmax.f32 %v1552, 0.0
        %v1569 = vmax.f32 %v1553, 0.0
        %v1570 = vmax.f32 %v1554, 0.0
        %v1571 = vmax.f32 %v1555, 0.0
        %v1572 = vmax.f32 %v1556, 0.0
        %v1573 = vmax.f32 %v1557, 0.0
        %v1574 = vmax.f32 %v1558, 0.0
        %v1575 = vmax.f32 %v1559, 0.0
        %v1576 = vmax.f32 %v1560, 0.0
        %v1577 = vmax.f32 %v1561, 0.0
        %v1578 = vmax.f32 %v1562, 0.0
        %v1579 = vmax.f32 %v1563, 0.0
        %v1580 = vld [vmem:[#allocation9] sm:$0xff]
        %v1581 = vld [vmem:[#allocation9 + $0x8] sm:$0xff]
        %v1582 = vld [vmem:[#allocation9 + $0x10] sm:$0xff]
        %v1583 = vld [vmem:[#allocation9 + $0x18] sm:$0xff]
        %v1584 = vld [vmem:[#allocation9 + $0x20] sm:$0xff]
        %v1585 = vld [vmem:[#allocation9 + $0x28] sm:$0xff]
        %v1586 = vld [vmem:[#allocation9 + $0x30] sm:$0xff]
        %v1587 = vld [vmem:[#allocation9 + $0x38] sm:$0xff]
        %v1588 = vld [vmem:[#allocation9 + $0x40] sm:$0xff]
        %v1589 = vld [vmem:[#allocation9 + $0x48] sm:$0xff]
        %v1590 = vld [vmem:[#allocation9 + $0x50] sm:$0xff]
        %v1591 = vld [vmem:[#allocation9 + $0x58] sm:$0xff]
        %v1592 = vld [vmem:[#allocation9 + $0x60] sm:$0xff]
        %v1593 = vld [vmem:[#allocation9 + $0x68] sm:$0xff]
        %v1594 = vld [vmem:[#allocation9 + $0x70] sm:$0xff]
        %v1595 = vld [vmem:[#allocation9 + $0x78] sm:$0xff]
        %v1596 = vld [vmem:[%s8] sm:$0x1]
        %v1598 = vperm.slane %v1596, 0
        %1600 = vmatpush.msra.mxu0 %v1595
        %1601 = vmatpush.msra.mxu0 %v1594
        %1602 = vmatpush.msra.mxu0 %v1593
        %1603 = vmatpush.msra.mxu0 %v1592
        %1604 = vmatpush.msra.mxu0 %v1591
        %1605 = vmatpush.msra.mxu0 %v1590
        %1606 = vmatpush.msra.mxu0 %v1589
        %1607 = vmatpush.msra.mxu0 %v1588
        %1608 = vmatpush.msra.mxu0 %v1587
        %1609 = vmatpush.msra.mxu0 %v1586
        %1610 = vmatpush.msra.mxu0 %v1585
        %1611 = vmatpush.msra.mxu0 %v1584
        %1612 = vmatpush.msra.mxu0 %v1583
        %1613 = vmatpush.msra.mxu0 %v1582
        %1614 = vmatpush.msra.mxu0 %v1581
        %1615 = vmatpush.msra.mxu0 %v1580
        %1616 = vmatmul.f32.gmra.mxu0 %v1564
        %v1617 = vpop.f32.mrf.mxu0
        %v1618 = vadd.f32 %v1598, %v1617
        %1619 = vmatmul.f32.gmra.mxu0 %v1565
        %v1620 = vpop.f32.mrf.mxu0
        %v1621 = vadd.f32 %v1598, %v1620
        %1622 = vmatmul.f32.gmra.mxu0 %v1566
        %v1623 = vpop.f32.mrf.mxu0
        %v1624 = vadd.f32 %v1598, %v1623
        %1625 = vmatmul.f32.gmra.mxu0 %v1567
        %v1626 = vpop.f32.mrf.mxu0
        %v1627 = vadd.f32 %v1598, %v1626
        %1628 = vmatmul.f32.gmra.mxu0 %v1568
        %v1629 = vpop.f32.mrf.mxu0
        %v1630 = vadd.f32 %v1598, %v1629
        %1631 = vmatmul.f32.gmra.mxu0 %v1569
        %v1632 = vpop.f32.mrf.mxu0
        %v1633 = vadd.f32 %v1598, %v1632
        %1634 = vmatmul.f32.gmra.mxu0 %v1570
        %v1635 = vpop.f32.mrf.mxu0
        %v1636 = vadd.f32 %v1598, %v1635
        %1637 = vmatmul.f32.gmra.mxu0 %v1571
        %v1638 = vpop.f32.mrf.mxu0
        %v1639 = vadd.f32 %v1598, %v1638
        %1640 = vmatmul.f32.gmra.mxu0 %v1572
        %v1641 = vpop.f32.mrf.mxu0
        %v1642 = vadd.f32 %v1598, %v1641
        %1643 = vmatmul.f32.gmra.mxu0 %v1573
        %v1644 = vpop.f32.mrf.mxu0
        %v1645 = vadd.f32 %v1598, %v1644
        %1646 = vmatmul.f32.gmra.mxu0 %v1574
        %v1647 = vpop.f32.mrf.mxu0
        %v1648 = vadd.f32 %v1598, %v1647
        %1649 = vmatmul.f32.gmra.mxu0 %v1575
        %v1650 = vpop.f32.mrf.mxu0
        %v1651 = vadd.f32 %v1598, %v1650
        %1652 = vmatmul.f32.gmra.mxu0 %v1576
        %v1653 = vpop.f32.mrf.mxu0
        %v1654 = vadd.f32 %v1598, %v1653
        %1655 = vmatmul.f32.gmra.mxu0 %v1577
        %v1656 = vpop.f32.mrf.mxu0
        %v1657 = vadd.f32 %v1598, %v1656
        %1658 = vmatmul.f32.gmra.mxu0 %v1578
        %v1659 = vpop.f32.mrf.mxu0
        %v1660 = vadd.f32 %v1598, %v1659
        %1661 = vmatmul.f32.gmra.mxu0 %v1579
        %v1662 = vpop.f32.mrf.mxu0
        %v1663 = vadd.f32 %v1598, %v1662
        %1664 = vdwg.mxu0
        %1665 = vst [vmem:[%s503] sm:$0xff] %v1618
        %1666 = vst [vmem:[%s503 + $0x8] sm:$0xff] %v1621
        %1667 = vst [vmem:[%s503 + $0x10] sm:$0xff] %v1624
        %1668 = vst [vmem:[%s503 + $0x18] sm:$0xff] %v1627
        %1669 = vst [vmem:[%s503 + $0x20] sm:$0xff] %v1630
        %1670 = vst [vmem:[%s503 + $0x28] sm:$0xff] %v1633
        %1671 = vst [vmem:[%s503 + $0x30] sm:$0xff] %v1636
        %1672 = vst [vmem:[%s503 + $0x38] sm:$0xff] %v1639
        %1673 = vst [vmem:[%s503 + $0x40] sm:$0xff] %v1642
        %1674 = vst [vmem:[%s503 + $0x48] sm:$0xff] %v1645
        %1675 = vst [vmem:[%s503 + $0x50] sm:$0xff] %v1648
        %1676 = vst [vmem:[%s503 + $0x58] sm:$0xff] %v1651
        %1677 = vst [vmem:[%s503 + $0x60] sm:$0xff] %v1654
        %1678 = vst [vmem:[%s503 + $0x68] sm:$0xff] %v1657
        %1679 = vst [vmem:[%s503 + $0x70] sm:$0xff] %v1660
        %1680 = vst [vmem:[%s503 + $0x78] sm:$0xff] %v1663
        %s1681 = sand.u32 %s265, 1
        %s1682 = scalar_lea.sflag [#allocation4], %s1681
        %s1683 = sand.u32 %s265, 1
        %s1684 = smul.addr %s1683, 128
        %s1685 = scalar_lea.vmem [#allocation10], %s1684
        // Predicated region
        $region77: #{tpu_custom_call.1} parent=55 // pred_check
          %p1686 = pneg %p275
        $region78: #{tpu_custom_call.1} parent=55 // pred_check_branch
          %1688 = sbr.rel (%p1686) target = $region80
        $region79: #{tpu_custom_call.1} parent=55 // pred_region
          %s1689 = smul.u32 16, %s32
          %1691 = vsyncadd %s1682, 0
          %s1692 = smul.addr %s31, 32
          %s1693 = sadd.s32 %s1689, %s1692
          %s1694 = smul.addr %s1693, 8
          %s1695 = scalar_lea.hbm %s9, %s1694
          %s1696 = sshll.u32 %s1685, 4
          %s1697 = int_to_ptr.vmem [resolvable:$true] %s1696
          %s1698 = sshll.u32 %s1695, 4
          %s1699 = int_to_ptr.hbm [resolvable:$true] %s1698
          %1704 = dma.vmem_to_hbm [thread:$0]  %s1697, 2048, %s1699, %s1682, 128, 128, 8
        $region80: #{tpu_custom_call.1} parent=55 // pred_fallthru
          _
      $region56: #{tpu_custom_call.1} parent=5 // pred_fallthru
        _
      %p1705 = scmp.le.s32.totalorder 2, %s22
      // Predicated region
      $region81: #{tpu_custom_call.1} parent=5 // pred_check
        %p1706 = pneg %p1705
      $region82: #{tpu_custom_call.1} parent=5 // pred_check_branch
        %1708 = sbr.rel (%p1706) target = $region84
      $region83: #{tpu_custom_call.1} parent=5 // pred_region
        %s1709 = ssub.s32 %s22, 2
        // Predicated region
        $region85: #{tpu_custom_call.1} parent=83 // pred_check
          %p1710 = pneg %p281
        $region86: #{tpu_custom_call.1} parent=83 // pred_check_branch
          %1712 = sbr.rel (%p1710) target = $region88
        $region87: #{tpu_custom_call.1} parent=83 // pred_region
          %s1713 = sand.u32 %s266, 1
          %s1714 = scalar_lea.sflag [#allocation4], %s1713
          %s1715 = sand.u32 %s266, 1
          %s1716 = smul.addr %s1715, 128
          %s1717 = scalar_lea.vmem [#allocation10], %s1716
          %1719 = dma.done %s1714, 2048
        $region88: #{tpu_custom_call.1} parent=83 // pred_fallthru
          _
      $region84: #{tpu_custom_call.1} parent=5 // pred_fallthru
        _
    $region6: #{tpu_custom_call.1} parent=1 // loop_footer
      %s26 = sadd.s32 1, %s22
    $region7: #{tpu_custom_call.1} parent=1 // loop_footer_branch
      %21 = sbr.rel target = $region3
    $region8: #{tpu_custom_call.1} parent=1 // loop_exit
      _
    %1720 = vsyncpa [#allocation3], 1
    %s1721 = scalar_lea.sflag [#allocation3], 1
    %1722 = vsyncpa %s1721, 1
    %1723 = vsyncpa [#allocation6], 1
    %1724 = vsyncpa [#allocation4], 1
    %s1725 = scalar_lea.sflag [#allocation4], 1
    %1726 = vsyncpa %s1725, 1

// kernel: tpu_custom_call.1
$region0: #{tpu_custom_call.1}
  #allocation0 [shape = 'u32[]', space=smem, size = 0x4, offset = 0x4, fixed_abs, tag = 'smem constant byte address 0x4 - core index']
  #allocation1 [shape = 'u32[72,128]{1,0:T(1,128)}', space=vmem, size = 0x9000, scoped, tag = 'internal scratch']
  %s0 = inlined_call_operand.hbm [shape: f32[2,256,128], index: 0, kind: input, shape index: {}]
  %s1 = inlined_call_operand.hbm [shape: f32[128,128], index: 1, kind: input, shape index: {}]
  %s2 = inlined_call_operand.vmem [shape: f32[16,4], index: 2, kind: input, shape index: {}]
  %s3 = inlined_call_operand.hbm [shape: f32[2,4,2048], index: 3, kind: input, shape index: {}]
  %s4 = inlined_call_operand.vmem [shape: f32[16,8], index: 4, kind: input, shape index: {}]
  %s5 = inlined_call_operand.hbm [shape: f32[2,8,2048], index: 5, kind: input, shape index: {}]
  %s6 = inlined_call_operand.vmem [shape: f32[1,128], index: 6, kind: input, shape index: {}]
  %s7 = inlined_call_operand.hbm [shape: f32[128,128], index: 7, kind: input, shape index: {}]
  %s8 = inlined_call_operand.vmem [shape: f32[1,128], index: 8, kind: input, shape index: {}]
  %s9 = inlined_call_operand.hbm [shape: f32[2,256,128], index: 9, kind: output, shape index: {}]
  %s10 = sld [smem:[#allocation0]]
  $region89: #{tpu_custom_call.1} parent=0
    _
  %s12 = ssub.s32 1, %s10
  %s13 = scalar_select 0, %s12, %s10
  $region1: #{tpu_custom_call.1} parent=0
    #allocation2 [shape = 'u8[131072]{0}', space=vmem, size = 0x20000, scoped, tag = 'input window, operand 0']
    #allocation3 [shape = 's32[2]{0}', space=sflag, size = 0x8, scoped, tag = 'scoped memory for tpu_custom_call.1']
    #allocation4 [shape = 's32[2]{0}', space=sflag, size = 0x8, scoped, tag = 'scoped memory for tpu_custom_call.1']
    #allocation5 [shape = 'u8[65536]{0}', space=vmem, size = 0x10000, scoped, tag = 'input window, operand 1, single buffered']
    #allocation6 [shape = 's32[1]{0}', space=sflag, size = 0x4, scoped, tag = 'scoped memory for tpu_custom_call.1']
    #allocation7 [shape = 'u8[65536]{0}', space=vmem, size = 0x10000, scoped, tag = 'input window, operand 3']
    #allocation8 [shape = 'u8[131072]{0}', space=vmem, size = 0x20000, scoped, tag = 'input window, operand 5']
    #allocation9 [shape = 'u8[65536]{0}', space=vmem, size = 0x10000, scoped, tag = 'input window, operand 7, single buffered']
    #allocation10 [shape = 'u8[131072]{0}', space=vmem, size = 0x20000, scoped, tag = 'output window, operand 0']
    %14 = vsyncpa [#allocation3], 0
    %s15 = scalar_lea.sflag [#allocation3], 1
    %16 = vsyncpa %s15, 0
    %17 = vsyncpa [#allocation6], 0
    %18 = vsyncpa [#allocation4], 0
    %s19 = scalar_lea.sflag [#allocation4], 1
    %20 = vsyncpa %s19, 0
    loop: start=0, step=1, limit=6
    $region2: #{tpu_custom_call.1} parent=1 // loop_pre_header
      _
    $region3: #{tpu_custom_call.1} parent=1 // loop_header
      %s22 = sphi 0, %s26
      %p23 = scmp.ge.s32.totalorder %s22, 6
      %s29 = sphi 0, %s41
      %s30 = sphi 0, %s37
      %s31 = sphi 0, %s29
      %s32 = sphi 0, %s30
      %s33 = sphi 0, %s31
      %s34 = sphi 0, %s32
      %s46 = sphi 0, %s48
      %s49 = sphi 0, %s46
      %s50 = sphi 0, %s49
      %s66 = sphi 0, %s50
      %s70 = sphi 0, %s70
      %s72 = sphi 0, %s70
      %s73 = sphi 0, %s72
      %s87 = sphi 0, %s73
      %s93 = sphi 0, %s95
      %s96 = sphi 0, %s93
      %s97 = sphi 0, %s96
      %s113 = sphi 0, %s97
      %s119 = sphi 0, %s121
      %s122 = sphi 0, %s119
      %s123 = sphi 0, %s122
      %s139 = sphi 0, %s123
      %s145 = sphi 0, %s147
      %s148 = sphi 0, %s145
      %s149 = sphi 0, %s148
      %s165 = sphi 0, %s149
      %s171 = sphi 0, %s173
      %s174 = sphi 0, %s171
      %s175 = sphi 0, %s174
      %s191 = sphi 0, %s175
      %s195 = sphi 0, %s195
      %s197 = sphi 0, %s195
      %s198 = sphi 0, %s197
      %s212 = sphi 0, %s198
      %s216 = sphi 0, %s216
      %s218 = sphi 0, %s216
      %s219 = sphi 0, %s218
      %s233 = sphi 0, %s219
      %s237 = sphi 0, %s237
      %s239 = sphi 0, %s237
      %s240 = sphi 0, %s239
      %s254 = sphi 0, %s240
      %s262 = sphi 0, %s264
      %s265 = sphi 0, %s262
      %s266 = sphi 0, %s265
      %s282 = sphi 0, %s266
    $region4: #{tpu_custom_call.1} parent=1 // loop_header_branch
      %25 = sbr.rel (%p23) target = $region8
    $region5: #{tpu_custom_call.1} parent=1 // loop_body
      %s27 = ssub.s32 %s22, 1
      %s28 = ssub.s32 %s22, 2
      %s35 = sadd.s32 1, %s30
      %p36 = scmp.ge.s32.totalorder %s35, 2
      %s37 = scalar_select %p36, 0, %s35
      %s38 = sadd.s32 1, %s29
      %s39 = scalar_select %p36, %s38, %s29
      %p40 = scmp.ge.s32.totalorder %s39, 2
      %s41 = scalar_select %p40, 0, %s39
      %s42 = ssub.s32 %s29, %s41
      %s43 = ssub.s32 %s30, %s37
      %s44 = sor.u32 %s42, %s43
      %p45 = scmp.eq.s32.totalorder %s44, 0
      %s47 = sadd.s32 %s46, 1
      %s48 = scalar_select %p45, %s46, %s47
      %p51 = pneg %p45
      %p52 = scmp.eq.s32.totalorder %s22, 3
      %p53 = por %p51, %p52
      %p54 = scmp.ne.s32.totalorder %s46, %s49
      %p55 = scmp.eq.s32.totalorder %s22, 0
      %p56 = por %p54, %p55
      %p57 = scmp.ne.s32.totalorder %s46, %s49
      %p58 = scmp.eq.s32.totalorder %s27, 3
      %p59 = por %p57, %p58
      %p60 = scmp.ne.s32.totalorder %s49, %s50
      %p61 = scmp.eq.s32.totalorder %s27, 0
      %p62 = por %p60, %p61
      %p63 = scmp.ne.s32.totalorder %s49, %s50
      %p64 = scmp.eq.s32.totalorder %s28, 3
      %p65 = por %p63, %p64
      %p67 = scmp.ne.s32.totalorder %s50, %s66
      %p68 = scmp.eq.s32.totalorder %s28, 0
      %p69 = por %p67, %p68
      %s71 = sadd.s32 %s70, 1
      %p74 = scmp.eq.s32.totalorder %s22, 3
      %p75 = scmp.ne.s32.totalorder %s70, %s72
      %p76 = scmp.eq.s32.totalorder %s22, 0
      %p77 = por %p75, %p76
      %p78 = scmp.ne.s32.totalorder %s70, %s72
      %p79 = scmp.eq.s32.totalorder %s27, 3
      %p80 = por %p78, %p79
      %p81 = scmp.ne.s32.totalorder %s72, %s73
      %p82 = scmp.eq.s32.totalorder %s27, 0
      %p83 = por %p81, %p82
      %p84 = scmp.ne.s32.totalorder %s72, %s73
      %p85 = scmp.eq.s32.totalorder %s28, 3
      %p86 = por %p84, %p85
      %p88 = scmp.ne.s32.totalorder %s73, %s87
      %p89 = scmp.eq.s32.totalorder %s28, 0
      %p90 = por %p88, %p89
      %s91 = ssub.s32 %s30, %s37
      %p92 = scmp.eq.s32.totalorder %s91, 0
      %s94 = sadd.s32 %s93, 1
      %s95 = scalar_select %p92, %s93, %s94
      %p98 = pneg %p92
      %p99 = scmp.eq.s32.totalorder %s22, 3
      %p100 = por %p98, %p99
      %p101 = scmp.ne.s32.totalorder %s93, %s96
      %p102 = scmp.eq.s32.totalorder %s22, 0
      %p103 = por %p101, %p102
      %p104 = scmp.ne.s32.totalorder %s93, %s96
      %p105 = scmp.eq.s32.totalorder %s27, 3
      %p106 = por %p104, %p105
      %p107 = scmp.ne.s32.totalorder %s96, %s97
      %p108 = scmp.eq.s32.totalorder %s27, 0
      %p109 = por %p107, %p108
      %p110 = scmp.ne.s32.totalorder %s96, %s97
      %p111 = scmp.eq.s32.totalorder %s28, 3
      %p112 = por %p110, %p111
      %p114 = scmp.ne.s32.totalorder %s97, %s113
      %p115 = scmp.eq.s32.totalorder %s28, 0
      %p116 = por %p114, %p115
      %s117 = ssub.s32 %s29, %s41
      %p118 = scmp.eq.s32.totalorder %s117, 0
      %s120 = sadd.s32 %s119, 1
      %s121 = scalar_select %p118, %s119, %s120
      %p124 = pneg %p118
      %p125 = scmp.eq.s32.totalorder %s22, 3
      %p126 = por %p124, %p125
      %p127 = scmp.ne.s32.totalorder %s119, %s122
      %p128 = scmp.eq.s32.totalorder %s22, 0
      %p129 = por %p127, %p128
      %p130 = scmp.ne.s32.totalorder %s119, %s122
      %p131 = scmp.eq.s32.totalorder %s27, 3
      %p132 = por %p130, %p131
      %p133 = scmp.ne.s32.totalorder %s122, %s123
      %p134 = scmp.eq.s32.totalorder %s27, 0
      %p135 = por %p133, %p134
      %p136 = scmp.ne.s32.totalorder %s122, %s123
      %p137 = scmp.eq.s32.totalorder %s28, 3
      %p138 = por %p136, %p137
      %p140 = scmp.ne.s32.totalorder %s123, %s139
      %p141 = scmp.eq.s32.totalorder %s28, 0
      %p142 = por %p140, %p141
      %s143 = ssub.s32 %s30, %s37
      %p144 = scmp.eq.s32.totalorder %s143, 0
      %s146 = sadd.s32 %s145, 1
      %s147 = scalar_select %p144, %s145, %s146
      %p150 = pneg %p144
      %p151 = scmp.eq.s32.totalorder %s22, 3
      %p152 = por %p150, %p151
      %p153 = scmp.ne.s32.totalorder %s145, %s148
      %p154 = scmp.eq.s32.totalorder %s22, 0
      %p155 = por %p153, %p154
      %p156 = scmp.ne.s32.totalorder %s145, %s148
      %p157 = scmp.eq.s32.totalorder %s27, 3
      %p158 = por %p156, %p157
      %p159 = scmp.ne.s32.totalorder %s148, %s149
      %p160 = scmp.eq.s32.totalorder %s27, 0
      %p161 = por %p159, %p160
      %p162 = scmp.ne.s32.totalorder %s148, %s149
      %p163 = scmp.eq.s32.totalorder %s28, 3
      %p164 = por %p162, %p163
      %p166 = scmp.ne.s32.totalorder %s149, %s165
      %p167 = scmp.eq.s32.totalorder %s28, 0
      %p168 = por %p166, %p167
      %s169 = ssub.s32 %s29, %s41
      %p170 = scmp.eq.s32.totalorder %s169, 0
      %s172 = sadd.s32 %s171, 1
      %s173 = scalar_select %p170, %s171, %s172
      %p176 = pneg %p170
      %p177 = scmp.eq.s32.totalorder %s22, 3
      %p178 = por %p176, %p177
      %p179 = scmp.ne.s32.totalorder %s171, %s174
      %p180 = scmp.eq.s32.totalorder %s22, 0
      %p181 = por %p179, %p180
      %p182 = scmp.ne.s32.totalorder %s171, %s174
      %p183 = scmp.eq.s32.totalorder %s27, 3
      %p184 = por %p182, %p183
      %p185 = scmp.ne.s32.totalorder %s174, %s175
      %p186 = scmp.eq.s32.totalorder %s27, 0
      %p187 = por %p185, %p186
      %p188 = scmp.ne.s32.totalorder %s174, %s175
      %p189 = scmp.eq.s32.totalorder %s28, 3
      %p190 = por %p188, %p189
      %p192 = scmp.ne.s32.totalorder %s175, %s191
      %p193 = scmp.eq.s32.totalorder %s28, 0
      %p194 = por %p192, %p193
      %s196 = sadd.s32 %s195, 1
      %p199 = scmp.eq.s32.totalorder %s22, 3
      %p200 = scmp.ne.s32.totalorder %s195, %s197
      %p201 = scmp.eq.s32.totalorder %s22, 0
      %p202 = por %p200, %p201
      %p203 = scmp.ne.s32.totalorder %s195, %s197
      %p204 = scmp.eq.s32.totalorder %s27, 3
      %p205 = por %p203, %p204
      %p206 = scmp.ne.s32.totalorder %s197, %s198
      %p207 = scmp.eq.s32.totalorder %s27, 0
      %p208 = por %p206, %p207
      %p209 = scmp.ne.s32.totalorder %s197, %s198
      %p210 = scmp.eq.s32.totalorder %s28, 3
      %p211 = por %p209, %p210
      %p213 = scmp.ne.s32.totalorder %s198, %s212
      %p214 = scmp.eq.s32.totalorder %s28, 0
      %p215 = por %p213, %p214
      %s217 = sadd.s32 %s216, 1
      %p220 = scmp.eq.s32.totalorder %s22, 3
      %p221 = scmp.ne.s32.totalorder %s216, %s218
      %p222 = scmp.eq.s32.totalorder %s22, 0
      %p223 = por %p221, %p222
      %p224 = scmp.ne.s32.totalorder %s216, %s218
      %p225 = scmp.eq.s32.totalorder %s27, 3
      %p226 = por %p224, %p225
      %p227 = scmp.ne.s32.totalorder %s218, %s219
      %p228 = scmp.eq.s32.totalorder %s27, 0
      %p229 = por %p227, %p228
      %p230 = scmp.ne.s32.totalorder %s218, %s219
      %p231 = scmp.eq.s32.totalorder %s28, 3
      %p232 = por %p230, %p231
      %p234 = scmp.ne.s32.totalorder %s219, %s233
      %p235 = scmp.eq.s32.totalorder %s28, 0
      %p236 = por %p234, %p235
      %s238 = sadd.s32 %s237, 1
      %p241 = scmp.eq.s32.totalorder %s22, 3
      %p242 = scmp.ne.s32.totalorder %s237, %s239
      %p243 = scmp.eq.s32.totalorder %s22, 0
      %p244 = por %p242, %p243
      %p245 = scmp.ne.s32.totalorder %s237, %s239
      %p246 = scmp.eq.s32.totalorder %s27, 3
      %p247 = por %p245, %p246
      %p248 = scmp.ne.s32.totalorder %s239, %s240
      %p249 = scmp.eq.s32.totalorder %s27, 0
      %p250 = por %p248, %p249
      %p251 = scmp.ne.s32.totalorder %s239, %s240
      %p252 = scmp.eq.s32.totalorder %s28, 3
      %p253 = por %p251, %p252
      %p255 = scmp.ne.s32.totalorder %s240, %s254
      %p256 = scmp.eq.s32.totalorder %s28, 0
      %p257 = por %p255, %p256
      %s258 = ssub.s32 %s29, %s41
      %s259 = ssub.s32 %s30, %s37
      %s260 = sor.u32 %s258, %s259
      %p261 = scmp.eq.s32.totalorder %s260, 0
      %s263 = sadd.s32 %s262, 1
      %s264 = scalar_select %p261, %s262, %s263
      %p267 = pneg %p261
      %p268 = scmp.eq.s32.totalorder %s22, 3
      %p269 = por %p267, %p268
      %p270 = scmp.ne.s32.totalorder %s262, %s265
      %p271 = scmp.eq.s32.totalorder %s22, 0
      %p272 = por %p270, %p271
      %p273 = scmp.ne.s32.totalorder %s262, %s265
      %p274 = scmp.eq.s32.totalorder %s27, 3
      %p275 = por %p273, %p274
      %p276 = scmp.ne.s32.totalorder %s265, %s266
      %p277 = scmp.eq.s32.totalorder %s27, 0
      %p278 = por %p276, %p277
      %p279 = scmp.ne.s32.totalorder %s265, %s266
      %p280 = scmp.eq.s32.totalorder %s28, 3
      %p281 = por %p279, %p280
      %p283 = scmp.ne.s32.totalorder %s266, %s282
      %p284 = scmp.eq.s32.totalorder %s28, 0
      %p285 = por %p283, %p284
      %p286 = scmp.le.s32.totalorder 1, %s22
      %p287 = scmp.lt.s32.totalorder %s22, 5
      %p288 = pnand %p286, %p287
      %p289 = pneg %p288
      // Predicated region
      $region9: #{tpu_custom_call.1} parent=5 // pred_check
        _
      $region10: #{tpu_custom_call.1} parent=5 // pred_check_branch
        %291 = sbr.rel (%p288) target = $region12
      $region11: #{tpu_custom_call.1} parent=5 // pred_region
        %s292 = ssub.s32 %s22, 1
        // Predicated region
        $region13: #{tpu_custom_call.1} parent=11 // pred_check
          %p293 = pneg %p83
        $region14: #{tpu_custom_call.1} parent=11 // pred_check_branch
          %295 = sbr.rel (%p293) target = $region16
        $region15: #{tpu_custom_call.1} parent=11 // pred_region
          %297 = vsyncadd [#allocation6], 0
          %s298 = sshll.u32 %s1, 4
          %s299 = int_to_ptr.hbm [resolvable:$true] %s298
          %s300 = sshll.u32 [#allocation5], 4
          %s301 = int_to_ptr.vmem [resolvable:$true] %s300
          %306 = dma.hbm_to_vmem [thread:$0]  %s299, 2048, %s301, [#allocation6], 128, 128, 8
        $region16: #{tpu_custom_call.1} parent=11 // pred_fallthru
          _
        // Predicated region
        $region17: #{tpu_custom_call.1} parent=11 // pred_check
          %p307 = pneg %p208
        $region18: #{tpu_custom_call.1} parent=11 // pred_check_branch
          %309 = sbr.rel (%p307) target = $region20
        $region19: #{tpu_custom_call.1} parent=11 // pred_region
          _
        $region20: #{tpu_custom_call.1} parent=11 // pred_fallthru
          _
        // Predicated region
        $region21: #{tpu_custom_call.1} parent=11 // pred_check
          %p310 = pneg %p229
        $region22: #{tpu_custom_call.1} parent=11 // pred_check_branch
          %312 = sbr.rel (%p310) target = $region24
        $region23: #{tpu_custom_call.1} parent=11 // pred_region
          %314 = vsyncadd [#allocation6], 0
          %s315 = sshll.u32 %s7, 4
          %s316 = int_to_ptr.hbm [resolvable:$true] %s315
          %s317 = sshll.u32 [#allocation9], 4
          %s318 = int_to_ptr.vmem [resolvable:$true] %s317
          %323 = dma.hbm_to_vmem [thread:$0]  %s316, 2048, %s318, [#allocation6], 128, 128, 8
        $region24: #{tpu_custom_call.1} parent=11 // pred_fallthru
          _
        // Predicated region
        $region25: #{tpu_custom_call.1} parent=11 // pred_check
          %p324 = pneg %p250
        $region26: #{tpu_custom_call.1} parent=11 // pred_check_branch
          %326 = sbr.rel (%p324) target = $region28
        $region27: #{tpu_custom_call.1} parent=11 // pred_region
          _
        $region28: #{tpu_custom_call.1} parent=11 // pred_fallthru
          _
      $region12: #{tpu_custom_call.1} parent=5 // pred_fallthru
        _
      %p327 = scmp.lt.s32.totalorder %s22, 4
      // Predicated region
      $region29: #{tpu_custom_call.1} parent=5 // pred_check
        %p328 = pneg %p327
      $region30: #{tpu_custom_call.1} parent=5 // pred_check_branch
        %330 = sbr.rel (%p328) target = $region32
      $region31: #{tpu_custom_call.1} parent=5 // pred_region
        // Predicated region
        $region33: #{tpu_custom_call.1} parent=31 // pred_check
          %p331 = pneg %p56
        $region34: #{tpu_custom_call.1} parent=31 // pred_check_branch
          %333 = sbr.rel (%p331) target = $region36
        $region35: #{tpu_custom_call.1} parent=31 // pred_region
          %s334 = sand.u32 %s22, 1
          %s335 = scalar_lea.sflag [#allocation3], %s334
          %s336 = sand.u32 %s46, 1
          %s337 = smul.addr %s336, 128
          %s338 = scalar_lea.vmem [#allocation2], %s337
          %s339 = smul.u32 16, %s30
          %341 = vsyncadd %s335, 0
          %s342 = smul.addr %s29, 32
          %s343 = sadd.s32 %s339, %s342
          %s344 = smul.addr %s343, 8
          %s345 = scalar_lea.hbm %s0, %s344
          %s346 = sshll.u32 %s345, 4
          %s347 = int_to_ptr.hbm [resolvable:$true] %s346
          %s348 = sshll.u32 %s338, 4
          %s349 = int_to_ptr.vmem [resolvable:$true] %s348
          %354 = dma.hbm_to_vmem [thread:$0]  %s347, 2048, %s349, %s335, 128, 128, 8
        $region36: #{tpu_custom_call.1} parent=31 // pred_fallthru
          _
        // Predicated region
        $region37: #{tpu_custom_call.1} parent=31 // pred_check
          %p355 = pneg %p103
        $region38: #{tpu_custom_call.1} parent=31 // pred_check_branch
          %357 = sbr.rel (%p355) target = $region40
        $region39: #{tpu_custom_call.1} parent=31 // pred_region
          %p358 = scmp.lt.s32.totalorder %s30, 1
          %s359 = scalar_select %p358, %s30, 1
          %s360 = smul.addr %s359, 8
          %s361 = scalar_lea.vmem %s2, %s360
        $region40: #{tpu_custom_call.1} parent=31 // pred_fallthru
          _
        // Predicated region
        $region41: #{tpu_custom_call.1} parent=31 // pred_check
          %p362 = pneg %p129
        $region42: #{tpu_custom_call.1} parent=31 // pred_check_branch
          %364 = sbr.rel (%p362) target = $region44
        $region43: #{tpu_custom_call.1} parent=31 // pred_region
          %s365 = sand.u32 %s22, 1
          %s366 = scalar_lea.sflag [#allocation3], %s365
          %s367 = sand.u32 %s119, 1
          %s368 = smul.addr %s367, 64
          %s369 = scalar_lea.vmem [#allocation7], %s368
          %371 = vsyncadd %s366, 0
          %s372 = smul.addr %s29, 16
          %s373 = smul.addr %s372, 4
          %s374 = scalar_lea.hbm %s3, %s373
          %s376 = sshll.u32 %s374, 4
          %s377 = int_to_ptr.hbm [resolvable:$true] %s376
          %s378 = sshll.u32 %s369, 4
          %s379 = int_to_ptr.vmem [resolvable:$true] %s378
          %381 = dma.hbm_to_vmem [thread:$0]  %s377, 1024, %s379, %s366
        $region44: #{tpu_custom_call.1} parent=31 // pred_fallthru
          _
        // Predicated region
        $region45: #{tpu_custom_call.1} parent=31 // pred_check
          %p382 = pneg %p155
        $region46: #{tpu_custom_call.1} parent=31 // pred_check_branch
          %384 = sbr.rel (%p382) target = $region48
        $region47: #{tpu_custom_call.1} parent=31 // pred_region
          %p385 = scmp.lt.s32.totalorder %s30, 1
          %s386 = scalar_select %p385, %s30, 1
          %s387 = smul.addr %s386, 8
          %s388 = scalar_lea.vmem %s4, %s387
        $region48: #{tpu_custom_call.1} parent=31 // pred_fallthru
          _
        // Predicated region
        $region49: #{tpu_custom_call.1} parent=31 // pred_check
          %p389 = pneg %p181
        $region50: #{tpu_custom_call.1} parent=31 // pred_check_branch
          %391 = sbr.rel (%p389) target = $region52
        $region51: #{tpu_custom_call.1} parent=31 // pred_region
          %s392 = sand.u32 %s22, 1
          %s393 = scalar_lea.sflag [#allocation3], %s392
          %s394 = sand.u32 %s171, 1
          %s395 = smul.addr %s394, 128
          %s396 = scalar_lea.vmem [#allocation8], %s395
          %398 = vsyncadd %s393, 0
          %s399 = smul.addr %s29, 16
          %s400 = smul.addr %s399, 8
          %s401 = scalar_lea.hbm %s5, %s400
          %s403 = sshll.u32 %s401, 4
          %s404 = int_to_ptr.hbm [resolvable:$true] %s403
          %s405 = sshll.u32 %s396, 4
          %s406 = int_to_ptr.vmem [resolvable:$true] %s405
          %408 = dma.hbm_to_vmem [thread:$0]  %s404, 2048, %s406, %s393
        $region52: #{tpu_custom_call.1} parent=31 // pred_fallthru
          _
      $region32: #{tpu_custom_call.1} parent=5 // pred_fallthru
        _
      %p409 = scmp.le.s32.totalorder 1, %s22
      %p410 = scmp.lt.s32.totalorder %s22, 5
      %p411 = pnand %p409, %p410
      %p412 = pneg %p411
      // Predicated region
      $region53: #{tpu_custom_call.1} parent=5 // pred_check
        _
      $region54: #{tpu_custom_call.1} parent=5 // pred_check_branch
        %414 = sbr.rel (%p411) target = $region56
      $region55: #{tpu_custom_call.1} parent=5 // pred_region
        %s415 = ssub.s32 %s22, 1
        %s416 = sand.u32 %s27, 1
        %s417 = scalar_lea.sflag [#allocation3], %s416
        %s418 = sand.u32 %s49, 1
        %s419 = smul.addr %s418, 128
        %s420 = scalar_lea.vmem [#allocation2], %s419
        // Predicated region
        $region57: #{tpu_custom_call.1} parent=55 // pred_check
          %p421 = pneg %p62
        $region58: #{tpu_custom_call.1} parent=55 // pred_check_branch
          %423 = sbr.rel (%p421) target = $region60
        $region59: #{tpu_custom_call.1} parent=55 // pred_region
          %425 = dma.done %s417, 2048
        $region60: #{tpu_custom_call.1} parent=55 // pred_fallthru
          _
        // Predicated region
        $region61: #{tpu_custom_call.1} parent=55 // pred_check
          %p426 = pneg %p83
        $region62: #{tpu_custom_call.1} parent=55 // pred_check_branch
          %428 = sbr.rel (%p426) target = $region64
        $region63: #{tpu_custom_call.1} parent=55 // pred_region
          %430 = dma.done [#allocation6], 2048
        $region64: #{tpu_custom_call.1} parent=55 // pred_fallthru
          _
        %s431 = sand.u32 %s27, 1
        %s432 = scalar_lea.sflag [#allocation3], %s431
        %s433 = sand.u32 %s122, 1
        %s434 = smul.addr %s433, 64
        %s435 = scalar_lea.vmem [#allocation7], %s434
        // Predicated region
        $region65: #{tpu_custom_call.1} parent=55 // pred_check
          %p436 = pneg %p135
        $region66: #{tpu_custom_call.1} parent=55 // pred_check_branch
          %438 = sbr.rel (%p436) target = $region68
        $region67: #{tpu_custom_call.1} parent=55 // pred_region
          %440 = dma.done %s432, 1024
        $region68: #{tpu_custom_call.1} parent=55 // pred_fallthru
          _
        %s441 = sand.u32 %s27, 1
        %s442 = scalar_lea.sflag [#allocation3], %s441
        %s443 = sand.u32 %s174, 1
        %s444 = smul.addr %s443, 128
        %s445 = scalar_lea.vmem [#allocation8], %s444
        // Predicated region
        $region69: #{tpu_custom_call.1} parent=55 // pred_check
          %p446 = pneg %p187
        $region70: #{tpu_custom_call.1} parent=55 // pred_check_branch
          %448 = sbr.rel (%p446) target = $region72
        $region71: #{tpu_custom_call.1} parent=55 // pred_region
          %450 = dma.done %s442, 2048
        $region72: #{tpu_custom_call.1} parent=55 // pred_fallthru
          _
        // Predicated region
        $region73: #{tpu_custom_call.1} parent=55 // pred_check
          %p451 = pneg %p229
        $region74: #{tpu_custom_call.1} parent=55 // pred_check_branch
          %453 = sbr.rel (%p451) target = $region76
        $region75: #{tpu_custom_call.1} parent=55 // pred_region
          %455 = dma.done [#allocation6], 2048
        $region76: #{tpu_custom_call.1} parent=55 // pred_fallthru
          _
        %s456 = sand.u32 %s27, 1
        %s457 = scalar_lea.sflag [#allocation3], %s456
        %s458 = sand.u32 %s49, 1
        %s459 = smul.addr %s458, 128
        %s460 = scalar_lea.vmem [#allocation2], %s459
        %p461 = pneg %p62
        %p462 = pneg %p59
        %p463 = pneg %p83
        %p464 = pneg %p80
        %p465 = scmp.lt.s32.totalorder %s32, 1
        %s466 = scalar_select %p465, %s32, 1
        %s467 = smul.addr %s466, 8
        %s468 = scalar_lea.vmem %s2, %s467
        %p469 = pneg %p109
        %p470 = pneg %p106
        %s471 = sand.u32 %s27, 1
        %s472 = scalar_lea.sflag [#allocation3], %s471
        %s473 = sand.u32 %s122, 1
        %s474 = smul.addr %s473, 64
        %s475 = scalar_lea.vmem [#allocation7], %s474
        %p476 = pneg %p135
        %p477 = pneg %p132
        %p478 = scmp.lt.s32.totalorder %s32, 1
        %s479 = scalar_select %p478, %s32, 1
        %s480 = smul.addr %s479, 8
        %s481 = scalar_lea.vmem %s4, %s480
        %p482 = pneg %p161
        %p483 = pneg %p158
        %s484 = sand.u32 %s27, 1
        %s485 = scalar_lea.sflag [#allocation3], %s484
        %s486 = sand.u32 %s174, 1
        %s487 = smul.addr %s486, 128
        %s488 = scalar_lea.vmem [#allocation8], %s487
        %p489 = pneg %p187
        %p490 = pneg %p184
        %p491 = pneg %p208
        %p492 = pneg %p205
        %p493 = pneg %p229
        %p494 = pneg %p226
        %p495 = pneg %p250
        %p496 = pneg %p247
        %p497 = pneg %p278
        %p498 = pneg %p275
        %s499 = sand.u32 %s265, 1
        %s500 = scalar_lea.sflag [#allocation4], %s499
        %s501 = sand.u32 %s265, 1
        %s502 = smul.addr %s501, 128
        %s503 = scalar_lea.vmem [#allocation10], %s502
        %s504 = smul.u32 16, %s32
        %p505 = scmp.lt.s32.totalorder %s32, 1
        %s506 = scalar_select %p505, %s32, 1
        %s507 = smul.addr %s506, 8
        %s508 = scalar_lea.vmem %s2, %s507
        %p509 = scmp.lt.s32.totalorder %s32, 1
        %s510 = scalar_select %p509, %s32, 1
        %s511 = smul.addr %s510, 8
        %s512 = scalar_lea.vmem %s4, %s511
        %s513 = smul.u32 16, %s32
        %v514 = vld [vmem:[%s420] sm:$0xff]
        %v515 = vld [vmem:[%s420 + $0x8] sm:$0xff]
        %v516 = vld [vmem:[%s420 + $0x10] sm:$0xff]
        %v517 = vld [vmem:[%s420 + $0x18] sm:$0xff]
        %v518 = vld [vmem:[%s420 + $0x20] sm:$0xff]
        %v519 = vld [vmem:[%s420 + $0x28] sm:$0xff]
        %v520 = vld [vmem:[%s420 + $0x30] sm:$0xff]
        %v521 = vld [vmem:[%s420 + $0x38] sm:$0xff]
        %v522 = vld [vmem:[%s420 + $0x40] sm:$0xff]
        %v523 = vld [vmem:[%s420 + $0x48] sm:$0xff]
        %v524 = vld [vmem:[%s420 + $0x50] sm:$0xff]
        %v525 = vld [vmem:[%s420 + $0x58] sm:$0xff]
        %v526 = vld [vmem:[%s420 + $0x60] sm:$0xff]
        %v527 = vld [vmem:[%s420 + $0x68] sm:$0xff]
        %v528 = vld [vmem:[%s420 + $0x70] sm:$0xff]
        %v529 = vld [vmem:[%s420 + $0x78] sm:$0xff]
        %v530 = vld [vmem:[#allocation5] sm:$0xff]
        %v531 = vld [vmem:[#allocation5 + $0x8] sm:$0xff]
        %v532 = vld [vmem:[#allocation5 + $0x10] sm:$0xff]
        %v533 = vld [vmem:[#allocation5 + $0x18] sm:$0xff]
        %v534 = vld [vmem:[#allocation5 + $0x20] sm:$0xff]
        %v535 = vld [vmem:[#allocation5 + $0x28] sm:$0xff]
        %v536 = vld [vmem:[#allocation5 + $0x30] sm:$0xff]
        %v537 = vld [vmem:[#allocation5 + $0x38] sm:$0xff]
        %v538 = vld [vmem:[#allocation5 + $0x40] sm:$0xff]
        %v539 = vld [vmem:[#allocation5 + $0x48] sm:$0xff]
        %v540 = vld [vmem:[#allocation5 + $0x50] sm:$0xff]
        %v541 = vld [vmem:[#allocation5 + $0x58] sm:$0xff]
        %v542 = vld [vmem:[#allocation5 + $0x60] sm:$0xff]
        %v543 = vld [vmem:[#allocation5 + $0x68] sm:$0xff]
        %v544 = vld [vmem:[#allocation5 + $0x70] sm:$0xff]
        %v545 = vld [vmem:[#allocation5 + $0x78] sm:$0xff]
        %v546 = vld [vmem:[%s508] sm:$0xff]
        %v547 = vld [vmem:[%s435] sm:$0xff]
        %v548 = vld [vmem:[%s435 + $0x8] sm:$0xff]
        %v549 = vld [vmem:[%s435 + $0x10] sm:$0xff]
        %v550 = vld [vmem:[%s435 + $0x18] sm:$0xff]
        %v551 = vld [vmem:[%s435 + $0x20] sm:$0xff]
        %v552 = vld [vmem:[%s435 + $0x28] sm:$0xff]
        %v553 = vld [vmem:[%s435 + $0x30] sm:$0xff]
        %v554 = vld [vmem:[%s435 + $0x38] sm:$0xff]
        %v555 = vld [vmem:[%s512] sm:$0xff]
        %v556 = vld [vmem:[%s445] sm:$0xff]
        %v557 = vld [vmem:[%s445 + $0x8] sm:$0xff]
        %v558 = vld [vmem:[%s445 + $0x10] sm:$0xff]
        %v559 = vld [vmem:[%s445 + $0x18] sm:$0xff]
        %v560 = vld [vmem:[%s445 + $0x20] sm:$0xff]
        %v561 = vld [vmem:[%s445 + $0x28] sm:$0xff]
        %v562 = vld [vmem:[%s445 + $0x30] sm:$0xff]
        %v563 = vld [vmem:[%s445 + $0x38] sm:$0xff]
        %v564 = vld [vmem:[%s445 + $0x40] sm:$0xff]
        %v565 = vld [vmem:[%s445 + $0x48] sm:$0xff]
        %v566 = vld [vmem:[%s445 + $0x50] sm:$0xff]
        %v567 = vld [vmem:[%s445 + $0x58] sm:$0xff]
        %v568 = vld [vmem:[%s445 + $0x60] sm:$0xff]
        %v569 = vld [vmem:[%s445 + $0x68] sm:$0xff]
        %v570 = vld [vmem:[%s445 + $0x70] sm:$0xff]
        %v571 = vld [vmem:[%s445 + $0x78] sm:$0xff]
        %vm572 = vcmask 64512
        %v574 = vsel %vm572, %v555, 0
        %576 = vmatpush.msra.mxu0 0.0
        %577 = vmatpush.msra.mxu0 0.0
        %578 = vmatpush.msra.mxu0 0.0
        %579 = vmatpush.msra.mxu0 0.0
        %580 = vmatpush.msra.mxu0 0.0
        %581 = vmatpush.msra.mxu0 0.0
        %582 = vmatpush.msra.mxu0 0.0
        %583 = vmatpush.msra.mxu0 0.0
        %584 = vmatpush.msra.mxu0 0.0
        %585 = vmatpush.msra.mxu0 0.0
        %586 = vmatpush.msra.mxu0 0.0
        %587 = vmatpush.msra.mxu0 0.0
        %588 = vmatpush.msra.mxu0 0.0
        %589 = vmatpush.msra.mxu0 0.0
        %590 = vmatpush.msra.mxu0 0.0
        %591 = vmatpush.msra.mxu0 %v556
        %592 = vmatmul.f32.gmra.mxu0 %v574
        %v593 = vpop.f32.mrf.mxu0
        %v594 = vadd.f32 0.0, %v593
        %595 = vdwg.mxu0
        %596 = vmatpush.msra.mxu0 0.0
        %597 = vmatpush.msra.mxu0 0.0
        %598 = vmatpush.msra.mxu0 0.0
        %599 = vmatpush.msra.mxu0 0.0
        %600 = vmatpush.msra.mxu0 0.0
        %601 = vmatpush.msra.mxu0 0.0
        %602 = vmatpush.msra.mxu0 0.0
        %603 = vmatpush.msra.mxu0 0.0
        %604 = vmatpush.msra.mxu0 0.0
        %605 = vmatpush.msra.mxu0 0.0
        %606 = vmatpush.msra.mxu0 0.0
        %607 = vmatpush.msra.mxu0 0.0
        %608 = vmatpush.msra.mxu0 0.0
        %609 = vmatpush.msra.mxu0 0.0
        %610 = vmatpush.msra.mxu0 0.0
        %611 = vmatpush.msra.mxu0 %v557
        %612 = vmatmul.f32.gmra.mxu0 %v574
        %v613 = vpop.f32.mrf.mxu0
        %v614 = vadd.f32 0.0, %v613
        %615 = vdwg.mxu0
        %616 = vmatpush.msra.mxu0 0.0
        %617 = vmatpush.msra.mxu0 0.0
        %618 = vmatpush.msra.mxu0 0.0
        %619 = vmatpush.msra.mxu0 0.0
        %620 = vmatpush.msra.mxu0 0.0
        %621 = vmatpush.msra.mxu0 0.0
        %622 = vmatpush.msra.mxu0 0.0
        %623 = vmatpush.msra.mxu0 0.0
        %624 = vmatpush.msra.mxu0 0.0
        %625 = vmatpush.msra.mxu0 0.0
        %626 = vmatpush.msra.mxu0 0.0
        %627 = vmatpush.msra.mxu0 0.0
        %628 = vmatpush.msra.mxu0 0.0
        %629 = vmatpush.msra.mxu0 0.0
        %630 = vmatpush.msra.mxu0 0.0
        %631 = vmatpush.msra.mxu0 %v558
        %632 = vmatmul.f32.gmra.mxu0 %v574
        %v633 = vpop.f32.mrf.mxu0
        %v634 = vadd.f32 0.0, %v633
        %635 = vdwg.mxu0
        %636 = vmatpush.msra.mxu0 0.0
        %637 = vmatpush.msra.mxu0 0.0
        %638 = vmatpush.msra.mxu0 0.0
        %639 = vmatpush.msra.mxu0 0.0
        %640 = vmatpush.msra.mxu0 0.0
        %641 = vmatpush.msra.mxu0 0.0
        %642 = vmatpush.msra.mxu0 0.0
        %643 = vmatpush.msra.mxu0 0.0
        %644 = vmatpush.msra.mxu0 0.0
        %645 = vmatpush.msra.mxu0 0.0
        %646 = vmatpush.msra.mxu0 0.0
        %647 = vmatpush.msra.mxu0 0.0
        %648 = vmatpush.msra.mxu0 0.0
        %649 = vmatpush.msra.mxu0 0.0
        %650 = vmatpush.msra.mxu0 0.0
        %651 = vmatpush.msra.mxu0 %v559
        %652 = vmatmul.f32.gmra.mxu0 %v574
        %v653 = vpop.f32.mrf.mxu0
        %v654 = vadd.f32 0.0, %v653
        %655 = vdwg.mxu0
        %656 = vmatpush.msra.mxu0 0.0
        %657 = vmatpush.msra.mxu0 0.0
        %658 = vmatpush.msra.mxu0 0.0
        %659 = vmatpush.msra.mxu0 0.0
        %660 = vmatpush.msra.mxu0 0.0
        %661 = vmatpush.msra.mxu0 0.0
        %662 = vmatpush.msra.mxu0 0.0
        %663 = vmatpush.msra.mxu0 0.0
        %664 = vmatpush.msra.mxu0 0.0
        %665 = vmatpush.msra.mxu0 0.0
        %666 = vmatpush.msra.mxu0 0.0
        %667 = vmatpush.msra.mxu0 0.0
        %668 = vmatpush.msra.mxu0 0.0
        %669 = vmatpush.msra.mxu0 0.0
        %670 = vmatpush.msra.mxu0 0.0
        %671 = vmatpush.msra.mxu0 %v560
        %672 = vmatmul.f32.gmra.mxu0 %v574
        %v673 = vpop.f32.mrf.mxu0
        %v674 = vadd.f32 0.0, %v673
        %675 = vdwg.mxu0
        %676 = vmatpush.msra.mxu0 0.0
        %677 = vmatpush.msra.mxu0 0.0
        %678 = vmatpush.msra.mxu0 0.0
        %679 = vmatpush.msra.mxu0 0.0
        %680 = vmatpush.msra.mxu0 0.0
        %681 = vmatpush.msra.mxu0 0.0
        %682 = vmatpush.msra.mxu0 0.0
        %683 = vmatpush.msra.mxu0 0.0
        %684 = vmatpush.msra.mxu0 0.0
        %685 = vmatpush.msra.mxu0 0.0
        %686 = vmatpush.msra.mxu0 0.0
        %687 = vmatpush.msra.mxu0 0.0
        %688 = vmatpush.msra.mxu0 0.0
        %689 = vmatpush.msra.mxu0 0.0
        %690 = vmatpush.msra.mxu0 0.0
        %691 = vmatpush.msra.mxu0 %v561
        %692 = vmatmul.f32.gmra.mxu0 %v574
        %v693 = vpop.f32.mrf.mxu0
        %v694 = vadd.f32 0.0, %v693
        %695 = vdwg.mxu0
        %696 = vmatpush.msra.mxu0 0.0
        %697 = vmatpush.msra.mxu0 0.0
        %698 = vmatpush.msra.mxu0 0.0
        %699 = vmatpush.msra.mxu0 0.0
        %700 = vmatpush.msra.mxu0 0.0
        %701 = vmatpush.msra.mxu0 0.0
        %702 = vmatpush.msra.mxu0 0.0
        %703 = vmatpush.msra.mxu0 0.0
        %704 = vmatpush.msra.mxu0 0.0
        %705 = vmatpush.msra.mxu0 0.0
        %706 = vmatpush.msra.mxu0 0.0
        %707 = vmatpush.msra.mxu0 0.0
        %708 = vmatpush.msra.mxu0 0.0
        %709 = vmatpush.msra.mxu0 0.0
        %710 = vmatpush.msra.mxu0 0.0
        %711 = vmatpush.msra.mxu0 %v562
        %712 = vmatmul.f32.gmra.mxu0 %v574
        %v713 = vpop.f32.mrf.mxu0
        %v714 = vadd.f32 0.0, %v713
        %715 = vdwg.mxu0
        %716 = vmatpush.msra.mxu0 0.0
        %717 = vmatpush.msra.mxu0 0.0
        %718 = vmatpush.msra.mxu0 0.0
        %719 = vmatpush.msra.mxu0 0.0
        %720 = vmatpush.msra.mxu0 0.0
        %721 = vmatpush.msra.mxu0 0.0
        %722 = vmatpush.msra.mxu0 0.0
        %723 = vmatpush.msra.mxu0 0.0
        %724 = vmatpush.msra.mxu0 0.0
        %725 = vmatpush.msra.mxu0 0.0
        %726 = vmatpush.msra.mxu0 0.0
        %727 = vmatpush.msra.mxu0 0.0
        %728 = vmatpush.msra.mxu0 0.0
        %729 = vmatpush.msra.mxu0 0.0
        %730 = vmatpush.msra.mxu0 0.0
        %731 = vmatpush.msra.mxu0 %v563
        %732 = vmatmul.f32.gmra.mxu0 %v574
        %v733 = vpop.f32.mrf.mxu0
        %v734 = vadd.f32 0.0, %v733
        %735 = vdwg.mxu0
        %736 = vmatpush.msra.mxu0 0.0
        %737 = vmatpush.msra.mxu0 0.0
        %738 = vmatpush.msra.mxu0 0.0
        %739 = vmatpush.msra.mxu0 0.0
        %740 = vmatpush.msra.mxu0 0.0
        %741 = vmatpush.msra.mxu0 0.0
        %742 = vmatpush.msra.mxu0 0.0
        %743 = vmatpush.msra.mxu0 0.0
        %744 = vmatpush.msra.mxu0 0.0
        %745 = vmatpush.msra.mxu0 0.0
        %746 = vmatpush.msra.mxu0 0.0
        %747 = vmatpush.msra.mxu0 0.0
        %748 = vmatpush.msra.mxu0 0.0
        %749 = vmatpush.msra.mxu0 0.0
        %750 = vmatpush.msra.mxu0 0.0
        %751 = vmatpush.msra.mxu0 %v564
        %752 = vmatmul.f32.gmra.mxu0 %v574
        %v753 = vpop.f32.mrf.mxu0
        %v754 = vadd.f32 0.0, %v753
        %755 = vdwg.mxu0
        %756 = vmatpush.msra.mxu0 0.0
        %757 = vmatpush.msra.mxu0 0.0
        %758 = vmatpush.msra.mxu0 0.0
        %759 = vmatpush.msra.mxu0 0.0
        %760 = vmatpush.msra.mxu0 0.0
        %761 = vmatpush.msra.mxu0 0.0
        %762 = vmatpush.msra.mxu0 0.0
        %763 = vmatpush.msra.mxu0 0.0
        %764 = vmatpush.msra.mxu0 0.0
        %765 = vmatpush.msra.mxu0 0.0
        %766 = vmatpush.msra.mxu0 0.0
        %767 = vmatpush.msra.mxu0 0.0
        %768 = vmatpush.msra.mxu0 0.0
        %769 = vmatpush.msra.mxu0 0.0
        %770 = vmatpush.msra.mxu0 0.0
        %771 = vmatpush.msra.mxu0 %v565
        %772 = vmatmul.f32.gmra.mxu0 %v574
        %v773 = vpop.f32.mrf.mxu0
        %v774 = vadd.f32 0.0, %v773
        %775 = vdwg.mxu0
        %776 = vmatpush.msra.mxu0 0.0
        %777 = vmatpush.msra.mxu0 0.0
        %778 = vmatpush.msra.mxu0 0.0
        %779 = vmatpush.msra.mxu0 0.0
        %780 = vmatpush.msra.mxu0 0.0
        %781 = vmatpush.msra.mxu0 0.0
        %782 = vmatpush.msra.mxu0 0.0
        %783 = vmatpush.msra.mxu0 0.0
        %784 = vmatpush.msra.mxu0 0.0
        %785 = vmatpush.msra.mxu0 0.0
        %786 = vmatpush.msra.mxu0 0.0
        %787 = vmatpush.msra.mxu0 0.0
        %788 = vmatpush.msra.mxu0 0.0
        %789 = vmatpush.msra.mxu0 0.0
        %790 = vmatpush.msra.mxu0 0.0
        %791 = vmatpush.msra.mxu0 %v566
        %792 = vmatmul.f32.gmra.mxu0 %v574
        %v793 = vpop.f32.mrf.mxu0
        %v794 = vadd.f32 0.0, %v793
        %795 = vdwg.mxu0
        %796 = vmatpush.msra.mxu0 0.0
        %797 = vmatpush.msra.mxu0 0.0
        %798 = vmatpush.msra.mxu0 0.0
        %799 = vmatpush.msra.mxu0 0.0
        %800 = vmatpush.msra.mxu0 0.0
        %801 = vmatpush.msra.mxu0 0.0
        %802 = vmatpush.msra.mxu0 0.0
        %803 = vmatpush.msra.mxu0 0.0
        %804 = vmatpush.msra.mxu0 0.0
        %805 = vmatpush.msra.mxu0 0.0
        %806 = vmatpush.msra.mxu0 0.0
        %807 = vmatpush.msra.mxu0 0.0
        %808 = vmatpush.msra.mxu0 0.0
        %809 = vmatpush.msra.mxu0 0.0
        %810 = vmatpush.msra.mxu0 0.0
        %811 = vmatpush.msra.mxu0 %v567
        %812 = vmatmul.f32.gmra.mxu0 %v574
        %v813 = vpop.f32.mrf.mxu0
        %v814 = vadd.f32 0.0, %v813
        %815 = vdwg.mxu0
        %816 = vmatpush.msra.mxu0 0.0
        %817 = vmatpush.msra.mxu0 0.0
        %818 = vmatpush.msra.mxu0 0.0
        %819 = vmatpush.msra.mxu0 0.0
        %820 = vmatpush.msra.mxu0 0.0
        %821 = vmatpush.msra.mxu0 0.0
        %822 = vmatpush.msra.mxu0 0.0
        %823 = vmatpush.msra.mxu0 0.0
        %824 = vmatpush.msra.mxu0 0.0
        %825 = vmatpush.msra.mxu0 0.0
        %826 = vmatpush.msra.mxu0 0.0
        %827 = vmatpush.msra.mxu0 0.0
        %828 = vmatpush.msra.mxu0 0.0
        %829 = vmatpush.msra.mxu0 0.0
        %830 = vmatpush.msra.mxu0 0.0
        %831 = vmatpush.msra.mxu0 %v568
        %832 = vmatmul.f32.gmra.mxu0 %v574
        %v833 = vpop.f32.mrf.mxu0
        %v834 = vadd.f32 0.0, %v833
        %835 = vdwg.mxu0
        %836 = vmatpush.msra.mxu0 0.0
        %837 = vmatpush.msra.mxu0 0.0
        %838 = vmatpush.msra.mxu0 0.0
        %839 = vmatpush.msra.mxu0 0.0
        %840 = vmatpush.msra.mxu0 0.0
        %841 = vmatpush.msra.mxu0 0.0
        %842 = vmatpush.msra.mxu0 0.0
        %843 = vmatpush.msra.mxu0 0.0
        %844 = vmatpush.msra.mxu0 0.0
        %845 = vmatpush.msra.mxu0 0.0
        %846 = vmatpush.msra.mxu0 0.0
        %847 = vmatpush.msra.mxu0 0.0
        %848 = vmatpush.msra.mxu0 0.0
        %849 = vmatpush.msra.mxu0 0.0
        %850 = vmatpush.msra.mxu0 0.0
        %851 = vmatpush.msra.mxu0 %v569
        %852 = vmatmul.f32.gmra.mxu0 %v574
        %v853 = vpop.f32.mrf.mxu0
        %v854 = vadd.f32 0.0, %v853
        %855 = vdwg.mxu0
        %856 = vmatpush.msra.mxu0 0.0
        %857 = vmatpush.msra.mxu0 0.0
        %858 = vmatpush.msra.mxu0 0.0
        %859 = vmatpush.msra.mxu0 0.0
        %860 = vmatpush.msra.mxu0 0.0
        %861 = vmatpush.msra.mxu0 0.0
        %862 = vmatpush.msra.mxu0 0.0
        %863 = vmatpush.msra.mxu0 0.0
        %864 = vmatpush.msra.mxu0 0.0
        %865 = vmatpush.msra.mxu0 0.0
        %866 = vmatpush.msra.mxu0 0.0
        %867 = vmatpush.msra.mxu0 0.0
        %868 = vmatpush.msra.mxu0 0.0
        %869 = vmatpush.msra.mxu0 0.0
        %870 = vmatpush.msra.mxu0 0.0
        %871 = vmatpush.msra.mxu0 %v570
        %872 = vmatmul.f32.gmra.mxu0 %v574
        %v873 = vpop.f32.mrf.mxu0
        %v874 = vadd.f32 0.0, %v873
        %875 = vdwg.mxu0
        %876 = vmatpush.msra.mxu0 0.0
        %877 = vmatpush.msra.mxu0 0.0
        %878 = vmatpush.msra.mxu0 0.0
        %879 = vmatpush.msra.mxu0 0.0
        %880 = vmatpush.msra.mxu0 0.0
        %881 = vmatpush.msra.mxu0 0.0
        %882 = vmatpush.msra.mxu0 0.0
        %883 = vmatpush.msra.mxu0 0.0
        %884 = vmatpush.msra.mxu0 0.0
        %885 = vmatpush.msra.mxu0 0.0
        %886 = vmatpush.msra.mxu0 0.0
        %887 = vmatpush.msra.mxu0 0.0
        %888 = vmatpush.msra.mxu0 0.0
        %889 = vmatpush.msra.mxu0 0.0
        %890 = vmatpush.msra.mxu0 0.0
        %891 = vmatpush.msra.mxu0 %v571
        %892 = vmatmul.f32.gmra.mxu0 %v574
        %v893 = vpop.f32.mrf.mxu0
        %v894 = vadd.f32 0.0, %v893
        %895 = vdwg.mxu0
        %904 = vst [vmem:[#allocation1] ss:$2 sm:$0xff] %v547
        %s905 = scalar_lea.vmem [#allocation1], 16
        %906 = vst [vmem:[%s905] ss:$2 sm:$0xff] %v548
        %s907 = scalar_lea.vmem [#allocation1], 32
        %908 = vst [vmem:[%s907] ss:$2 sm:$0xff] %v549
        %s909 = scalar_lea.vmem [#allocation1], 48
        %910 = vst [vmem:[%s909] ss:$2 sm:$0xff] %v550
        %v911 = vld.sshfl [vmem:[#allocation1] sm:$0xff pattern:$0x75316420]
        %v912 = vld.sshfl [vmem:[#allocation1 + $0x8] sm:$0xff pattern:$0x75316420]
        %v913 = vld.sshfl [vmem:[#allocation1 + $0x10] sm:$0xff pattern:$0x75316420]
        %v914 = vld.sshfl [vmem:[#allocation1 + $0x18] sm:$0xff pattern:$0x75316420]
        %v915 = vld.sshfl [vmem:[#allocation1 + $0x20] sm:$0xff pattern:$0x75316420]
        %v916 = vld.sshfl [vmem:[#allocation1 + $0x28] sm:$0xff pattern:$0x75316420]
        %v917 = vld.sshfl [vmem:[#allocation1 + $0x30] sm:$0xff pattern:$0x75316420]
        %v918 = vld.sshfl [vmem:[#allocation1 + $0x38] sm:$0xff pattern:$0x75316420]
        %919 = vst [vmem:[#allocation1] ss:$2 sm:$0xff] %v551
        %920 = vst [vmem:[%s905] ss:$2 sm:$0xff] %v552
        %921 = vst [vmem:[%s907] ss:$2 sm:$0xff] %v553
        %922 = vst [vmem:[%s909] ss:$2 sm:$0xff] %v554
        %v923 = vld.sshfl [vmem:[#allocation1] sm:$0xff pattern:$0x75316420]
        %v924 = vld.sshfl [vmem:[#allocation1 + $0x8] sm:$0xff pattern:$0x75316420]
        %v925 = vld.sshfl [vmem:[#allocation1 + $0x10] sm:$0xff pattern:$0x75316420]
        %v926 = vld.sshfl [vmem:[#allocation1 + $0x18] sm:$0xff pattern:$0x75316420]
        %v927 = vld.sshfl [vmem:[#allocation1 + $0x20] sm:$0xff pattern:$0x75316420]
        %v928 = vld.sshfl [vmem:[#allocation1 + $0x28] sm:$0xff pattern:$0x75316420]
        %v929 = vld.sshfl [vmem:[#allocation1 + $0x30] sm:$0xff pattern:$0x75316420]
        %v930 = vld.sshfl [vmem:[#allocation1 + $0x38] sm:$0xff pattern:$0x75316420]
        %vm931 = vcmask 31744
        %v933 = vsel %vm931, %v546, 0
        %vm935 = vcmask 1043456
        %v936 = vsel %vm935, %v911, 0
        %v938 = vsel %vm935, %v912, 0
        %v940 = vsel %vm935, %v913, 0
        %v942 = vsel %vm935, %v914, 0
        %v944 = vsel %vm935, %v915, 0
        %v946 = vsel %vm935, %v916, 0
        %v948 = vsel %vm935, %v917, 0
        %v950 = vsel %vm935, %v918, 0
        %v952 = vsel %vm935, %v923, 0
        %v954 = vsel %vm935, %v924, 0
        %v956 = vsel %vm935, %v925, 0
        %v958 = vsel %vm935, %v926, 0
        %v960 = vsel %vm935, %v927, 0
        %v962 = vsel %vm935, %v928, 0
        %v964 = vsel %vm935, %v929, 0
        %v966 = vsel %vm935, %v930, 0
        %968 = vmatpush.msra.mxu0 0.0
        %969 = vmatpush.msra.mxu0 0.0
        %970 = vmatpush.msra.mxu0 0.0
        %971 = vmatpush.msra.mxu0 0.0
        %972 = vmatpush.msra.mxu0 0.0
        %973 = vmatpush.msra.mxu0 0.0
        %974 = vmatpush.msra.mxu0 0.0
        %975 = vmatpush.msra.mxu0 0.0
        %976 = vmatpush.msra.mxu0 0.0
        %977 = vmatpush.msra.mxu0 0.0
        %978 = vmatpush.msra.mxu0 0.0
        %979 = vmatpush.msra.mxu0 0.0
        %980 = vmatpush.msra.mxu0 0.0
        %981 = vmatpush.msra.mxu0 0.0
        %982 = vmatpush.msra.mxu0 0.0
        %983 = vmatpush.msra.mxu0 %v936
        %984 = vmatmul.f32.gmra.mxu0 %v933
        %v985 = vpop.f32.mrf.mxu0
        %v986 = vadd.f32 %v594, %v985
        %987 = vdwg.mxu0
        %988 = vmatpush.msra.mxu0 0.0
        %989 = vmatpush.msra.mxu0 0.0
        %990 = vmatpush.msra.mxu0 0.0
        %991 = vmatpush.msra.mxu0 0.0
        %992 = vmatpush.msra.mxu0 0.0
        %993 = vmatpush.msra.mxu0 0.0
        %994 = vmatpush.msra.mxu0 0.0
        %995 = vmatpush.msra.mxu0 0.0
        %996 = vmatpush.msra.mxu0 0.0
        %997 = vmatpush.msra.mxu0 0.0
        %998 = vmatpush.msra.mxu0 0.0
        %999 = vmatpush.msra.mxu0 0.0
        %1000 = vmatpush.msra.mxu0 0.0
        %1001 = vmatpush.msra.mxu0 0.0
        %1002 = vmatpush.msra.mxu0 0.0
        %1003 = vmatpush.msra.mxu0 %v938
        %1004 = vmatmul.f32.gmra.mxu0 %v933
        %v1005 = vpop.f32.mrf.mxu0
        %v1006 = vadd.f32 %v614, %v1005
        %1007 = vdwg.mxu0
        %1008 = vmatpush.msra.mxu0 0.0
        %1009 = vmatpush.msra.mxu0 0.0
        %1010 = vmatpush.msra.mxu0 0.0
        %1011 = vmatpush.msra.mxu0 0.0
        %1012 = vmatpush.msra.mxu0 0.0
        %1013 = vmatpush.msra.mxu0 0.0
        %1014 = vmatpush.msra.mxu0 0.0
        %1015 = vmatpush.msra.mxu0 0.0
        %1016 = vmatpush.msra.mxu0 0.0
        %1017 = vmatpush.msra.mxu0 0.0
        %1018 = vmatpush.msra.mxu0 0.0
        %1019 = vmatpush.msra.mxu0 0.0
        %1020 = vmatpush.msra.mxu0 0.0
        %1021 = vmatpush.msra.mxu0 0.0
        %1022 = vmatpush.msra.mxu0 0.0
        %1023 = vmatpush.msra.mxu0 %v940
        %1024 = vmatmul.f32.gmra.mxu0 %v933
        %v1025 = vpop.f32.mrf.mxu0
        %v1026 = vadd.f32 %v634, %v1025
        %1027 = vdwg.mxu0
        %1028 = vmatpush.msra.mxu0 0.0
        %1029 = vmatpush.msra.mxu0 0.0
        %1030 = vmatpush.msra.mxu0 0.0
        %1031 = vmatpush.msra.mxu0 0.0
        %1032 = vmatpush.msra.mxu0 0.0
        %1033 = vmatpush.msra.mxu0 0.0
        %1034 = vmatpush.msra.mxu0 0.0
        %1035 = vmatpush.msra.mxu0 0.0
        %1036 = vmatpush.msra.mxu0 0.0
        %1037 = vmatpush.msra.mxu0 0.0
        %1038 = vmatpush.msra.mxu0 0.0
        %1039 = vmatpush.msra.mxu0 0.0
        %1040 = vmatpush.msra.mxu0 0.0
        %1041 = vmatpush.msra.mxu0 0.0
        %1042 = vmatpush.msra.mxu0 0.0
        %1043 = vmatpush.msra.mxu0 %v942
        %1044 = vmatmul.f32.gmra.mxu0 %v933
        %v1045 = vpop.f32.mrf.mxu0
        %v1046 = vadd.f32 %v654, %v1045
        %1047 = vdwg.mxu0
        %1048 = vmatpush.msra.mxu0 0.0
        %1049 = vmatpush.msra.mxu0 0.0
        %1050 = vmatpush.msra.mxu0 0.0
        %1051 = vmatpush.msra.mxu0 0.0
        %1052 = vmatpush.msra.mxu0 0.0
        %1053 = vmatpush.msra.mxu0 0.0
        %1054 = vmatpush.msra.mxu0 0.0
        %1055 = vmatpush.msra.mxu0 0.0
        %1056 = vmatpush.msra.mxu0 0.0
        %1057 = vmatpush.msra.mxu0 0.0
        %1058 = vmatpush.msra.mxu0 0.0
        %1059 = vmatpush.msra.mxu0 0.0
        %1060 = vmatpush.msra.mxu0 0.0
        %1061 = vmatpush.msra.mxu0 0.0
        %1062 = vmatpush.msra.mxu0 0.0
        %1063 = vmatpush.msra.mxu0 %v944
        %1064 = vmatmul.f32.gmra.mxu0 %v933
        %v1065 = vpop.f32.mrf.mxu0
        %v1066 = vadd.f32 %v674, %v1065
        %1067 = vdwg.mxu0
        %1068 = vmatpush.msra.mxu0 0.0
        %1069 = vmatpush.msra.mxu0 0.0
        %1070 = vmatpush.msra.mxu0 0.0
        %1071 = vmatpush.msra.mxu0 0.0
        %1072 = vmatpush.msra.mxu0 0.0
        %1073 = vmatpush.msra.mxu0 0.0
        %1074 = vmatpush.msra.mxu0 0.0
        %1075 = vmatpush.msra.mxu0 0.0
        %1076 = vmatpush.msra.mxu0 0.0
        %1077 = vmatpush.msra.mxu0 0.0
        %1078 = vmatpush.msra.mxu0 0.0
        %1079 = vmatpush.msra.mxu0 0.0
        %1080 = vmatpush.msra.mxu0 0.0
        %1081 = vmatpush.msra.mxu0 0.0
        %1082 = vmatpush.msra.mxu0 0.0
        %1083 = vmatpush.msra.mxu0 %v946
        %1084 = vmatmul.f32.gmra.mxu0 %v933
        %v1085 = vpop.f32.mrf.mxu0
        %v1086 = vadd.f32 %v694, %v1085
        %1087 = vdwg.mxu0
        %1088 = vmatpush.msra.mxu0 0.0
        %1089 = vmatpush.msra.mxu0 0.0
        %1090 = vmatpush.msra.mxu0 0.0
        %1091 = vmatpush.msra.mxu0 0.0
        %1092 = vmatpush.msra.mxu0 0.0
        %1093 = vmatpush.msra.mxu0 0.0
        %1094 = vmatpush.msra.mxu0 0.0
        %1095 = vmatpush.msra.mxu0 0.0
        %1096 = vmatpush.msra.mxu0 0.0
        %1097 = vmatpush.msra.mxu0 0.0
        %1098 = vmatpush.msra.mxu0 0.0
        %1099 = vmatpush.msra.mxu0 0.0
        %1100 = vmatpush.msra.mxu0 0.0
        %1101 = vmatpush.msra.mxu0 0.0
        %1102 = vmatpush.msra.mxu0 0.0
        %1103 = vmatpush.msra.mxu0 %v948
        %1104 = vmatmul.f32.gmra.mxu0 %v933
        %v1105 = vpop.f32.mrf.mxu0
        %v1106 = vadd.f32 %v714, %v1105
        %1107 = vdwg.mxu0
        %1108 = vmatpush.msra.mxu0 0.0
        %1109 = vmatpush.msra.mxu0 0.0
        %1110 = vmatpush.msra.mxu0 0.0
        %1111 = vmatpush.msra.mxu0 0.0
        %1112 = vmatpush.msra.mxu0 0.0
        %1113 = vmatpush.msra.mxu0 0.0
        %1114 = vmatpush.msra.mxu0 0.0
        %1115 = vmatpush.msra.mxu0 0.0
        %1116 = vmatpush.msra.mxu0 0.0
        %1117 = vmatpush.msra.mxu0 0.0
        %1118 = vmatpush.msra.mxu0 0.0
        %1119 = vmatpush.msra.mxu0 0.0
        %1120 = vmatpush.msra.mxu0 0.0
        %1121 = vmatpush.msra.mxu0 0.0
        %1122 = vmatpush.msra.mxu0 0.0
        %1123 = vmatpush.msra.mxu0 %v950
        %1124 = vmatmul.f32.gmra.mxu0 %v933
        %v1125 = vpop.f32.mrf.mxu0
        %v1126 = vadd.f32 %v734, %v1125
        %1127 = vdwg.mxu0
        %1128 = vmatpush.msra.mxu0 0.0
        %1129 = vmatpush.msra.mxu0 0.0
        %1130 = vmatpush.msra.mxu0 0.0
        %1131 = vmatpush.msra.mxu0 0.0
        %1132 = vmatpush.msra.mxu0 0.0
        %1133 = vmatpush.msra.mxu0 0.0
        %1134 = vmatpush.msra.mxu0 0.0
        %1135 = vmatpush.msra.mxu0 0.0
        %1136 = vmatpush.msra.mxu0 0.0
        %1137 = vmatpush.msra.mxu0 0.0
        %1138 = vmatpush.msra.mxu0 0.0
        %1139 = vmatpush.msra.mxu0 0.0
        %1140 = vmatpush.msra.mxu0 0.0
        %1141 = vmatpush.msra.mxu0 0.0
        %1142 = vmatpush.msra.mxu0 0.0
        %1143 = vmatpush.msra.mxu0 %v952
        %1144 = vmatmul.f32.gmra.mxu0 %v933
        %v1145 = vpop.f32.mrf.mxu0
        %v1146 = vadd.f32 %v754, %v1145
        %1147 = vdwg.mxu0
        %1148 = vmatpush.msra.mxu0 0.0
        %1149 = vmatpush.msra.mxu0 0.0
        %1150 = vmatpush.msra.mxu0 0.0
        %1151 = vmatpush.msra.mxu0 0.0
        %1152 = vmatpush.msra.mxu0 0.0
        %1153 = vmatpush.msra.mxu0 0.0
        %1154 = vmatpush.msra.mxu0 0.0
        %1155 = vmatpush.msra.mxu0 0.0
        %1156 = vmatpush.msra.mxu0 0.0
        %1157 = vmatpush.msra.mxu0 0.0
        %1158 = vmatpush.msra.mxu0 0.0
        %1159 = vmatpush.msra.mxu0 0.0
        %1160 = vmatpush.msra.mxu0 0.0
        %1161 = vmatpush.msra.mxu0 0.0
        %1162 = vmatpush.msra.mxu0 0.0
        %1163 = vmatpush.msra.mxu0 %v954
        %1164 = vmatmul.f32.gmra.mxu0 %v933
        %v1165 = vpop.f32.mrf.mxu0
        %v1166 = vadd.f32 %v774, %v1165
        %1167 = vdwg.mxu0
        %1168 = vmatpush.msra.mxu0 0.0
        %1169 = vmatpush.msra.mxu0 0.0
        %1170 = vmatpush.msra.mxu0 0.0
        %1171 = vmatpush.msra.mxu0 0.0
        %1172 = vmatpush.msra.mxu0 0.0
        %1173 = vmatpush.msra.mxu0 0.0
        %1174 = vmatpush.msra.mxu0 0.0
        %1175 = vmatpush.msra.mxu0 0.0
        %1176 = vmatpush.msra.mxu0 0.0
        %1177 = vmatpush.msra.mxu0 0.0
        %1178 = vmatpush.msra.mxu0 0.0
        %1179 = vmatpush.msra.mxu0 0.0
        %1180 = vmatpush.msra.mxu0 0.0
        %1181 = vmatpush.msra.mxu0 0.0
        %1182 = vmatpush.msra.mxu0 0.0
        %1183 = vmatpush.msra.mxu0 %v956
        %1184 = vmatmul.f32.gmra.mxu0 %v933
        %v1185 = vpop.f32.mrf.mxu0
        %v1186 = vadd.f32 %v794, %v1185
        %1187 = vdwg.mxu0
        %1188 = vmatpush.msra.mxu0 0.0
        %1189 = vmatpush.msra.mxu0 0.0
        %1190 = vmatpush.msra.mxu0 0.0
        %1191 = vmatpush.msra.mxu0 0.0
        %1192 = vmatpush.msra.mxu0 0.0
        %1193 = vmatpush.msra.mxu0 0.0
        %1194 = vmatpush.msra.mxu0 0.0
        %1195 = vmatpush.msra.mxu0 0.0
        %1196 = vmatpush.msra.mxu0 0.0
        %1197 = vmatpush.msra.mxu0 0.0
        %1198 = vmatpush.msra.mxu0 0.0
        %1199 = vmatpush.msra.mxu0 0.0
        %1200 = vmatpush.msra.mxu0 0.0
        %1201 = vmatpush.msra.mxu0 0.0
        %1202 = vmatpush.msra.mxu0 0.0
        %1203 = vmatpush.msra.mxu0 %v958
        %1204 = vmatmul.f32.gmra.mxu0 %v933
        %v1205 = vpop.f32.mrf.mxu0
        %v1206 = vadd.f32 %v814, %v1205
        %1207 = vdwg.mxu0
        %1208 = vmatpush.msra.mxu0 0.0
        %1209 = vmatpush.msra.mxu0 0.0
        %1210 = vmatpush.msra.mxu0 0.0
        %1211 = vmatpush.msra.mxu0 0.0
        %1212 = vmatpush.msra.mxu0 0.0
        %1213 = vmatpush.msra.mxu0 0.0
        %1214 = vmatpush.msra.mxu0 0.0
        %1215 = vmatpush.msra.mxu0 0.0
        %1216 = vmatpush.msra.mxu0 0.0
        %1217 = vmatpush.msra.mxu0 0.0
        %1218 = vmatpush.msra.mxu0 0.0
        %1219 = vmatpush.msra.mxu0 0.0
        %1220 = vmatpush.msra.mxu0 0.0
        %1221 = vmatpush.msra.mxu0 0.0
        %1222 = vmatpush.msra.mxu0 0.0
        %1223 = vmatpush.msra.mxu0 %v960
        %1224 = vmatmul.f32.gmra.mxu0 %v933
        %v1225 = vpop.f32.mrf.mxu0
        %v1226 = vadd.f32 %v834, %v1225
        %1227 = vdwg.mxu0
        %1228 = vmatpush.msra.mxu0 0.0
        %1229 = vmatpush.msra.mxu0 0.0
        %1230 = vmatpush.msra.mxu0 0.0
        %1231 = vmatpush.msra.mxu0 0.0
        %1232 = vmatpush.msra.mxu0 0.0
        %1233 = vmatpush.msra.mxu0 0.0
        %1234 = vmatpush.msra.mxu0 0.0
        %1235 = vmatpush.msra.mxu0 0.0
        %1236 = vmatpush.msra.mxu0 0.0
        %1237 = vmatpush.msra.mxu0 0.0
        %1238 = vmatpush.msra.mxu0 0.0
        %1239 = vmatpush.msra.mxu0 0.0
        %1240 = vmatpush.msra.mxu0 0.0
        %1241 = vmatpush.msra.mxu0 0.0
        %1242 = vmatpush.msra.mxu0 0.0
        %1243 = vmatpush.msra.mxu0 %v962
        %1244 = vmatmul.f32.gmra.mxu0 %v933
        %v1245 = vpop.f32.mrf.mxu0
        %v1246 = vadd.f32 %v854, %v1245
        %1247 = vdwg.mxu0
        %1248 = vmatpush.msra.mxu0 0.0
        %1249 = vmatpush.msra.mxu0 0.0
        %1250 = vmatpush.msra.mxu0 0.0
        %1251 = vmatpush.msra.mxu0 0.0
        %1252 = vmatpush.msra.mxu0 0.0
        %1253 = vmatpush.msra.mxu0 0.0
        %1254 = vmatpush.msra.mxu0 0.0
        %1255 = vmatpush.msra.mxu0 0.0
        %1256 = vmatpush.msra.mxu0 0.0
        %1257 = vmatpush.msra.mxu0 0.0
        %1258 = vmatpush.msra.mxu0 0.0
        %1259 = vmatpush.msra.mxu0 0.0
        %1260 = vmatpush.msra.mxu0 0.0
        %1261 = vmatpush.msra.mxu0 0.0
        %1262 = vmatpush.msra.mxu0 0.0
        %1263 = vmatpush.msra.mxu0 %v964
        %1264 = vmatmul.f32.gmra.mxu0 %v933
        %v1265 = vpop.f32.mrf.mxu0
        %v1266 = vadd.f32 %v874, %v1265
        %1267 = vdwg.mxu0
        %1268 = vmatpush.msra.mxu0 0.0
        %1269 = vmatpush.msra.mxu0 0.0
        %1270 = vmatpush.msra.mxu0 0.0
        %1271 = vmatpush.msra.mxu0 0.0
        %1272 = vmatpush.msra.mxu0 0.0
        %1273 = vmatpush.msra.mxu0 0.0
        %1274 = vmatpush.msra.mxu0 0.0
        %1275 = vmatpush.msra.mxu0 0.0
        %1276 = vmatpush.msra.mxu0 0.0
        %1277 = vmatpush.msra.mxu0 0.0
        %1278 = vmatpush.msra.mxu0 0.0
        %1279 = vmatpush.msra.mxu0 0.0
        %1280 = vmatpush.msra.mxu0 0.0
        %1281 = vmatpush.msra.mxu0 0.0
        %1282 = vmatpush.msra.mxu0 0.0
        %1283 = vmatpush.msra.mxu0 %v966
        %1284 = vmatmul.f32.gmra.mxu0 %v933
        %v1285 = vpop.f32.mrf.mxu0
        %v1286 = vadd.f32 %v894, %v1285
        %1287 = vdwg.mxu0
        %v1304 = vrot.slane %v1006, 7
        %v1305 = vrot.slane %v1026, 6
        %v1306 = vrot.slane %v1046, 5
        %v1307 = vrot.slane %v1066, 4
        %v1308 = vrot.slane %v1086, 3
        %v1309 = vrot.slane %v1106, 2
        %v1310 = vrot.slane %v1126, 1
        %v1311 = vrot.slane %v1166, 7
        %v1312 = vrot.slane %v1186, 6
        %v1313 = vrot.slane %v1206, 5
        %v1314 = vrot.slane %v1226, 4
        %v1315 = vrot.slane %v1246, 3
        %v1316 = vrot.slane %v1266, 2
        %v1317 = vrot.slane %v1286, 1
        %vm1318 = vcmask 1040384
        %v1319 = vsel %vm1318, %v986, %v1304
        %vm1320 = vcmask 1042434
        %v1321 = vsel %vm1320, %v1305, %v1306
        %vm1322 = vcmask 1041408
        %v1323 = vsel %vm1322, %v1319, %v1321
        %vm1324 = vcmask 1044484
        %v1325 = vsel %vm1324, %v1307, %v1308
        %vm1326 = vcmask 1046534
        %v1327 = vsel %vm1326, %v1309, %v1310
        %vm1328 = vcmask 1045508
        %v1329 = vsel %vm1328, %v1325, %v1327
        %v1330 = vsel %vm935, %v1323, %v1329
        %v1331 = vsel %vm1318, %v1146, %v1311
        %v1332 = vsel %vm1320, %v1312, %v1313
        %v1333 = vsel %vm1322, %v1331, %v1332
        %v1334 = vsel %vm1324, %v1314, %v1315
        %v1335 = vsel %vm1326, %v1316, %v1317
        %v1336 = vsel %vm1328, %v1334, %v1335
        %v1337 = vsel %vm935, %v1333, %v1336
        %vm1338 = vcmask 1041409
        %v1339 = vsel %vm1338, %v986, %v1304
        %vm1340 = vcmask 1043459
        %v1341 = vsel %vm1340, %v1305, %v1306
        %vm1342 = vcmask 1042433
        %v1343 = vsel %vm1342, %v1339, %v1341
        %vm1344 = vcmask 1045509
        %v1345 = vsel %vm1344, %v1307, %v1308
        %vm1346 = vcmask 1046528
        %v1347 = vsel %vm1346, %v1310, %v1309
        %vm1348 = vcmask 1046533
        %v1349 = vsel %vm1348, %v1345, %v1347
        %vm1350 = vcmask 1044481
        %v1351 = vsel %vm1350, %v1343, %v1349
        %v1352 = vrot.slane %v1351, 1
        %v1353 = vsel %vm1338, %v1146, %v1311
        %v1354 = vsel %vm1340, %v1312, %v1313
        %v1355 = vsel %vm1342, %v1353, %v1354
        %v1356 = vsel %vm1344, %v1314, %v1315
        %v1357 = vsel %vm1346, %v1317, %v1316
        %v1358 = vsel %vm1348, %v1356, %v1357
        %v1359 = vsel %vm1350, %v1355, %v1358
        %v1360 = vrot.slane %v1359, 1
        %v1361 = vsel %vm1320, %v986, %v1304
        %v1362 = vsel %vm1324, %v1305, %v1306
        %vm1363 = vcmask 1043458
        %v1364 = vsel %vm1363, %v1361, %v1362
        %v1365 = vsel %vm1326, %v1307, %v1308
        %v1366 = vsel %vm1318, %v1309, %v1310
        %vm1367 = vcmask 1045504
        %v1368 = vsel %vm1367, %v1366, %v1365
        %vm1369 = vcmask 1045506
        %v1370 = vsel %vm1369, %v1364, %v1368
        %v1371 = vrot.slane %v1370, 2
        %v1372 = vsel %vm1320, %v1146, %v1311
        %v1373 = vsel %vm1324, %v1312, %v1313
        %v1374 = vsel %vm1363, %v1372, %v1373
        %v1375 = vsel %vm1326, %v1314, %v1315
        %v1376 = vsel %vm1318, %v1316, %v1317
        %v1377 = vsel %vm1367, %v1376, %v1375
        %v1378 = vsel %vm1369, %v1374, %v1377
        %v1379 = vrot.slane %v1378, 2
        %v1380 = vsel %vm1340, %v986, %v1304
        %v1381 = vsel %vm1344, %v1305, %v1306
        %vm1382 = vcmask 1044483
        %v1383 = vsel %vm1382, %v1380, %v1381
        %v1384 = vsel %vm1346, %v1308, %v1307
        %v1385 = vsel %vm1338, %v1309, %v1310
        %vm1386 = vcmask 1046529
        %v1387 = vsel %vm1386, %v1385, %v1384
        %vm1388 = vcmask 1046531
        %v1389 = vsel %vm1388, %v1383, %v1387
        %v1390 = vrot.slane %v1389, 3
        %v1391 = vsel %vm1340, %v1146, %v1311
        %v1392 = vsel %vm1344, %v1312, %v1313
        %v1393 = vsel %vm1382, %v1391, %v1392
        %v1394 = vsel %vm1346, %v1315, %v1314
        %v1395 = vsel %vm1338, %v1316, %v1317
        %v1396 = vsel %vm1386, %v1395, %v1394
        %v1397 = vsel %vm1388, %v1393, %v1396
        %v1398 = vrot.slane %v1397, 3
        %v1399 = vsel %vm1324, %v986, %v1304
        %v1400 = vsel %vm1326, %v1305, %v1306
        %v1401 = vsel %vm1328, %v1399, %v1400
        %v1402 = vsel %vm1318, %v1307, %v1308
        %v1403 = vsel %vm1320, %v1309, %v1310
        %v1404 = vsel %vm1322, %v1402, %v1403
        %v1405 = vsel %vm935, %v1404, %v1401
        %v1406 = vrot.slane %v1405, 4
        %v1407 = vsel %vm1324, %v1146, %v1311
        %v1408 = vsel %vm1326, %v1312, %v1313
        %v1409 = vsel %vm1328, %v1407, %v1408
        %v1410 = vsel %vm1318, %v1314, %v1315
        %v1411 = vsel %vm1320, %v1316, %v1317
        %v1412 = vsel %vm1322, %v1410, %v1411
        %v1413 = vsel %vm935, %v1412, %v1409
        %v1414 = vrot.slane %v1413, 4
        %v1415 = vsel %vm1344, %v986, %v1304
        %v1416 = vsel %vm1346, %v1306, %v1305
        %v1417 = vsel %vm1348, %v1415, %v1416
        %v1418 = vsel %vm1338, %v1307, %v1308
        %v1419 = vsel %vm1340, %v1309, %v1310
        %v1420 = vsel %vm1342, %v1418, %v1419
        %v1421 = vsel %vm1350, %v1420, %v1417
        %v1422 = vrot.slane %v1421, 5
        %v1423 = vsel %vm1344, %v1146, %v1311
        %v1424 = vsel %vm1346, %v1313, %v1312
        %v1425 = vsel %vm1348, %v1423, %v1424
        %v1426 = vsel %vm1338, %v1314, %v1315
        %v1427 = vsel %vm1340, %v1316, %v1317
        %v1428 = vsel %vm1342, %v1426, %v1427
        %v1429 = vsel %vm1350, %v1428, %v1425
        %v1430 = vrot.slane %v1429, 5
        %v1431 = vsel %vm1326, %v986, %v1304
        %v1432 = vsel %vm1318, %v1305, %v1306
        %v1433 = vsel %vm1367, %v1432, %v1431
        %v1434 = vsel %vm1320, %v1307, %v1308
        %v1435 = vsel %vm1324, %v1309, %v1310
        %v1436 = vsel %vm1363, %v1434, %v1435
        %v1437 = vsel %vm1369, %v1436, %v1433
        %v1438 = vrot.slane %v1437, 6
        %v1439 = vsel %vm1326, %v1146, %v1311
        %v1440 = vsel %vm1318, %v1312, %v1313
        %v1441 = vsel %vm1367, %v1440, %v1439
        %v1442 = vsel %vm1320, %v1314, %v1315
        %v1443 = vsel %vm1324, %v1316, %v1317
        %v1444 = vsel %vm1363, %v1442, %v1443
        %v1445 = vsel %vm1369, %v1444, %v1441
        %v1446 = vrot.slane %v1445, 6
        %v1447 = vsel %vm1346, %v1304, %v986
        %v1448 = vsel %vm1338, %v1305, %v1306
        %v1449 = vsel %vm1386, %v1448, %v1447
        %v1450 = vsel %vm1340, %v1307, %v1308
        %v1451 = vsel %vm1344, %v1309, %v1310
        %v1452 = vsel %vm1382, %v1450, %v1451
        %v1453 = vsel %vm1388, %v1452, %v1449
        %v1454 = vrot.slane %v1453, 7
        %v1455 = vsel %vm1346, %v1311, %v1146
        %v1456 = vsel %vm1338, %v1312, %v1313
        %v1457 = vsel %vm1386, %v1456, %v1455
        %v1458 = vsel %vm1340, %v1314, %v1315
        %v1459 = vsel %vm1344, %v1316, %v1317
        %v1460 = vsel %vm1382, %v1458, %v1459
        %v1461 = vsel %vm1388, %v1460, %v1457
        %v1462 = vrot.slane %v1461, 7
        %1479 = vmatpush.msra.mxu0 %v545
        %1480 = vmatpush.msra.mxu0 %v544
        %1481 = vmatpush.msra.mxu0 %v543
        %1482 = vmatpush.msra.mxu0 %v542
        %1483 = vmatpush.msra.mxu0 %v541
        %1484 = vmatpush.msra.mxu0 %v540
        %1485 = vmatpush.msra.mxu0 %v539
        %1486 = vmatpush.msra.mxu0 %v538
        %1487 = vmatpush.msra.mxu0 %v537
        %1488 = vmatpush.msra.mxu0 %v536
        %1489 = vmatpush.msra.mxu0 %v535
        %1490 = vmatpush.msra.mxu0 %v534
        %1491 = vmatpush.msra.mxu0 %v533
        %1492 = vmatpush.msra.mxu0 %v532
        %1493 = vmatpush.msra.mxu0 %v531
        %1494 = vmatpush.msra.mxu0 %v530
        %1495 = vmatmul.f32.gmra.mxu0 %v514
        %v1496 = vpop.f32.mrf.mxu0
        %v1497 = vadd.f32 %v1330, %v1496
        %1498 = vmatmul.f32.gmra.mxu0 %v515
        %v1499 = vpop.f32.mrf.mxu0
        %v1500 = vadd.f32 %v1337, %v1499
        %1501 = vmatmul.f32.gmra.mxu0 %v516
        %v1502 = vpop.f32.mrf.mxu0
        %v1503 = vadd.f32 %v1352, %v1502
        %1504 = vmatmul.f32.gmra.mxu0 %v517
        %v1505 = vpop.f32.mrf.mxu0
        %v1506 = vadd.f32 %v1360, %v1505
        %1507 = vmatmul.f32.gmra.mxu0 %v518
        %v1508 = vpop.f32.mrf.mxu0
        %v1509 = vadd.f32 %v1371, %v1508
        %1510 = vmatmul.f32.gmra.mxu0 %v519
        %v1511 = vpop.f32.mrf.mxu0
        %v1512 = vadd.f32 %v1379, %v1511
        %1513 = vmatmul.f32.gmra.mxu0 %v520
        %v1514 = vpop.f32.mrf.mxu0
        %v1515 = vadd.f32 %v1390, %v1514
        %1516 = vmatmul.f32.gmra.mxu0 %v521
        %v1517 = vpop.f32.mrf.mxu0
        %v1518 = vadd.f32 %v1398, %v1517
        %1519 = vmatmul.f32.gmra.mxu0 %v522
        %v1520 = vpop.f32.mrf.mxu0
        %v1521 = vadd.f32 %v1406, %v1520
        %1522 = vmatmul.f32.gmra.mxu0 %v523
        %v1523 = vpop.f32.mrf.mxu0
        %v1524 = vadd.f32 %v1414, %v1523
        %1525 = vmatmul.f32.gmra.mxu0 %v524
        %v1526 = vpop.f32.mrf.mxu0
        %v1527 = vadd.f32 %v1422, %v1526
        %1528 = vmatmul.f32.gmra.mxu0 %v525
        %v1529 = vpop.f32.mrf.mxu0
        %v1530 = vadd.f32 %v1430, %v1529
        %1531 = vmatmul.f32.gmra.mxu0 %v526
        %v1532 = vpop.f32.mrf.mxu0
        %v1533 = vadd.f32 %v1438, %v1532
        %1534 = vmatmul.f32.gmra.mxu0 %v527
        %v1535 = vpop.f32.mrf.mxu0
        %v1536 = vadd.f32 %v1446, %v1535
        %1537 = vmatmul.f32.gmra.mxu0 %v528
        %v1538 = vpop.f32.mrf.mxu0
        %v1539 = vadd.f32 %v1454, %v1538
        %1540 = vmatmul.f32.gmra.mxu0 %v529
        %v1541 = vpop.f32.mrf.mxu0
        %v1542 = vadd.f32 %v1462, %v1541
        %1543 = vdwg.mxu0
        %v1544 = vld [vmem:[%s6] sm:$0x1]
        %v1546 = vperm.slane %v1544, 0
        %v1548 = vadd.f32 %v1497, %v1546
        %v1549 = vadd.f32 %v1500, %v1546
        %v1550 = vadd.f32 %v1503, %v1546
        %v1551 = vadd.f32 %v1506, %v1546
        %v1552 = vadd.f32 %v1509, %v1546
        %v1553 = vadd.f32 %v1512, %v1546
        %v1554 = vadd.f32 %v1515, %v1546
        %v1555 = vadd.f32 %v1518, %v1546
        %v1556 = vadd.f32 %v1521, %v1546
        %v1557 = vadd.f32 %v1524, %v1546
        %v1558 = vadd.f32 %v1527, %v1546
        %v1559 = vadd.f32 %v1530, %v1546
        %v1560 = vadd.f32 %v1533, %v1546
        %v1561 = vadd.f32 %v1536, %v1546
        %v1562 = vadd.f32 %v1539, %v1546
        %v1563 = vadd.f32 %v1542, %v1546
        %v1564 = vmax.f32 %v1548, 0.0
        %v1565 = vmax.f32 %v1549, 0.0
        %v1566 = vmax.f32 %v1550, 0.0
        %v1567 = vmax.f32 %v1551, 0.0
        %v1568 = vmax.f32 %v1552, 0.0
        %v1569 = vmax.f32 %v1553, 0.0
        %v1570 = vmax.f32 %v1554, 0.0
        %v1571 = vmax.f32 %v1555, 0.0
        %v1572 = vmax.f32 %v1556, 0.0
        %v1573 = vmax.f32 %v1557, 0.0
        %v1574 = vmax.f32 %v1558, 0.0
        %v1575 = vmax.f32 %v1559, 0.0
        %v1576 = vmax.f32 %v1560, 0.0
        %v1577 = vmax.f32 %v1561, 0.0
        %v1578 = vmax.f32 %v1562, 0.0
        %v1579 = vmax.f32 %v1563, 0.0
        %v1580 = vld [vmem:[#allocation9] sm:$0xff]
        %v1581 = vld [vmem:[#allocation9 + $0x8] sm:$0xff]
        %v1582 = vld [vmem:[#allocation9 + $0x10] sm:$0xff]
        %v1583 = vld [vmem:[#allocation9 + $0x18] sm:$0xff]
        %v1584 = vld [vmem:[#allocation9 + $0x20] sm:$0xff]
        %v1585 = vld [vmem:[#allocation9 + $0x28] sm:$0xff]
        %v1586 = vld [vmem:[#allocation9 + $0x30] sm:$0xff]
        %v1587 = vld [vmem:[#allocation9 + $0x38] sm:$0xff]
        %v1588 = vld [vmem:[#allocation9 + $0x40] sm:$0xff]
        %v1589 = vld [vmem:[#allocation9 + $0x48] sm:$0xff]
        %v1590 = vld [vmem:[#allocation9 + $0x50] sm:$0xff]
        %v1591 = vld [vmem:[#allocation9 + $0x58] sm:$0xff]
        %v1592 = vld [vmem:[#allocation9 + $0x60] sm:$0xff]
        %v1593 = vld [vmem:[#allocation9 + $0x68] sm:$0xff]
        %v1594 = vld [vmem:[#allocation9 + $0x70] sm:$0xff]
        %v1595 = vld [vmem:[#allocation9 + $0x78] sm:$0xff]
        %v1596 = vld [vmem:[%s8] sm:$0x1]
        %v1598 = vperm.slane %v1596, 0
        %1600 = vmatpush.msra.mxu0 %v1595
        %1601 = vmatpush.msra.mxu0 %v1594
        %1602 = vmatpush.msra.mxu0 %v1593
        %1603 = vmatpush.msra.mxu0 %v1592
        %1604 = vmatpush.msra.mxu0 %v1591
        %1605 = vmatpush.msra.mxu0 %v1590
        %1606 = vmatpush.msra.mxu0 %v1589
        %1607 = vmatpush.msra.mxu0 %v1588
        %1608 = vmatpush.msra.mxu0 %v1587
        %1609 = vmatpush.msra.mxu0 %v1586
        %1610 = vmatpush.msra.mxu0 %v1585
        %1611 = vmatpush.msra.mxu0 %v1584
        %1612 = vmatpush.msra.mxu0 %v1583
        %1613 = vmatpush.msra.mxu0 %v1582
        %1614 = vmatpush.msra.mxu0 %v1581
        %1615 = vmatpush.msra.mxu0 %v1580
        %1616 = vmatmul.f32.gmra.mxu0 %v1564
        %v1617 = vpop.f32.mrf.mxu0
        %v1618 = vadd.f32 %v1598, %v1617
        %1619 = vmatmul.f32.gmra.mxu0 %v1565
        %v1620 = vpop.f32.mrf.mxu0
        %v1621 = vadd.f32 %v1598, %v1620
        %1622 = vmatmul.f32.gmra.mxu0 %v1566
        %v1623 = vpop.f32.mrf.mxu0
        %v1624 = vadd.f32 %v1598, %v1623
        %1625 = vmatmul.f32.gmra.mxu0 %v1567
        %v1626 = vpop.f32.mrf.mxu0
        %v1627 = vadd.f32 %v1598, %v1626
        %1628 = vmatmul.f32.gmra.mxu0 %v1568
        %v1629 = vpop.f32.mrf.mxu0
        %v1630 = vadd.f32 %v1598, %v1629
        %1631 = vmatmul.f32.gmra.mxu0 %v1569
        %v1632 = vpop.f32.mrf.mxu0
        %v1633 = vadd.f32 %v1598, %v1632
        %1634 = vmatmul.f32.gmra.mxu0 %v1570
        %v1635 = vpop.f32.mrf.mxu0
        %v1636 = vadd.f32 %v1598, %v1635
        %1637 = vmatmul.f32.gmra.mxu0 %v1571
        %v1638 = vpop.f32.mrf.mxu0
        %v1639 = vadd.f32 %v1598, %v1638
        %1640 = vmatmul.f32.gmra.mxu0 %v1572
        %v1641 = vpop.f32.mrf.mxu0
        %v1642 = vadd.f32 %v1598, %v1641
        %1643 = vmatmul.f32.gmra.mxu0 %v1573
        %v1644 = vpop.f32.mrf.mxu0
        %v1645 = vadd.f32 %v1598, %v1644
        %1646 = vmatmul.f32.gmra.mxu0 %v1574
        %v1647 = vpop.f32.mrf.mxu0
        %v1648 = vadd.f32 %v1598, %v1647
        %1649 = vmatmul.f32.gmra.mxu0 %v1575
        %v1650 = vpop.f32.mrf.mxu0
        %v1651 = vadd.f32 %v1598, %v1650
        %1652 = vmatmul.f32.gmra.mxu0 %v1576
        %v1653 = vpop.f32.mrf.mxu0
        %v1654 = vadd.f32 %v1598, %v1653
        %1655 = vmatmul.f32.gmra.mxu0 %v1577
        %v1656 = vpop.f32.mrf.mxu0
        %v1657 = vadd.f32 %v1598, %v1656
        %1658 = vmatmul.f32.gmra.mxu0 %v1578
        %v1659 = vpop.f32.mrf.mxu0
        %v1660 = vadd.f32 %v1598, %v1659
        %1661 = vmatmul.f32.gmra.mxu0 %v1579
        %v1662 = vpop.f32.mrf.mxu0
        %v1663 = vadd.f32 %v1598, %v1662
        %1664 = vdwg.mxu0
        %1665 = vst [vmem:[%s503] sm:$0xff] %v1618
        %1666 = vst [vmem:[%s503 + $0x8] sm:$0xff] %v1621
        %1667 = vst [vmem:[%s503 + $0x10] sm:$0xff] %v1624
        %1668 = vst [vmem:[%s503 + $0x18] sm:$0xff] %v1627
        %1669 = vst [vmem:[%s503 + $0x20] sm:$0xff] %v1630
        %1670 = vst [vmem:[%s503 + $0x28] sm:$0xff] %v1633
        %1671 = vst [vmem:[%s503 + $0x30] sm:$0xff] %v1636
        %1672 = vst [vmem:[%s503 + $0x38] sm:$0xff] %v1639
        %1673 = vst [vmem:[%s503 + $0x40] sm:$0xff] %v1642
        %1674 = vst [vmem:[%s503 + $0x48] sm:$0xff] %v1645
        %1675 = vst [vmem:[%s503 + $0x50] sm:$0xff] %v1648
        %1676 = vst [vmem:[%s503 + $0x58] sm:$0xff] %v1651
        %1677 = vst [vmem:[%s503 + $0x60] sm:$0xff] %v1654
        %1678 = vst [vmem:[%s503 + $0x68] sm:$0xff] %v1657
        %1679 = vst [vmem:[%s503 + $0x70] sm:$0xff] %v1660
        %1680 = vst [vmem:[%s503 + $0x78] sm:$0xff] %v1663
        %s1681 = sand.u32 %s265, 1
        %s1682 = scalar_lea.sflag [#allocation4], %s1681
        %s1683 = sand.u32 %s265, 1
        %s1684 = smul.addr %s1683, 128
        %s1685 = scalar_lea.vmem [#allocation10], %s1684
        // Predicated region
        $region77: #{tpu_custom_call.1} parent=55 // pred_check
          %p1686 = pneg %p275
        $region78: #{tpu_custom_call.1} parent=55 // pred_check_branch
          %1688 = sbr.rel (%p1686) target = $region80
        $region79: #{tpu_custom_call.1} parent=55 // pred_region
          %s1689 = smul.u32 16, %s32
          %1691 = vsyncadd %s1682, 0
          %s1692 = smul.addr %s31, 32
          %s1693 = sadd.s32 %s1689, %s1692
          %s1694 = smul.addr %s1693, 8
          %s1695 = scalar_lea.hbm %s9, %s1694
          %s1696 = sshll.u32 %s1685, 4
          %s1697 = int_to_ptr.vmem [resolvable:$true] %s1696
          %s1698 = sshll.u32 %s1695, 4
          %s1699 = int_to_ptr.hbm [resolvable:$true] %s1698
          %1704 = dma.vmem_to_hbm [thread:$0]  %s1697, 2048, %s1699, %s1682, 128, 128, 8
        $region80: #{tpu_custom_call.1} parent=55 // pred_fallthru
          _
      $region56: #{tpu_custom_call.1} parent=5 // pred_fallthru
        _
      %p1705 = scmp.le.s32.totalorder 2, %s22
      // Predicated region
      $region81: #{tpu_custom_call.1} parent=5 // pred_check
        %p1706 = pneg %p1705
      $region82: #{tpu_custom_call.1} parent=5 // pred_check_branch
        %1708 = sbr.rel (%p1706) target = $region84
      $region83: #{tpu_custom_call.1} parent=5 // pred_region
        %s1709 = ssub.s32 %s22, 2
        // Predicated region
        $region85: #{tpu_custom_call.1} parent=83 // pred_check
          %p1710 = pneg %p281
        $region86: #{tpu_custom_call.1} parent=83 // pred_check_branch
          %1712 = sbr.rel (%p1710) target = $region88
        $region87: #{tpu_custom_call.1} parent=83 // pred_region
          %s1713 = sand.u32 %s266, 1
          %s1714 = scalar_lea.sflag [#allocation4], %s1713
          %s1715 = sand.u32 %s266, 1
          %s1716 = smul.addr %s1715, 128
          %s1717 = scalar_lea.vmem [#allocation10], %s1716
          %1719 = dma.done %s1714, 2048
        $region88: #{tpu_custom_call.1} parent=83 // pred_fallthru
          _
      $region84: #{tpu_custom_call.1} parent=5 // pred_fallthru
        _
    $region6: #{tpu_custom_call.1} parent=1 // loop_footer
      %s26 = sadd.s32 1, %s22
    $region7: #{tpu_custom_call.1} parent=1 // loop_footer_branch
      %21 = sbr.rel target = $region3
    $region8: #{tpu_custom_call.1} parent=1 // loop_exit
      _
    %1720 = vsyncpa [#allocation3], 1
    %s1721 = scalar_lea.sflag [#allocation3], 1
    %1722 = vsyncpa %s1721, 1
    %1723 = vsyncpa [#allocation6], 1
    %1724 = vsyncpa [#allocation4], 1
    %s1725 = scalar_lea.sflag [#allocation4], 1
    %1726 = vsyncpa %s1725, 1

</llo_original>
